<compile_context>
chip_gen: v7x
topology: tpu7x:2x2x1
jax: 0.10.0
libtpu: 0.0.40
codegen_flags: <defaults>
</compile_context>

<pallas_src>
import functools
import math

import jax
import jax.numpy as jnp
from jax.experimental import pallas as pl
from jax.experimental.pallas import tpu as pltpu

_LN_EPS = 1e-5
_PAD_LANES = 128          # lane-dense output / head-slab width
_NEG_INF = -1e9

_PARAM_ORDER = (
    "w_in_bbox", "w_in_label", "b_in", "enc_token",
    "dec_in_wf", "pos_proj", "head_w", "head_b",
    "wqkv", "bqkv", "wo", "ff1", "ff2", "vecs",
)


def _bf(x):
    return x.astype(jnp.bfloat16)


def _round_up(x, m):
    return ((x + m - 1) // m) * m


# ----------------------------------------------------------------------------
# In-kernel building blocks (operate on VMEM-resident values, not refs)
# ----------------------------------------------------------------------------
def _layer_norm(x, g, b):
    # E[x^2] - mean^2: two independent lane reductions (shorter XLU dep chain).
    mu = jnp.mean(x, axis=-1, keepdims=True)
    ms = jnp.mean(x * x, axis=-1, keepdims=True)
    var = jnp.maximum(ms - mu * mu, 0.0)
    return (x - mu) * jax.lax.rsqrt(var + _LN_EPS) * g + b


def _encoder_layer(x, add_mask, li, wqkv_ref, bqkv_ref, wo_ref, ff1_ref,
                   ff2_ref, vecs_ref, *, nhead, dff):
    """Post-LN nn.TransformerEncoderLayer (relu FF) on a flattened (M, D) tile.

    add_mask: (M, M) additive score mask (key padding + block-diagonal across the
    batch tile).  li: static layer index into the stacked per-layer slabs.
    """
    M, D = x.shape
    Dh = D // nhead
    scale = 1.0 / math.sqrt(Dh)

    vecs = vecs_ref[li]                              # (7, D) f32
    bo = vecs[0:1, :]
    ln1_g, ln1_b = vecs[1:2, :], vecs[2:3, :]
    ln2_g, ln2_b = vecs[3:4, :], vecs[4:5, :]
    ff1_b = vecs[5:6, :dff]
    ff2_b = vecs[6:7, :]

    # fused QKV projection: a single (M, D) @ (D, 3D) matmul
    qkv = (jnp.dot(_bf(x), wqkv_ref[li], preferred_element_type=jnp.float32)
           + bqkv_ref[li])                           # (M, 3D) f32

    o_heads = []
    for h in range(nhead):
        q = qkv[:, h * Dh:(h + 1) * Dh]
        k = qkv[:, D + h * Dh:D + (h + 1) * Dh]
        v = qkv[:, 2 * D + h * Dh:2 * D + (h + 1) * Dh]
        # scores = q @ k.T (contract last dims, no explicit transpose)
        s = jax.lax.dot_general(_bf(q), _bf(k), (((1,), (1,)), ((), ())),
                                preferred_element_type=jnp.float32) * scale
        s = s + add_mask
        s = s - jnp.max(s, axis=-1, keepdims=True)
        e = jnp.exp(s)
        denom = jnp.sum(e, axis=-1, keepdims=True)
        p_attn = e * pl.reciprocal(denom, approx=True)       # EUP, not VPU divide
        o_heads.append(jnp.dot(_bf(p_attn), _bf(v),
                               preferred_element_type=jnp.float32))   # (M, Dh)
    o = o_heads[0] if nhead == 1 else jnp.concatenate(o_heads, axis=-1)  # (M, D)
    attn = jnp.dot(_bf(o), wo_ref[li], preferred_element_type=jnp.float32) + bo

    x1 = _layer_norm(x + attn, ln1_g, ln1_b)
    h1 = jnp.maximum(
        jnp.dot(_bf(x1), ff1_ref[li], preferred_element_type=jnp.float32) + ff1_b,
        0.0)
    ff = jnp.dot(_bf(h1), ff2_ref[li], preferred_element_type=jnp.float32) + ff2_b
    return _layer_norm(x1 + ff, ln2_g, ln2_b)


# ----------------------------------------------------------------------------
# Fused whole-forward kernel (one grid step == Bt batch elements)
# ----------------------------------------------------------------------------
def _make_kernel(*, Bt, N, Sp_enc, Sp_dec, D, dff, num_label, nhead, num_layers):
    disc_lane = num_label + 4
    enc_pad = Sp_enc - 1 - N
    dec_pad = Sp_dec - N

    def kernel(bbox_ref, label_ref, encm_ref, decm_ref,
               w_in_bbox_ref, w_in_label_ref, b_in_ref, enc_token_ref,
               dec_in_wf_ref, pos_proj_ref, head_w_ref, head_b_ref,
               wqkv_ref, bqkv_ref, wo_ref, ff1_ref, ff2_ref, vecs_ref,
               out_ref):
        layer_refs = (wqkv_ref, bqkv_ref, wo_ref, ff1_ref, ff2_ref, vecs_ref)

        # ---- fused input embedding: enc_fc_in ∘ [fc_bbox | emb_label] ----
        Mi = Bt * N
        bbox = bbox_ref[...].reshape(Mi, 4)
        lab = label_ref[...].reshape(Mi, 1)
        onehot = (jax.lax.broadcasted_iota(jnp.int32, (Mi, num_label), 1)
                  == lab).astype(jnp.float32)
        x = (jnp.dot(_bf(bbox), w_in_bbox_ref[...],
                     preferred_element_type=jnp.float32)
             + jnp.dot(_bf(onehot), w_in_label_ref[...],
                       preferred_element_type=jnp.float32)
             + b_in_ref[...])
        x = jnp.maximum(x, 0.0)                                  # (Bt*N, D)

        # ---- encoder (TransformerWithToken), sequence padded to Sp_enc ----
        tok3 = jnp.broadcast_to(enc_token_ref[...].reshape(1, 1, D), (Bt, 1, D))
        parts = [tok3, x.reshape(Bt, N, D)]
        if enc_pad > 0:
            parts.append(jnp.zeros((Bt, enc_pad, D), jnp.float32))
        xe = jnp.concatenate(parts, axis=1).reshape(Bt * Sp_enc, D)
        enc_mask = encm_ref[0]                                   # (Bt*Sp_enc,)^2
        for i in range(num_layers):
            xe = _encoder_layer(xe, enc_mask, i, *layer_refs,
                                nhead=nhead, dff=dff)

        feat = xe.reshape(Bt, Sp_enc, D)[:, 0:1, :].reshape(Bt, D)   # token rows
        feat_b = _bf(feat)

        # disc head shares the lane-packed head slab (only lane `disc_lane` used)
        disc_full = (jnp.dot(feat_b, head_w_ref[...],
                             preferred_element_type=jnp.float32)
                     + head_b_ref[...])                          # (Bt, 128)

        # ---- decoder branch (pos-token projection pre-folded into pos_proj) ----
        featproj = jnp.dot(feat_b, dec_in_wf_ref[...],
                           preferred_element_type=jnp.float32)   # (Bt, D)
        xd3 = jnp.maximum(featproj[:, None, :] + pos_proj_ref[...][None, :, :],
                          0.0)                                   # (Bt, N, D)
        if dec_pad > 0:
            xd3 = jnp.concatenate(
                [xd3, jnp.zeros((Bt, dec_pad, D), jnp.float32)], axis=1)
        xd = xd3.reshape(Bt * Sp_dec, D)
        dec_mask = decm_ref[0]
        for i in range(num_layers):
            xd = _encoder_layer(xd, dec_mask, num_layers + i, *layer_refs,
                                nhead=nhead, dff=dff)

        # ---- cls + bbox + disc packed into ONE lane-dense (Bt, N, 128) store ----
        y = (jnp.dot(_bf(xd), head_w_ref[...],
                     preferred_element_type=jnp.float32)
             + head_b_ref[...])                                  # (Bt*Sp_dec, 128)
        lane = jax.lax.broadcasted_iota(jnp.int32, y.shape, 1)
        is_bbox = (lane >= num_label) & (lane < num_label + 4)
        y = jnp.where(is_bbox, jax.nn.sigmoid(y), y)
        y3 = y.reshape(Bt, Sp_dec, _PAD_LANES)
        if dec_pad > 0:
            y3 = y3[:, :N, :]
        row_i = jax.lax.broadcasted_iota(jnp.int32, (Bt, N, _PAD_LANES), 1)
        lane_i = jax.lax.broadcasted_iota(jnp.int32, (Bt, N, _PAD_LANES), 2)
        is_disc = (row_i == 0) & (lane_i == disc_lane)
        out_ref[...] = jnp.where(is_disc, disc_full[:, None, :], y3)

    return kernel


# ----------------------------------------------------------------------------
# One-time weight staging: fused QKV, fused input linear, folded pos projection,
# lane-packed output heads, per-layer stacking, bf16 matmul operands.
# ----------------------------------------------------------------------------
def prepare_params(params, *, nhead, seq_len):
    del nhead  # head split happens in-kernel via lane slices of the fused QKV
    f32, bf16 = jnp.float32, jnp.bfloat16
    D = params["fc_bbox_w"].shape[1]
    dff = params["enc_layers"][0]["ff1_w"].shape[1]
    num_label = params["fc_out_cls_w"].shape[1]
    N = seq_len

    with jax.default_matmul_precision("highest"):
        enc_in_wb = params["enc_fc_in_w"][:D]
        enc_in_wl = params["enc_fc_in_w"][D:]
        # fold fc_bbox / emb_label through enc_fc_in (exact linear composition)
        w_in_bbox = params["fc_bbox_w"] @ enc_in_wb                   # (4, D)
        w_in_label = params["emb_label"] @ enc_in_wl                  # (num_label, D)
        b_in = (params["fc_bbox_b"] @ enc_in_wb
                + params["enc_fc_in_b"]).reshape(1, D)

        dec_in_wf = params["dec_fc_in_w"][:D]
        dec_in_wp = params["dec_fc_in_w"][D:]
        pos_proj = (params["pos_token"][:N, 0, :] @ dec_in_wp
                    + params["dec_fc_in_b"]).reshape(N, D)

    def prep_layer(lp):
        return dict(
            wqkv=lp["in_proj_w"],                                     # (D, 3D)
            bqkv=lp["in_proj_b"].reshape(1, 3 * D),
            wo=lp["out_proj_w"],                                      # (D, D)
            ff1=lp["ff1_w"],                                          # (D, dff)
            ff2=lp["ff2_w"],                                          # (dff, D)
            vecs=jnp.stack([
                lp["out_proj_b"],
                lp["ln1_g"], lp["ln1_b"], lp["ln2_g"], lp["ln2_b"],
                jnp.pad(lp["ff1_b"], (0, D - dff)),
                lp["ff2_b"],
            ]),                                                       # (7, D)
        )

    layer_list = ([prep_layer(lp) for lp in params["enc_layers"]]
                  + [prep_layer(lp) for lp in params["dec_layers"]])
    stack = lambda k: jnp.stack([lw[k] for lw in layer_list])

    # lane-packed head slab: [cls | bbox | disc | zeros] -> 128 lanes
    head_w = jnp.zeros((D, _PAD_LANES), f32)
    head_w = head_w.at[:, :num_label].set(params["fc_out_cls_w"])
    head_w = head_w.at[:, num_label:num_label + 4].set(params["fc_out_bbox_w"])
    head_w = head_w.at[:, num_label + 4:num_label + 5].set(params["fc_out_disc_w"])
    head_b = jnp.zeros((1, _PAD_LANES), f32)
    head_b = head_b.at[0, :num_label].set(params["fc_out_cls_b"])
    head_b = head_b.at[0, num_label:num_label + 4].set(params["fc_out_bbox_b"])
    head_b = head_b.at[0, num_label + 4:num_label + 5].set(params["fc_out_disc_b"])

    return dict(
        w_in_bbox=w_in_bbox.astype(bf16),
        w_in_label=w_in_label.astype(bf16),
        b_in=b_in.astype(f32),
        enc_token=params["enc_token"].reshape(1, D).astype(f32),
        dec_in_wf=dec_in_wf.astype(bf16),
        pos_proj=pos_proj.astype(f32),
        head_w=head_w.astype(bf16),
        head_b=head_b,
        wqkv=stack("wqkv").astype(bf16),
        bqkv=stack("bqkv").astype(f32),
        wo=stack("wo").astype(bf16),
        ff1=stack("ff1").astype(bf16),
        ff2=stack("ff2").astype(bf16),
        vecs=stack("vecs").astype(f32),
    )


# ----------------------------------------------------------------------------
# FidNet forward (single pallas_call, Bt batch elements per grid step)
# ----------------------------------------------------------------------------
def fidnet_forward(prepped, bbox, label, padding_mask, *, nhead, num_layers,
                   batch_tile=None):
    B, N, _ = bbox.shape
    D = prepped["dec_in_wf"].shape[0]
    num_label = prepped["w_in_label"].shape[0]
    dff = prepped["ff1"].shape[-1]

    if batch_tile is None:
        batch_tile = B // 2 if (B % 2 == 0 and B >= 2) else 1   # >=2 grid steps (v7x)
    Bt = batch_tile
    assert B % Bt == 0, "batch size must be divisible by batch_tile"
    G = B // Bt

    Sp_enc = _round_up(N + 1, 8)       # token + N, padded to full sublane tiles
    Sp_dec = _round_up(N, 8)
    M_enc, M_dec = Bt * Sp_enc, Bt * Sp_dec

    # additive block-diagonal score masks (key padding + cross-element -inf)
    pad_add = jnp.where(padding_mask, _NEG_INF, 0.0).astype(jnp.float32)   # (B, N)
    enc_key = jnp.concatenate(
        [jnp.zeros((B, 1), jnp.float32), pad_add,
         jnp.full((B, Sp_enc - 1 - N), _NEG_INF, jnp.float32)], axis=1)
    dec_key = jnp.concatenate(
        [pad_add, jnp.full((B, Sp_dec - N), _NEG_INF, jnp.float32)], axis=1)

    def block_mask(key_add, Sp):
        M = Bt * Sp
        k = key_add.reshape(G, 1, M)
        blk = jnp.arange(M) // Sp
        same = (blk[:, None] == blk[None, :])[None]          # (1, M, M)
        return jnp.where(same, jnp.broadcast_to(k, (G, M, M)), _NEG_INF)

    enc_mask = block_mask(enc_key, Sp_enc)                   # (G, M_enc, M_enc)
    dec_mask = block_mask(dec_key, Sp_dec)                   # (G, M_dec, M_dec)

    label_in = label.astype(jnp.int32)[..., None]            # (B, N, 1)

    kernel = _make_kernel(Bt=Bt, N=N, Sp_enc=Sp_enc, Sp_dec=Sp_dec, D=D, dff=dff,
                          num_label=num_label, nhead=nhead, num_layers=num_layers)

    data_specs = [
        pl.BlockSpec((Bt, N, 4), lambda g: (g, 0, 0)),
        pl.BlockSpec((Bt, N, 1), lambda g: (g, 0, 0)),
        pl.BlockSpec((1, M_enc, M_enc), lambda g: (g, 0, 0)),
        pl.BlockSpec((1, M_dec, M_dec), lambda g: (g, 0, 0)),
    ]
    flat_params = [prepped[k] for k in _PARAM_ORDER]
    param_specs = [pl.BlockSpec(p.shape, lambda g, _nd=p.ndim: (0,) * _nd)
                   for p in flat_params]

    out_slab = pl.pallas_call(
        kernel,
        out_shape=jax.ShapeDtypeStruct((B, N, _PAD_LANES), jnp.float32),
        grid=(G,),
        in_specs=data_specs + param_specs,
        out_specs=pl.BlockSpec((Bt, N, _PAD_LANES), lambda g: (g, 0, 0)),
        compiler_params=pltpu.CompilerParams(
            dimension_semantics=("parallel",)),
    )(bbox.astype(jnp.float32), label_in, enc_mask, dec_mask, *flat_params)

    logit_disc = out_slab[:, 0, num_label + 4]
    logit_cls = out_slab[:, :, :num_label]
    bbox_pred = out_slab[:, :, num_label:num_label + 4]
    return logit_disc, logit_cls, bbox_pred


# ----------------------------------------------------------------------------
# Pure-JAX reference (mirrors PyTorch FidNet, eval mode) for a correctness check
# ----------------------------------------------------------------------------
def _ref_ln(x, g, b):
    mu = jnp.mean(x, axis=-1, keepdims=True)
    xc = x - mu
    var = jnp.mean(xc * xc, axis=-1, keepdims=True)
    return xc * jax.lax.rsqrt(var + _LN_EPS) * g + b


def _ref_encoder_layer(x, key_pad, p, nhead):
    B, S, D = x.shape
    Dh = D // nhead
    qkv = x @ p["in_proj_w"] + p["in_proj_b"]
    q, k, v = jnp.split(qkv, 3, axis=-1)
    heads = lambda t: t.reshape(B, S, nhead, Dh).transpose(0, 2, 1, 3)
    q, k, v = heads(q), heads(k), heads(v)
    s = jnp.einsum("bhqd,bhkd->bhqk", q, k) / math.sqrt(Dh)
    s = s + jnp.where(key_pad, _NEG_INF, 0.0)[:, None, None, :]
    p_attn = jax.nn.softmax(s, axis=-1)
    o = jnp.einsum("bhqk,bhkd->bhqd", p_attn, v)
    o = o.transpose(0, 2, 1, 3).reshape(B, S, D)
    o = o @ p["out_proj_w"] + p["out_proj_b"]
    x1 = _ref_ln(x + o, p["ln1_g"], p["ln1_b"])
    h = jnp.maximum(x1 @ p["ff1_w"] + p["ff1_b"], 0.0)
    return _ref_ln(x1 + h @ p["ff2_w"] + p["ff2_b"], p["ln2_g"], p["ln2_b"])


def fidnet_reference(params, bbox, label, padding_mask, *, nhead, num_layers):
    B, N, _ = bbox.shape
    D = params["fc_bbox_w"].shape[1]
    b = bbox @ params["fc_bbox_w"] + params["fc_bbox_b"]
    l = params["emb_label"][label]
    x = jnp.concatenate([b, l], axis=-1) @ params["enc_fc_in_w"] + params["enc_fc_in_b"]
    x = jnp.maximum(x, 0.0)
    token = jnp.broadcast_to(params["enc_token"].reshape(1, 1, D), (B, 1, D))
    xe = jnp.concatenate([token, x], axis=1)
    pad = jnp.concatenate([jnp.zeros((B, 1), bool), padding_mask], axis=1)
    for i in range(num_layers):
        xe = _ref_encoder_layer(xe, pad, params["enc_layers"][i], nhead)
    feat = xe[:, 0]
    logit_disc = (feat @ params["fc_out_disc_w"] + params["fc_out_disc_b"])[:, 0]
    pos = params["pos_token"][:N, 0, :]
    xd = jnp.concatenate([jnp.broadcast_to(feat[:, None, :], (B, N, D)),
                          jnp.broadcast_to(pos[None], (B, N, D))], axis=-1)
    xd = jnp.maximum(xd @ params["dec_fc_in_w"] + params["dec_fc_in_b"], 0.0)
    for i in range(num_layers):
        xd = _ref_encoder_layer(xd, padding_mask, params["dec_layers"][i], nhead)
    logit_cls = xd @ params["fc_out_cls_w"] + params["fc_out_cls_b"]
    bbox_pred = jax.nn.sigmoid(xd @ params["fc_out_bbox_w"] + params["fc_out_bbox_b"])
    return logit_disc, logit_cls, bbox_pred


# ----------------------------------------------------------------------------
# Deterministic parameter init (shapes from FidNet.__init__)
# ----------------------------------------------------------------------------
def init_params(key, d_model, nhead, num_layers, max_bbox, num_label):
    dff = d_model // 2
    keys = iter(jax.random.split(key, 256))

    def nrm(shape, scale=0.1):
        return scale * jax.random.normal(next(keys), shape, dtype=jnp.float32)

    def layer_params():
        return dict(
            in_proj_w=nrm((d_model, 3 * d_model)),
            in_proj_b=nrm((3 * d_model,)),
            out_proj_w=nrm((d_model, d_model)),
            out_proj_b=nrm((d_model,)),
            ff1_w=nrm((d_model, dff)),
            ff1_b=nrm((dff,)),
            ff2_w=nrm((dff, d_model)),
            ff2_b=nrm((d_model,)),
            ln1_g=jnp.ones((d_model,), jnp.float32),
            ln1_b=jnp.zeros((d_model,), jnp.float32),
            ln2_g=jnp.ones((d_model,), jnp.float32),
            ln2_b=jnp.zeros((d_model,), jnp.float32),
        )

    return dict(
        emb_label=nrm((num_label, d_model)),
        fc_bbox_w=nrm((4, d_model)),
        fc_bbox_b=nrm((d_model,)),
        enc_fc_in_w=nrm((2 * d_model, d_model)),
        enc_fc_in_b=nrm((d_model,)),
        enc_token=nrm((1, 1, d_model)),
        enc_layers=[layer_params() for _ in range(num_layers)],
        fc_out_disc_w=nrm((d_model, 1)),
        fc_out_disc_b=nrm((1,)),
        pos_token=jax.random.uniform(next(keys), (max_bbox, 1, d_model),
                                     dtype=jnp.float32),
        dec_fc_in_w=nrm((2 * d_model, d_model)),
        dec_fc_in_b=nrm((d_model,)),
        dec_layers=[layer_params() for _ in range(num_layers)],
        fc_out_cls_w=nrm((d_model, num_label)),
        fc_out_cls_b=nrm((num_label,)),
        fc_out_bbox_w=nrm((d_model, 4)),
        fc_out_bbox_b=nrm((4,)),
    )


# ----------------------------------------------------------------------------
if __name__ == "__main__":
    # cfg: d_model=32, n_heads=2, n_layers_encoder=2, max_ele_num=6, max_label_num=5
    d_model = 32
    nhead = 2
    num_layers = 2
    max_bbox = 6 + 2      # max_ele_num + 2
    num_label = 5 + 3     # max_label_num + 3

    B, N = 4, 8           # B=4 with batch_tile=2 -> 2 grid steps (both v7x TCs busy)
    batch_tile = 2

    key = jax.random.PRNGKey(0)
    k_bbox, k_label, k_params = jax.random.split(key, 3)

    bbox = jax.random.uniform(k_bbox, (B, N, 4), dtype=jnp.float32)
    label = jax.random.randint(k_label, (B, N), 0, num_label, dtype=jnp.int32)
    lengths = jnp.array([8, 6, 4, 7], dtype=jnp.int32)
    padding_mask = jnp.arange(N)[None, :] >= lengths[:, None]     # (B, N), True = pad

    params = init_params(k_params, d_model, nhead, num_layers, max_bbox, num_label)
    prepped = prepare_params(params, nhead=nhead, seq_len=N)      # one-time staging

    fwd = jax.jit(functools.partial(
        fidnet_forward, nhead=nhead, num_layers=num_layers, batch_tile=batch_tile))

    logit_disc, logit_cls, bbox_pred = fwd(prepped, bbox, label, padding_mask)
    jax.block_until_ready((logit_disc, logit_cls, bbox_pred))

    assert logit_disc.shape == (B,)
    assert logit_cls.shape == (B, N, num_label)
    assert bbox_pred.shape == (B, N, 4)
    assert bool(jnp.all(jnp.isfinite(logit_disc)))
    assert bool(jnp.all(jnp.isfinite(logit_cls)))
    assert bool(jnp.all(jnp.isfinite(bbox_pred)))

    # correctness check against a pure-JAX reference of the PyTorch module
    # (tolerance loosened slightly to 5e-2 to cover bf16 MXU operands)
    with jax.default_matmul_precision("highest"):
        ref_disc, ref_cls, ref_bbox = fidnet_reference(
            params, bbox, label, padding_mask, nhead=nhead, num_layers=num_layers)
    assert bool(jnp.allclose(logit_disc, ref_disc, atol=5e-2, rtol=5e-2))
    assert bool(jnp.allclose(logit_cls, ref_cls, atol=5e-2, rtol=5e-2))
    assert bool(jnp.allclose(bbox_pred, ref_bbox, atol=5e-2, rtol=5e-2))

    print("KERNEL_OK")
</pallas_src>

<mosaic_0001>
module attributes {stable_mosaic.version = 11 : i64} {
  func.func @kernel(%arg0: i32, %arg1: memref<2x8x4xf32, #tpu.memory_space<vmem>>, %arg2: memref<2x8x1xi32, #tpu.memory_space<vmem>>, %arg3: memref<1x32x32xf32, #tpu.memory_space<vmem>>, %arg4: memref<1x16x16xf32, #tpu.memory_space<vmem>>, %arg5: memref<4x32xbf16, #tpu.memory_space<vmem>>, %arg6: memref<8x32xbf16, #tpu.memory_space<vmem>>, %arg7: memref<1x32xf32, #tpu.memory_space<vmem>>, %arg8: memref<1x32xf32, #tpu.memory_space<vmem>>, %arg9: memref<32x32xbf16, #tpu.memory_space<vmem>>, %arg10: memref<8x32xf32, #tpu.memory_space<vmem>>, %arg11: memref<32x128xbf16, #tpu.memory_space<vmem>>, %arg12: memref<1x128xf32, #tpu.memory_space<vmem>>, %arg13: memref<4x32x96xbf16, #tpu.memory_space<vmem>>, %arg14: memref<4x1x96xf32, #tpu.memory_space<vmem>>, %arg15: memref<4x32x32xbf16, #tpu.memory_space<vmem>>, %arg16: memref<4x32x16xbf16, #tpu.memory_space<vmem>>, %arg17: memref<4x16x32xbf16, #tpu.memory_space<vmem>>, %arg18: memref<4x7x32xf32, #tpu.memory_space<vmem>>, %arg19: memref<2x8x128xf32, #tpu.memory_space<vmem>>) attributes {dimension_semantics = [#tpu.dimension_semantics<parallel>], iteration_bounds = array<i64: 2>, scalar_prefetch = 0 : i64, scratch_operands = 0 : i64, tpu.core_type = #tpu.core_type<tc>, window_params = [{transform_indices = @transform_0, window_bounds = array<i64: 2, 8, 4>}, {transform_indices = @transform_1, window_bounds = array<i64: 2, 8, 1>}, {transform_indices = @transform_2, window_bounds = array<i64: 1, 32, 32>}, {transform_indices = @transform_3, window_bounds = array<i64: 1, 16, 16>}, {pipeline_mode = #tpu.pipeline_mode<synchronous>, transform_indices = @transform_4, window_bounds = array<i64: 4, 32>}, {pipeline_mode = #tpu.pipeline_mode<synchronous>, transform_indices = @transform_5, window_bounds = array<i64: 8, 32>}, {pipeline_mode = #tpu.pipeline_mode<synchronous>, transform_indices = @transform_6, window_bounds = array<i64: 1, 32>}, {pipeline_mode = #tpu.pipeline_mode<synchronous>, transform_indices = @transform_7, window_bounds = array<i64: 1, 32>}, {pipeline_mode = #tpu.pipeline_mode<synchronous>, transform_indices = @transform_8, window_bounds = array<i64: 32, 32>}, {pipeline_mode = #tpu.pipeline_mode<synchronous>, transform_indices = @transform_9, window_bounds = array<i64: 8, 32>}, {pipeline_mode = #tpu.pipeline_mode<synchronous>, transform_indices = @transform_10, window_bounds = array<i64: 32, 128>}, {pipeline_mode = #tpu.pipeline_mode<synchronous>, transform_indices = @transform_11, window_bounds = array<i64: 1, 128>}, {pipeline_mode = #tpu.pipeline_mode<synchronous>, transform_indices = @transform_12, window_bounds = array<i64: 4, 32, 96>}, {pipeline_mode = #tpu.pipeline_mode<synchronous>, transform_indices = @transform_13, window_bounds = array<i64: 4, 1, 96>}, {pipeline_mode = #tpu.pipeline_mode<synchronous>, transform_indices = @transform_14, window_bounds = array<i64: 4, 32, 32>}, {pipeline_mode = #tpu.pipeline_mode<synchronous>, transform_indices = @transform_15, window_bounds = array<i64: 4, 32, 16>}, {pipeline_mode = #tpu.pipeline_mode<synchronous>, transform_indices = @transform_16, window_bounds = array<i64: 4, 16, 32>}, {pipeline_mode = #tpu.pipeline_mode<synchronous>, transform_indices = @transform_17, window_bounds = array<i64: 4, 7, 32>}, {transform_indices = @transform_18, window_bounds = array<i64: 2, 8, 128>}]} {
    %c0 = arith.constant 0 : index
    %c0_0 = arith.constant 0 : index
    %c0_1 = arith.constant 0 : index
    %0 = vector.load %arg1[%c0, %c0_0, %c0_1] : memref<2x8x4xf32, #tpu.memory_space<vmem>>, vector<2x8x4xf32>
    %1 = vector.shape_cast %0 : vector<2x8x4xf32> to vector<16x4xf32>
    %c0_2 = arith.constant 0 : index
    %c0_3 = arith.constant 0 : index
    %c0_4 = arith.constant 0 : index
    %2 = vector.load %arg2[%c0_2, %c0_3, %c0_4] : memref<2x8x1xi32, #tpu.memory_space<vmem>>, vector<2x8x1xi32>
    %3 = vector.shape_cast %2 : vector<2x8x1xi32> to vector<16x1xi32>
    %4 = tpu.iota {dimensions = array<i32: 1>} : vector<16x8xi32>
    %5 = vector.broadcast %3 : vector<16x1xi32> to vector<16x8xi32>
    %6 = arith.cmpi eq, %4, %5 : vector<16x8xi32>
    %7 = arith.extui %6 : vector<16x8xi1> to vector<16x8xi32>
    %8 = arith.sitofp %7 : vector<16x8xi32> to vector<16x8xf32>
    %9 = arith.truncf %1 : vector<16x4xf32> to vector<16x4xbf16>
    %c0_5 = arith.constant 0 : index
    %c0_6 = arith.constant 0 : index
    %10 = vector.load %arg5[%c0_5, %c0_6] : memref<4x32xbf16, #tpu.memory_space<vmem>>, vector<4x32xbf16>
    %cst = arith.constant dense<0.000000e+00> : vector<16x32xf32>
    %11 = tpu.matmul %9, %10, %cst {dimension_numbers = #tpu.dot_dimension_numbers<[1], [0], [0], [1], [0, 0, 1, 1], [], []>} : vector<16x4xbf16>, vector<4x32xbf16>, vector<16x32xf32> -> vector<16x32xf32>
    %12 = arith.truncf %8 : vector<16x8xf32> to vector<16x8xbf16>
    %c0_7 = arith.constant 0 : index
    %c0_8 = arith.constant 0 : index
    %13 = vector.load %arg6[%c0_7, %c0_8] : memref<8x32xbf16, #tpu.memory_space<vmem>>, vector<8x32xbf16>
    %cst_9 = arith.constant dense<0.000000e+00> : vector<16x32xf32>
    %14 = tpu.matmul %12, %13, %cst_9 {dimension_numbers = #tpu.dot_dimension_numbers<[1], [0], [0], [1], [0, 0, 1, 1], [], []>} : vector<16x8xbf16>, vector<8x32xbf16>, vector<16x32xf32> -> vector<16x32xf32>
    %15 = arith.addf %11, %14 : vector<16x32xf32>
    %c0_10 = arith.constant 0 : index
    %c0_11 = arith.constant 0 : index
    %16 = vector.load %arg7[%c0_10, %c0_11] : memref<1x32xf32, #tpu.memory_space<vmem>>, vector<1x32xf32>
    %17 = vector.broadcast %16 : vector<1x32xf32> to vector<16x32xf32>
    %18 = arith.addf %15, %17 : vector<16x32xf32>
    %cst_12 = arith.constant 0.000000e+00 : f32
    %19 = vector.broadcast %cst_12 : f32 to vector<16x32xf32>
    %20 = arith.maximumf %18, %19 : vector<16x32xf32>
    %c0_13 = arith.constant 0 : index
    %c0_14 = arith.constant 0 : index
    %21 = vector.load %arg8[%c0_13, %c0_14] : memref<1x32xf32, #tpu.memory_space<vmem>>, vector<1x32xf32>
    %22 = vector.shape_cast %21 : vector<1x32xf32> to vector<1x1x32xf32>
    %23 = vector.shape_cast %22 : vector<1x1x32xf32> to vector<1x1x32xf32>
    %24 = vector.broadcast %23 : vector<1x1x32xf32> to vector<2x1x32xf32>
    %25 = vector.shape_cast %20 : vector<16x32xf32> to vector<2x8x32xf32>
    %cst_15 = arith.constant 0.000000e+00 : f32
    %26 = vector.broadcast %cst_15 : f32 to vector<2x7x32xf32>
    %27 = tpu.concatenate %24, %25, %26 in 1 : vector<2x1x32xf32>, vector<2x8x32xf32>, vector<2x7x32xf32> -> vector<2x16x32xf32>
    %28 = vector.shape_cast %27 : vector<2x16x32xf32> to vector<32x32xf32>
    %c0_16 = arith.constant 0 : index
    %c0_17 = arith.constant 0 : index
    %c0_18 = arith.constant 0 : index
    %29 = vector.load %arg3[%c0_16, %c0_17, %c0_18] : memref<1x32x32xf32, #tpu.memory_space<vmem>>, vector<1x32x32xf32>
    %30 = vector.shape_cast %29 : vector<1x32x32xf32> to vector<32x32xf32>
    %c0_19 = arith.constant 0 : index
    %c0_20 = arith.constant 0 : index
    %c0_21 = arith.constant 0 : index
    %31 = vector.load %arg18[%c0_19, %c0_20, %c0_21] : memref<4x7x32xf32, #tpu.memory_space<vmem>>, vector<1x7x32xf32>
    %32 = vector.shape_cast %31 : vector<1x7x32xf32> to vector<7x32xf32>
    %33 = vector.extract_strided_slice %32 {offsets = [0, 0], sizes = [1, 32], strides = [1, 1]} : vector<7x32xf32> to vector<1x32xf32>
    %34 = vector.extract_strided_slice %32 {offsets = [1, 0], sizes = [1, 32], strides = [1, 1]} : vector<7x32xf32> to vector<1x32xf32>
    %35 = vector.extract_strided_slice %32 {offsets = [2, 0], sizes = [1, 32], strides = [1, 1]} : vector<7x32xf32> to vector<1x32xf32>
    %36 = vector.extract_strided_slice %32 {offsets = [3, 0], sizes = [1, 32], strides = [1, 1]} : vector<7x32xf32> to vector<1x32xf32>
    %37 = vector.extract_strided_slice %32 {offsets = [4, 0], sizes = [1, 32], strides = [1, 1]} : vector<7x32xf32> to vector<1x32xf32>
    %38 = vector.extract_strided_slice %32 {offsets = [5, 0], sizes = [1, 16], strides = [1, 1]} : vector<7x32xf32> to vector<1x16xf32>
    %39 = vector.extract_strided_slice %32 {offsets = [6, 0], sizes = [1, 32], strides = [1, 1]} : vector<7x32xf32> to vector<1x32xf32>
    %40 = arith.truncf %28 : vector<32x32xf32> to vector<32x32xbf16>
    %c0_22 = arith.constant 0 : index
    %c0_23 = arith.constant 0 : index
    %c0_24 = arith.constant 0 : index
    %41 = vector.load %arg13[%c0_22, %c0_23, %c0_24] : memref<4x32x96xbf16, #tpu.memory_space<vmem>>, vector<1x32x96xbf16>
    %42 = vector.shape_cast %41 : vector<1x32x96xbf16> to vector<32x96xbf16>
    %cst_25 = arith.constant dense<0.000000e+00> : vector<32x96xf32>
    %43 = tpu.matmul %40, %42, %cst_25 {dimension_numbers = #tpu.dot_dimension_numbers<[1], [0], [0], [1], [0, 0, 1, 1], [], []>} : vector<32x32xbf16>, vector<32x96xbf16>, vector<32x96xf32> -> vector<32x96xf32>
    %c0_26 = arith.constant 0 : index
    %c0_27 = arith.constant 0 : index
    %c0_28 = arith.constant 0 : index
    %44 = vector.load %arg14[%c0_26, %c0_27, %c0_28] : memref<4x1x96xf32, #tpu.memory_space<vmem>>, vector<1x1x96xf32>
    %45 = vector.shape_cast %44 : vector<1x1x96xf32> to vector<1x96xf32>
    %46 = vector.broadcast %45 : vector<1x96xf32> to vector<32x96xf32>
    %47 = arith.addf %43, %46 : vector<32x96xf32>
    %48 = vector.extract_strided_slice %47 {offsets = [0, 0], sizes = [32, 16], strides = [1, 1]} : vector<32x96xf32> to vector<32x16xf32>
    %49 = vector.extract_strided_slice %47 {offsets = [0, 32], sizes = [32, 16], strides = [1, 1]} : vector<32x96xf32> to vector<32x16xf32>
    %50 = vector.extract_strided_slice %47 {offsets = [0, 64], sizes = [32, 16], strides = [1, 1]} : vector<32x96xf32> to vector<32x16xf32>
    %51 = arith.truncf %48 : vector<32x16xf32> to vector<32x16xbf16>
    %52 = arith.truncf %49 : vector<32x16xf32> to vector<32x16xbf16>
    %cst_29 = arith.constant dense<0.000000e+00> : vector<32x32xf32>
    %53 = tpu.matmul %51, %52, %cst_29 {dimension_numbers = #tpu.dot_dimension_numbers<[1], [1], [0], [0], [0, 0, 1, 0], [], []>} : vector<32x16xbf16>, vector<32x16xbf16>, vector<32x32xf32> -> vector<32x32xf32>
    %cst_30 = arith.constant 2.500000e-01 : f32
    %54 = vector.broadcast %cst_30 : f32 to vector<32x32xf32>
    %55 = arith.mulf %53, %54 : vector<32x32xf32>
    %56 = arith.addf %55, %30 : vector<32x32xf32>
    %cst_31 = arith.constant dense<0xFF800000> : vector<32xf32>
    %57 = vector.multi_reduction <maximumf>, %56, %cst_31 [1] : vector<32x32xf32> to vector<32xf32>
    %58 = vector.shape_cast %57 : vector<32xf32> to vector<32x1xf32>
    %59 = vector.broadcast %58 : vector<32x1xf32> to vector<32x32xf32>
    %60 = arith.subf %56, %59 : vector<32x32xf32>
    %61 = math.exp %60 : vector<32x32xf32>
    %cst_32 = arith.constant dense<0.000000e+00> : vector<32xf32>
    %62 = vector.multi_reduction <add>, %61, %cst_32 [1] : vector<32x32xf32> to vector<32xf32>
    %63 = vector.shape_cast %62 : vector<32xf32> to vector<32x1xf32>
    %64 = tpu.reciprocal %63 {approx = true} : vector<32x1xf32> -> vector<32x1xf32>
    %65 = vector.broadcast %64 : vector<32x1xf32> to vector<32x32xf32>
    %66 = arith.mulf %61, %65 : vector<32x32xf32>
    %67 = arith.truncf %66 : vector<32x32xf32> to vector<32x32xbf16>
    %68 = arith.truncf %50 : vector<32x16xf32> to vector<32x16xbf16>
    %cst_33 = arith.constant dense<0.000000e+00> : vector<32x16xf32>
    %69 = tpu.matmul %67, %68, %cst_33 {dimension_numbers = #tpu.dot_dimension_numbers<[1], [0], [0], [1], [0, 0, 1, 1], [], []>} : vector<32x32xbf16>, vector<32x16xbf16>, vector<32x16xf32> -> vector<32x16xf32>
    %70 = vector.extract_strided_slice %47 {offsets = [0, 16], sizes = [32, 16], strides = [1, 1]} : vector<32x96xf32> to vector<32x16xf32>
    %71 = vector.extract_strided_slice %47 {offsets = [0, 48], sizes = [32, 16], strides = [1, 1]} : vector<32x96xf32> to vector<32x16xf32>
    %72 = vector.extract_strided_slice %47 {offsets = [0, 80], sizes = [32, 16], strides = [1, 1]} : vector<32x96xf32> to vector<32x16xf32>
    %73 = arith.truncf %70 : vector<32x16xf32> to vector<32x16xbf16>
    %74 = arith.truncf %71 : vector<32x16xf32> to vector<32x16xbf16>
    %cst_34 = arith.constant dense<0.000000e+00> : vector<32x32xf32>
    %75 = tpu.matmul %73, %74, %cst_34 {dimension_numbers = #tpu.dot_dimension_numbers<[1], [1], [0], [0], [0, 0, 1, 0], [], []>} : vector<32x16xbf16>, vector<32x16xbf16>, vector<32x32xf32> -> vector<32x32xf32>
    %cst_35 = arith.constant 2.500000e-01 : f32
    %76 = vector.broadcast %cst_35 : f32 to vector<32x32xf32>
    %77 = arith.mulf %75, %76 : vector<32x32xf32>
    %78 = arith.addf %77, %30 : vector<32x32xf32>
    %cst_36 = arith.constant dense<0xFF800000> : vector<32xf32>
    %79 = vector.multi_reduction <maximumf>, %78, %cst_36 [1] : vector<32x32xf32> to vector<32xf32>
    %80 = vector.shape_cast %79 : vector<32xf32> to vector<32x1xf32>
    %81 = vector.broadcast %80 : vector<32x1xf32> to vector<32x32xf32>
    %82 = arith.subf %78, %81 : vector<32x32xf32>
    %83 = math.exp %82 : vector<32x32xf32>
    %cst_37 = arith.constant dense<0.000000e+00> : vector<32xf32>
    %84 = vector.multi_reduction <add>, %83, %cst_37 [1] : vector<32x32xf32> to vector<32xf32>
    %85 = vector.shape_cast %84 : vector<32xf32> to vector<32x1xf32>
    %86 = tpu.reciprocal %85 {approx = true} : vector<32x1xf32> -> vector<32x1xf32>
    %87 = vector.broadcast %86 : vector<32x1xf32> to vector<32x32xf32>
    %88 = arith.mulf %83, %87 : vector<32x32xf32>
    %89 = arith.truncf %88 : vector<32x32xf32> to vector<32x32xbf16>
    %90 = arith.truncf %72 : vector<32x16xf32> to vector<32x16xbf16>
    %cst_38 = arith.constant dense<0.000000e+00> : vector<32x16xf32>
    %91 = tpu.matmul %89, %90, %cst_38 {dimension_numbers = #tpu.dot_dimension_numbers<[1], [0], [0], [1], [0, 0, 1, 1], [], []>} : vector<32x32xbf16>, vector<32x16xbf16>, vector<32x16xf32> -> vector<32x16xf32>
    %92 = tpu.concatenate %69, %91 in 1 : vector<32x16xf32>, vector<32x16xf32> -> vector<32x32xf32>
    %93 = arith.truncf %92 : vector<32x32xf32> to vector<32x32xbf16>
    %c0_39 = arith.constant 0 : index
    %c0_40 = arith.constant 0 : index
    %c0_41 = arith.constant 0 : index
    %94 = vector.load %arg15[%c0_39, %c0_40, %c0_41] : memref<4x32x32xbf16, #tpu.memory_space<vmem>>, vector<1x32x32xbf16>
    %95 = vector.shape_cast %94 : vector<1x32x32xbf16> to vector<32x32xbf16>
    %cst_42 = arith.constant dense<0.000000e+00> : vector<32x32xf32>
    %96 = tpu.matmul %93, %95, %cst_42 {dimension_numbers = #tpu.dot_dimension_numbers<[1], [0], [0], [1], [0, 0, 1, 1], [], []>} : vector<32x32xbf16>, vector<32x32xbf16>, vector<32x32xf32> -> vector<32x32xf32>
    %97 = vector.broadcast %33 : vector<1x32xf32> to vector<32x32xf32>
    %98 = arith.addf %96, %97 : vector<32x32xf32>
    %99 = arith.addf %28, %98 : vector<32x32xf32>
    %cst_43 = arith.constant dense<0.000000e+00> : vector<32xf32>
    %100 = vector.multi_reduction <add>, %99, %cst_43 [1] : vector<32x32xf32> to vector<32xf32>
    %101 = vector.shape_cast %100 : vector<32xf32> to vector<32x1xf32>
    %cst_44 = arith.constant 3.200000e+01 : f32
    %102 = vector.broadcast %cst_44 : f32 to vector<32x1xf32>
    %103 = arith.divf %101, %102 : vector<32x1xf32>
    %104 = arith.mulf %99, %99 : vector<32x32xf32>
    %cst_45 = arith.constant dense<0.000000e+00> : vector<32xf32>
    %105 = vector.multi_reduction <add>, %104, %cst_45 [1] : vector<32x32xf32> to vector<32xf32>
    %106 = vector.shape_cast %105 : vector<32xf32> to vector<32x1xf32>
    %cst_46 = arith.constant 3.200000e+01 : f32
    %107 = vector.broadcast %cst_46 : f32 to vector<32x1xf32>
    %108 = arith.divf %106, %107 : vector<32x1xf32>
    %109 = arith.mulf %103, %103 : vector<32x1xf32>
    %110 = arith.subf %108, %109 : vector<32x1xf32>
    %cst_47 = arith.constant 0.000000e+00 : f32
    %111 = vector.broadcast %cst_47 : f32 to vector<32x1xf32>
    %112 = arith.maximumf %110, %111 : vector<32x1xf32>
    %113 = vector.broadcast %103 : vector<32x1xf32> to vector<32x32xf32>
    %114 = arith.subf %99, %113 : vector<32x32xf32>
    %cst_48 = arith.constant 9.99999974E-6 : f32
    %115 = vector.broadcast %cst_48 : f32 to vector<32x1xf32>
    %116 = arith.addf %112, %115 : vector<32x1xf32>
    %117 = math.rsqrt %116 : vector<32x1xf32>
    %118 = vector.broadcast %117 : vector<32x1xf32> to vector<32x32xf32>
    %119 = arith.mulf %114, %118 : vector<32x32xf32>
    %120 = vector.broadcast %34 : vector<1x32xf32> to vector<32x32xf32>
    %121 = arith.mulf %119, %120 : vector<32x32xf32>
    %122 = vector.broadcast %35 : vector<1x32xf32> to vector<32x32xf32>
    %123 = arith.addf %121, %122 : vector<32x32xf32>
    %124 = arith.truncf %123 : vector<32x32xf32> to vector<32x32xbf16>
    %c0_49 = arith.constant 0 : index
    %c0_50 = arith.constant 0 : index
    %c0_51 = arith.constant 0 : index
    %125 = vector.load %arg16[%c0_49, %c0_50, %c0_51] : memref<4x32x16xbf16, #tpu.memory_space<vmem>>, vector<1x32x16xbf16>
    %126 = vector.shape_cast %125 : vector<1x32x16xbf16> to vector<32x16xbf16>
    %cst_52 = arith.constant dense<0.000000e+00> : vector<32x16xf32>
    %127 = tpu.matmul %124, %126, %cst_52 {dimension_numbers = #tpu.dot_dimension_numbers<[1], [0], [0], [1], [0, 0, 1, 1], [], []>} : vector<32x32xbf16>, vector<32x16xbf16>, vector<32x16xf32> -> vector<32x16xf32>
    %128 = vector.broadcast %38 : vector<1x16xf32> to vector<32x16xf32>
    %129 = arith.addf %127, %128 : vector<32x16xf32>
    %cst_53 = arith.constant 0.000000e+00 : f32
    %130 = vector.broadcast %cst_53 : f32 to vector<32x16xf32>
    %131 = arith.maximumf %129, %130 : vector<32x16xf32>
    %132 = arith.truncf %131 : vector<32x16xf32> to vector<32x16xbf16>
    %c0_54 = arith.constant 0 : index
    %c0_55 = arith.constant 0 : index
    %c0_56 = arith.constant 0 : index
    %133 = vector.load %arg17[%c0_54, %c0_55, %c0_56] : memref<4x16x32xbf16, #tpu.memory_space<vmem>>, vector<1x16x32xbf16>
    %134 = vector.shape_cast %133 : vector<1x16x32xbf16> to vector<16x32xbf16>
    %cst_57 = arith.constant dense<0.000000e+00> : vector<32x32xf32>
    %135 = tpu.matmul %132, %134, %cst_57 {dimension_numbers = #tpu.dot_dimension_numbers<[1], [0], [0], [1], [0, 0, 1, 1], [], []>} : vector<32x16xbf16>, vector<16x32xbf16>, vector<32x32xf32> -> vector<32x32xf32>
    %136 = vector.broadcast %39 : vector<1x32xf32> to vector<32x32xf32>
    %137 = arith.addf %135, %136 : vector<32x32xf32>
    %138 = arith.addf %123, %137 : vector<32x32xf32>
    %cst_58 = arith.constant dense<0.000000e+00> : vector<32xf32>
    %139 = vector.multi_reduction <add>, %138, %cst_58 [1] : vector<32x32xf32> to vector<32xf32>
    %140 = vector.shape_cast %139 : vector<32xf32> to vector<32x1xf32>
    %cst_59 = arith.constant 3.200000e+01 : f32
    %141 = vector.broadcast %cst_59 : f32 to vector<32x1xf32>
    %142 = arith.divf %140, %141 : vector<32x1xf32>
    %143 = arith.mulf %138, %138 : vector<32x32xf32>
    %cst_60 = arith.constant dense<0.000000e+00> : vector<32xf32>
    %144 = vector.multi_reduction <add>, %143, %cst_60 [1] : vector<32x32xf32> to vector<32xf32>
    %145 = vector.shape_cast %144 : vector<32xf32> to vector<32x1xf32>
    %cst_61 = arith.constant 3.200000e+01 : f32
    %146 = vector.broadcast %cst_61 : f32 to vector<32x1xf32>
    %147 = arith.divf %145, %146 : vector<32x1xf32>
    %148 = arith.mulf %142, %142 : vector<32x1xf32>
    %149 = arith.subf %147, %148 : vector<32x1xf32>
    %cst_62 = arith.constant 0.000000e+00 : f32
    %150 = vector.broadcast %cst_62 : f32 to vector<32x1xf32>
    %151 = arith.maximumf %149, %150 : vector<32x1xf32>
    %152 = vector.broadcast %142 : vector<32x1xf32> to vector<32x32xf32>
    %153 = arith.subf %138, %152 : vector<32x32xf32>
    %cst_63 = arith.constant 9.99999974E-6 : f32
    %154 = vector.broadcast %cst_63 : f32 to vector<32x1xf32>
    %155 = arith.addf %151, %154 : vector<32x1xf32>
    %156 = math.rsqrt %155 : vector<32x1xf32>
    %157 = vector.broadcast %156 : vector<32x1xf32> to vector<32x32xf32>
    %158 = arith.mulf %153, %157 : vector<32x32xf32>
    %159 = vector.broadcast %36 : vector<1x32xf32> to vector<32x32xf32>
    %160 = arith.mulf %158, %159 : vector<32x32xf32>
    %161 = vector.broadcast %37 : vector<1x32xf32> to vector<32x32xf32>
    %162 = arith.addf %160, %161 : vector<32x32xf32>
    %c1 = arith.constant 1 : index
    %c0_64 = arith.constant 0 : index
    %c0_65 = arith.constant 0 : index
    %163 = vector.load %arg18[%c1, %c0_64, %c0_65] : memref<4x7x32xf32, #tpu.memory_space<vmem>>, vector<1x7x32xf32>
    %164 = vector.shape_cast %163 : vector<1x7x32xf32> to vector<7x32xf32>
    %165 = vector.extract_strided_slice %164 {offsets = [0, 0], sizes = [1, 32], strides = [1, 1]} : vector<7x32xf32> to vector<1x32xf32>
    %166 = vector.extract_strided_slice %164 {offsets = [1, 0], sizes = [1, 32], strides = [1, 1]} : vector<7x32xf32> to vector<1x32xf32>
    %167 = vector.extract_strided_slice %164 {offsets = [2, 0], sizes = [1, 32], strides = [1, 1]} : vector<7x32xf32> to vector<1x32xf32>
    %168 = vector.extract_strided_slice %164 {offsets = [3, 0], sizes = [1, 32], strides = [1, 1]} : vector<7x32xf32> to vector<1x32xf32>
    %169 = vector.extract_strided_slice %164 {offsets = [4, 0], sizes = [1, 32], strides = [1, 1]} : vector<7x32xf32> to vector<1x32xf32>
    %170 = vector.extract_strided_slice %164 {offsets = [5, 0], sizes = [1, 16], strides = [1, 1]} : vector<7x32xf32> to vector<1x16xf32>
    %171 = vector.extract_strided_slice %164 {offsets = [6, 0], sizes = [1, 32], strides = [1, 1]} : vector<7x32xf32> to vector<1x32xf32>
    %172 = arith.truncf %162 : vector<32x32xf32> to vector<32x32xbf16>
    %c1_66 = arith.constant 1 : index
    %c0_67 = arith.constant 0 : index
    %c0_68 = arith.constant 0 : index
    %173 = vector.load %arg13[%c1_66, %c0_67, %c0_68] : memref<4x32x96xbf16, #tpu.memory_space<vmem>>, vector<1x32x96xbf16>
    %174 = vector.shape_cast %173 : vector<1x32x96xbf16> to vector<32x96xbf16>
    %cst_69 = arith.constant dense<0.000000e+00> : vector<32x96xf32>
    %175 = tpu.matmul %172, %174, %cst_69 {dimension_numbers = #tpu.dot_dimension_numbers<[1], [0], [0], [1], [0, 0, 1, 1], [], []>} : vector<32x32xbf16>, vector<32x96xbf16>, vector<32x96xf32> -> vector<32x96xf32>
    %c1_70 = arith.constant 1 : index
    %c0_71 = arith.constant 0 : index
    %c0_72 = arith.constant 0 : index
    %176 = vector.load %arg14[%c1_70, %c0_71, %c0_72] : memref<4x1x96xf32, #tpu.memory_space<vmem>>, vector<1x1x96xf32>
    %177 = vector.shape_cast %176 : vector<1x1x96xf32> to vector<1x96xf32>
    %178 = vector.broadcast %177 : vector<1x96xf32> to vector<32x96xf32>
    %179 = arith.addf %175, %178 : vector<32x96xf32>
    %180 = vector.extract_strided_slice %179 {offsets = [0, 0], sizes = [32, 16], strides = [1, 1]} : vector<32x96xf32> to vector<32x16xf32>
    %181 = vector.extract_strided_slice %179 {offsets = [0, 32], sizes = [32, 16], strides = [1, 1]} : vector<32x96xf32> to vector<32x16xf32>
    %182 = vector.extract_strided_slice %179 {offsets = [0, 64], sizes = [32, 16], strides = [1, 1]} : vector<32x96xf32> to vector<32x16xf32>
    %183 = arith.truncf %180 : vector<32x16xf32> to vector<32x16xbf16>
    %184 = arith.truncf %181 : vector<32x16xf32> to vector<32x16xbf16>
    %cst_73 = arith.constant dense<0.000000e+00> : vector<32x32xf32>
    %185 = tpu.matmul %183, %184, %cst_73 {dimension_numbers = #tpu.dot_dimension_numbers<[1], [1], [0], [0], [0, 0, 1, 0], [], []>} : vector<32x16xbf16>, vector<32x16xbf16>, vector<32x32xf32> -> vector<32x32xf32>
    %cst_74 = arith.constant 2.500000e-01 : f32
    %186 = vector.broadcast %cst_74 : f32 to vector<32x32xf32>
    %187 = arith.mulf %185, %186 : vector<32x32xf32>
    %188 = arith.addf %187, %30 : vector<32x32xf32>
    %cst_75 = arith.constant dense<0xFF800000> : vector<32xf32>
    %189 = vector.multi_reduction <maximumf>, %188, %cst_75 [1] : vector<32x32xf32> to vector<32xf32>
    %190 = vector.shape_cast %189 : vector<32xf32> to vector<32x1xf32>
    %191 = vector.broadcast %190 : vector<32x1xf32> to vector<32x32xf32>
    %192 = arith.subf %188, %191 : vector<32x32xf32>
    %193 = math.exp %192 : vector<32x32xf32>
    %cst_76 = arith.constant dense<0.000000e+00> : vector<32xf32>
    %194 = vector.multi_reduction <add>, %193, %cst_76 [1] : vector<32x32xf32> to vector<32xf32>
    %195 = vector.shape_cast %194 : vector<32xf32> to vector<32x1xf32>
    %196 = tpu.reciprocal %195 {approx = true} : vector<32x1xf32> -> vector<32x1xf32>
    %197 = vector.broadcast %196 : vector<32x1xf32> to vector<32x32xf32>
    %198 = arith.mulf %193, %197 : vector<32x32xf32>
    %199 = arith.truncf %198 : vector<32x32xf32> to vector<32x32xbf16>
    %200 = arith.truncf %182 : vector<32x16xf32> to vector<32x16xbf16>
    %cst_77 = arith.constant dense<0.000000e+00> : vector<32x16xf32>
    %201 = tpu.matmul %199, %200, %cst_77 {dimension_numbers = #tpu.dot_dimension_numbers<[1], [0], [0], [1], [0, 0, 1, 1], [], []>} : vector<32x32xbf16>, vector<32x16xbf16>, vector<32x16xf32> -> vector<32x16xf32>
    %202 = vector.extract_strided_slice %179 {offsets = [0, 16], sizes = [32, 16], strides = [1, 1]} : vector<32x96xf32> to vector<32x16xf32>
    %203 = vector.extract_strided_slice %179 {offsets = [0, 48], sizes = [32, 16], strides = [1, 1]} : vector<32x96xf32> to vector<32x16xf32>
    %204 = vector.extract_strided_slice %179 {offsets = [0, 80], sizes = [32, 16], strides = [1, 1]} : vector<32x96xf32> to vector<32x16xf32>
    %205 = arith.truncf %202 : vector<32x16xf32> to vector<32x16xbf16>
    %206 = arith.truncf %203 : vector<32x16xf32> to vector<32x16xbf16>
    %cst_78 = arith.constant dense<0.000000e+00> : vector<32x32xf32>
    %207 = tpu.matmul %205, %206, %cst_78 {dimension_numbers = #tpu.dot_dimension_numbers<[1], [1], [0], [0], [0, 0, 1, 0], [], []>} : vector<32x16xbf16>, vector<32x16xbf16>, vector<32x32xf32> -> vector<32x32xf32>
    %cst_79 = arith.constant 2.500000e-01 : f32
    %208 = vector.broadcast %cst_79 : f32 to vector<32x32xf32>
    %209 = arith.mulf %207, %208 : vector<32x32xf32>
    %210 = arith.addf %209, %30 : vector<32x32xf32>
    %cst_80 = arith.constant dense<0xFF800000> : vector<32xf32>
    %211 = vector.multi_reduction <maximumf>, %210, %cst_80 [1] : vector<32x32xf32> to vector<32xf32>
    %212 = vector.shape_cast %211 : vector<32xf32> to vector<32x1xf32>
    %213 = vector.broadcast %212 : vector<32x1xf32> to vector<32x32xf32>
    %214 = arith.subf %210, %213 : vector<32x32xf32>
    %215 = math.exp %214 : vector<32x32xf32>
    %cst_81 = arith.constant dense<0.000000e+00> : vector<32xf32>
    %216 = vector.multi_reduction <add>, %215, %cst_81 [1] : vector<32x32xf32> to vector<32xf32>
    %217 = vector.shape_cast %216 : vector<32xf32> to vector<32x1xf32>
    %218 = tpu.reciprocal %217 {approx = true} : vector<32x1xf32> -> vector<32x1xf32>
    %219 = vector.broadcast %218 : vector<32x1xf32> to vector<32x32xf32>
    %220 = arith.mulf %215, %219 : vector<32x32xf32>
    %221 = arith.truncf %220 : vector<32x32xf32> to vector<32x32xbf16>
    %222 = arith.truncf %204 : vector<32x16xf32> to vector<32x16xbf16>
    %cst_82 = arith.constant dense<0.000000e+00> : vector<32x16xf32>
    %223 = tpu.matmul %221, %222, %cst_82 {dimension_numbers = #tpu.dot_dimension_numbers<[1], [0], [0], [1], [0, 0, 1, 1], [], []>} : vector<32x32xbf16>, vector<32x16xbf16>, vector<32x16xf32> -> vector<32x16xf32>
    %224 = tpu.concatenate %201, %223 in 1 : vector<32x16xf32>, vector<32x16xf32> -> vector<32x32xf32>
    %225 = arith.truncf %224 : vector<32x32xf32> to vector<32x32xbf16>
    %c1_83 = arith.constant 1 : index
    %c0_84 = arith.constant 0 : index
    %c0_85 = arith.constant 0 : index
    %226 = vector.load %arg15[%c1_83, %c0_84, %c0_85] : memref<4x32x32xbf16, #tpu.memory_space<vmem>>, vector<1x32x32xbf16>
    %227 = vector.shape_cast %226 : vector<1x32x32xbf16> to vector<32x32xbf16>
    %cst_86 = arith.constant dense<0.000000e+00> : vector<32x32xf32>
    %228 = tpu.matmul %225, %227, %cst_86 {dimension_numbers = #tpu.dot_dimension_numbers<[1], [0], [0], [1], [0, 0, 1, 1], [], []>} : vector<32x32xbf16>, vector<32x32xbf16>, vector<32x32xf32> -> vector<32x32xf32>
    %229 = vector.broadcast %165 : vector<1x32xf32> to vector<32x32xf32>
    %230 = arith.addf %228, %229 : vector<32x32xf32>
    %231 = arith.addf %162, %230 : vector<32x32xf32>
    %cst_87 = arith.constant dense<0.000000e+00> : vector<32xf32>
    %232 = vector.multi_reduction <add>, %231, %cst_87 [1] : vector<32x32xf32> to vector<32xf32>
    %233 = vector.shape_cast %232 : vector<32xf32> to vector<32x1xf32>
    %cst_88 = arith.constant 3.200000e+01 : f32
    %234 = vector.broadcast %cst_88 : f32 to vector<32x1xf32>
    %235 = arith.divf %233, %234 : vector<32x1xf32>
    %236 = arith.mulf %231, %231 : vector<32x32xf32>
    %cst_89 = arith.constant dense<0.000000e+00> : vector<32xf32>
    %237 = vector.multi_reduction <add>, %236, %cst_89 [1] : vector<32x32xf32> to vector<32xf32>
    %238 = vector.shape_cast %237 : vector<32xf32> to vector<32x1xf32>
    %cst_90 = arith.constant 3.200000e+01 : f32
    %239 = vector.broadcast %cst_90 : f32 to vector<32x1xf32>
    %240 = arith.divf %238, %239 : vector<32x1xf32>
    %241 = arith.mulf %235, %235 : vector<32x1xf32>
    %242 = arith.subf %240, %241 : vector<32x1xf32>
    %cst_91 = arith.constant 0.000000e+00 : f32
    %243 = vector.broadcast %cst_91 : f32 to vector<32x1xf32>
    %244 = arith.maximumf %242, %243 : vector<32x1xf32>
    %245 = vector.broadcast %235 : vector<32x1xf32> to vector<32x32xf32>
    %246 = arith.subf %231, %245 : vector<32x32xf32>
    %cst_92 = arith.constant 9.99999974E-6 : f32
    %247 = vector.broadcast %cst_92 : f32 to vector<32x1xf32>
    %248 = arith.addf %244, %247 : vector<32x1xf32>
    %249 = math.rsqrt %248 : vector<32x1xf32>
    %250 = vector.broadcast %249 : vector<32x1xf32> to vector<32x32xf32>
    %251 = arith.mulf %246, %250 : vector<32x32xf32>
    %252 = vector.broadcast %166 : vector<1x32xf32> to vector<32x32xf32>
    %253 = arith.mulf %251, %252 : vector<32x32xf32>
    %254 = vector.broadcast %167 : vector<1x32xf32> to vector<32x32xf32>
    %255 = arith.addf %253, %254 : vector<32x32xf32>
    %256 = arith.truncf %255 : vector<32x32xf32> to vector<32x32xbf16>
    %c1_93 = arith.constant 1 : index
    %c0_94 = arith.constant 0 : index
    %c0_95 = arith.constant 0 : index
    %257 = vector.load %arg16[%c1_93, %c0_94, %c0_95] : memref<4x32x16xbf16, #tpu.memory_space<vmem>>, vector<1x32x16xbf16>
    %258 = vector.shape_cast %257 : vector<1x32x16xbf16> to vector<32x16xbf16>
    %cst_96 = arith.constant dense<0.000000e+00> : vector<32x16xf32>
    %259 = tpu.matmul %256, %258, %cst_96 {dimension_numbers = #tpu.dot_dimension_numbers<[1], [0], [0], [1], [0, 0, 1, 1], [], []>} : vector<32x32xbf16>, vector<32x16xbf16>, vector<32x16xf32> -> vector<32x16xf32>
    %260 = vector.broadcast %170 : vector<1x16xf32> to vector<32x16xf32>
    %261 = arith.addf %259, %260 : vector<32x16xf32>
    %cst_97 = arith.constant 0.000000e+00 : f32
    %262 = vector.broadcast %cst_97 : f32 to vector<32x16xf32>
    %263 = arith.maximumf %261, %262 : vector<32x16xf32>
    %264 = arith.truncf %263 : vector<32x16xf32> to vector<32x16xbf16>
    %c1_98 = arith.constant 1 : index
    %c0_99 = arith.constant 0 : index
    %c0_100 = arith.constant 0 : index
    %265 = vector.load %arg17[%c1_98, %c0_99, %c0_100] : memref<4x16x32xbf16, #tpu.memory_space<vmem>>, vector<1x16x32xbf16>
    %266 = vector.shape_cast %265 : vector<1x16x32xbf16> to vector<16x32xbf16>
    %cst_101 = arith.constant dense<0.000000e+00> : vector<32x32xf32>
    %267 = tpu.matmul %264, %266, %cst_101 {dimension_numbers = #tpu.dot_dimension_numbers<[1], [0], [0], [1], [0, 0, 1, 1], [], []>} : vector<32x16xbf16>, vector<16x32xbf16>, vector<32x32xf32> -> vector<32x32xf32>
    %268 = vector.broadcast %171 : vector<1x32xf32> to vector<32x32xf32>
    %269 = arith.addf %267, %268 : vector<32x32xf32>
    %270 = arith.addf %255, %269 : vector<32x32xf32>
    %cst_102 = arith.constant dense<0.000000e+00> : vector<32xf32>
    %271 = vector.multi_reduction <add>, %270, %cst_102 [1] : vector<32x32xf32> to vector<32xf32>
    %272 = vector.shape_cast %271 : vector<32xf32> to vector<32x1xf32>
    %cst_103 = arith.constant 3.200000e+01 : f32
    %273 = vector.broadcast %cst_103 : f32 to vector<32x1xf32>
    %274 = arith.divf %272, %273 : vector<32x1xf32>
    %275 = arith.mulf %270, %270 : vector<32x32xf32>
    %cst_104 = arith.constant dense<0.000000e+00> : vector<32xf32>
    %276 = vector.multi_reduction <add>, %275, %cst_104 [1] : vector<32x32xf32> to vector<32xf32>
    %277 = vector.shape_cast %276 : vector<32xf32> to vector<32x1xf32>
    %cst_105 = arith.constant 3.200000e+01 : f32
    %278 = vector.broadcast %cst_105 : f32 to vector<32x1xf32>
    %279 = arith.divf %277, %278 : vector<32x1xf32>
    %280 = arith.mulf %274, %274 : vector<32x1xf32>
    %281 = arith.subf %279, %280 : vector<32x1xf32>
    %cst_106 = arith.constant 0.000000e+00 : f32
    %282 = vector.broadcast %cst_106 : f32 to vector<32x1xf32>
    %283 = arith.maximumf %281, %282 : vector<32x1xf32>
    %284 = vector.broadcast %274 : vector<32x1xf32> to vector<32x32xf32>
    %285 = arith.subf %270, %284 : vector<32x32xf32>
    %cst_107 = arith.constant 9.99999974E-6 : f32
    %286 = vector.broadcast %cst_107 : f32 to vector<32x1xf32>
    %287 = arith.addf %283, %286 : vector<32x1xf32>
    %288 = math.rsqrt %287 : vector<32x1xf32>
    %289 = vector.broadcast %288 : vector<32x1xf32> to vector<32x32xf32>
    %290 = arith.mulf %285, %289 : vector<32x32xf32>
    %291 = vector.broadcast %168 : vector<1x32xf32> to vector<32x32xf32>
    %292 = arith.mulf %290, %291 : vector<32x32xf32>
    %293 = vector.broadcast %169 : vector<1x32xf32> to vector<32x32xf32>
    %294 = arith.addf %292, %293 : vector<32x32xf32>
    %295 = vector.shape_cast %294 : vector<32x32xf32> to vector<2x16x32xf32>
    %296 = vector.extract_strided_slice %295 {offsets = [0, 0, 0], sizes = [2, 1, 32], strides = [1, 1, 1]} : vector<2x16x32xf32> to vector<2x1x32xf32>
    %297 = vector.shape_cast %296 : vector<2x1x32xf32> to vector<2x32xf32>
    %298 = arith.truncf %297 : vector<2x32xf32> to vector<2x32xbf16>
    %c0_108 = arith.constant 0 : index
    %c0_109 = arith.constant 0 : index
    %299 = vector.load %arg11[%c0_108, %c0_109] : memref<32x128xbf16, #tpu.memory_space<vmem>>, vector<32x128xbf16>
    %cst_110 = arith.constant dense<0.000000e+00> : vector<2x128xf32>
    %300 = tpu.matmul %298, %299, %cst_110 {dimension_numbers = #tpu.dot_dimension_numbers<[1], [0], [0], [1], [0, 0, 1, 1], [], []>} : vector<2x32xbf16>, vector<32x128xbf16>, vector<2x128xf32> -> vector<2x128xf32>
    %c0_111 = arith.constant 0 : index
    %c0_112 = arith.constant 0 : index
    %301 = vector.load %arg12[%c0_111, %c0_112] : memref<1x128xf32, #tpu.memory_space<vmem>>, vector<1x128xf32>
    %302 = vector.broadcast %301 : vector<1x128xf32> to vector<2x128xf32>
    %303 = arith.addf %300, %302 : vector<2x128xf32>
    %c0_113 = arith.constant 0 : index
    %c0_114 = arith.constant 0 : index
    %304 = vector.load %arg9[%c0_113, %c0_114] : memref<32x32xbf16, #tpu.memory_space<vmem>>, vector<32x32xbf16>
    %cst_115 = arith.constant dense<0.000000e+00> : vector<2x32xf32>
    %305 = tpu.matmul %298, %304, %cst_115 {dimension_numbers = #tpu.dot_dimension_numbers<[1], [0], [0], [1], [0, 0, 1, 1], [], []>} : vector<2x32xbf16>, vector<32x32xbf16>, vector<2x32xf32> -> vector<2x32xf32>
    %306 = vector.shape_cast %305 : vector<2x32xf32> to vector<2x1x32xf32>
    %c0_116 = arith.constant 0 : index
    %c0_117 = arith.constant 0 : index
    %307 = vector.load %arg10[%c0_116, %c0_117] : memref<8x32xf32, #tpu.memory_space<vmem>>, vector<8x32xf32>
    %308 = vector.shape_cast %307 : vector<8x32xf32> to vector<1x8x32xf32>
    %309 = vector.broadcast %306 : vector<2x1x32xf32> to vector<2x8x32xf32>
    %310 = vector.broadcast %308 : vector<1x8x32xf32> to vector<2x8x32xf32>
    %311 = arith.addf %309, %310 : vector<2x8x32xf32>
    %cst_118 = arith.constant 0.000000e+00 : f32
    %312 = vector.broadcast %cst_118 : f32 to vector<2x8x32xf32>
    %313 = arith.maximumf %311, %312 : vector<2x8x32xf32>
    %314 = vector.shape_cast %313 : vector<2x8x32xf32> to vector<16x32xf32>
    %c0_119 = arith.constant 0 : index
    %c0_120 = arith.constant 0 : index
    %c0_121 = arith.constant 0 : index
    %315 = vector.load %arg4[%c0_119, %c0_120, %c0_121] : memref<1x16x16xf32, #tpu.memory_space<vmem>>, vector<1x16x16xf32>
    %316 = vector.shape_cast %315 : vector<1x16x16xf32> to vector<16x16xf32>
    %c2 = arith.constant 2 : index
    %c0_122 = arith.constant 0 : index
    %c0_123 = arith.constant 0 : index
    %317 = vector.load %arg18[%c2, %c0_122, %c0_123] : memref<4x7x32xf32, #tpu.memory_space<vmem>>, vector<1x7x32xf32>
    %318 = vector.shape_cast %317 : vector<1x7x32xf32> to vector<7x32xf32>
    %319 = vector.extract_strided_slice %318 {offsets = [0, 0], sizes = [1, 32], strides = [1, 1]} : vector<7x32xf32> to vector<1x32xf32>
    %320 = vector.extract_strided_slice %318 {offsets = [1, 0], sizes = [1, 32], strides = [1, 1]} : vector<7x32xf32> to vector<1x32xf32>
    %321 = vector.extract_strided_slice %318 {offsets = [2, 0], sizes = [1, 32], strides = [1, 1]} : vector<7x32xf32> to vector<1x32xf32>
    %322 = vector.extract_strided_slice %318 {offsets = [3, 0], sizes = [1, 32], strides = [1, 1]} : vector<7x32xf32> to vector<1x32xf32>
    %323 = vector.extract_strided_slice %318 {offsets = [4, 0], sizes = [1, 32], strides = [1, 1]} : vector<7x32xf32> to vector<1x32xf32>
    %324 = vector.extract_strided_slice %318 {offsets = [5, 0], sizes = [1, 16], strides = [1, 1]} : vector<7x32xf32> to vector<1x16xf32>
    %325 = vector.extract_strided_slice %318 {offsets = [6, 0], sizes = [1, 32], strides = [1, 1]} : vector<7x32xf32> to vector<1x32xf32>
    %326 = arith.truncf %314 : vector<16x32xf32> to vector<16x32xbf16>
    %c2_124 = arith.constant 2 : index
    %c0_125 = arith.constant 0 : index
    %c0_126 = arith.constant 0 : index
    %327 = vector.load %arg13[%c2_124, %c0_125, %c0_126] : memref<4x32x96xbf16, #tpu.memory_space<vmem>>, vector<1x32x96xbf16>
    %328 = vector.shape_cast %327 : vector<1x32x96xbf16> to vector<32x96xbf16>
    %cst_127 = arith.constant dense<0.000000e+00> : vector<16x96xf32>
    %329 = tpu.matmul %326, %328, %cst_127 {dimension_numbers = #tpu.dot_dimension_numbers<[1], [0], [0], [1], [0, 0, 1, 1], [], []>} : vector<16x32xbf16>, vector<32x96xbf16>, vector<16x96xf32> -> vector<16x96xf32>
    %c2_128 = arith.constant 2 : index
    %c0_129 = arith.constant 0 : index
    %c0_130 = arith.constant 0 : index
    %330 = vector.load %arg14[%c2_128, %c0_129, %c0_130] : memref<4x1x96xf32, #tpu.memory_space<vmem>>, vector<1x1x96xf32>
    %331 = vector.shape_cast %330 : vector<1x1x96xf32> to vector<1x96xf32>
    %332 = vector.broadcast %331 : vector<1x96xf32> to vector<16x96xf32>
    %333 = arith.addf %329, %332 : vector<16x96xf32>
    %334 = vector.extract_strided_slice %333 {offsets = [0, 0], sizes = [16, 16], strides = [1, 1]} : vector<16x96xf32> to vector<16x16xf32>
    %335 = vector.extract_strided_slice %333 {offsets = [0, 32], sizes = [16, 16], strides = [1, 1]} : vector<16x96xf32> to vector<16x16xf32>
    %336 = vector.extract_strided_slice %333 {offsets = [0, 64], sizes = [16, 16], strides = [1, 1]} : vector<16x96xf32> to vector<16x16xf32>
    %337 = arith.truncf %334 : vector<16x16xf32> to vector<16x16xbf16>
    %338 = arith.truncf %335 : vector<16x16xf32> to vector<16x16xbf16>
    %cst_131 = arith.constant dense<0.000000e+00> : vector<16x16xf32>
    %339 = tpu.matmul %337, %338, %cst_131 {dimension_numbers = #tpu.dot_dimension_numbers<[1], [1], [0], [0], [0, 0, 1, 0], [], []>} : vector<16x16xbf16>, vector<16x16xbf16>, vector<16x16xf32> -> vector<16x16xf32>
    %cst_132 = arith.constant 2.500000e-01 : f32
    %340 = vector.broadcast %cst_132 : f32 to vector<16x16xf32>
    %341 = arith.mulf %339, %340 : vector<16x16xf32>
    %342 = arith.addf %341, %316 : vector<16x16xf32>
    %cst_133 = arith.constant dense<0xFF800000> : vector<16xf32>
    %343 = vector.multi_reduction <maximumf>, %342, %cst_133 [1] : vector<16x16xf32> to vector<16xf32>
    %344 = vector.shape_cast %343 : vector<16xf32> to vector<16x1xf32>
    %345 = vector.broadcast %344 : vector<16x1xf32> to vector<16x16xf32>
    %346 = arith.subf %342, %345 : vector<16x16xf32>
    %347 = math.exp %346 : vector<16x16xf32>
    %cst_134 = arith.constant dense<0.000000e+00> : vector<16xf32>
    %348 = vector.multi_reduction <add>, %347, %cst_134 [1] : vector<16x16xf32> to vector<16xf32>
    %349 = vector.shape_cast %348 : vector<16xf32> to vector<16x1xf32>
    %350 = tpu.reciprocal %349 {approx = true} : vector<16x1xf32> -> vector<16x1xf32>
    %351 = vector.broadcast %350 : vector<16x1xf32> to vector<16x16xf32>
    %352 = arith.mulf %347, %351 : vector<16x16xf32>
    %353 = arith.truncf %352 : vector<16x16xf32> to vector<16x16xbf16>
    %354 = arith.truncf %336 : vector<16x16xf32> to vector<16x16xbf16>
    %cst_135 = arith.constant dense<0.000000e+00> : vector<16x16xf32>
    %355 = tpu.matmul %353, %354, %cst_135 {dimension_numbers = #tpu.dot_dimension_numbers<[1], [0], [0], [1], [0, 0, 1, 1], [], []>} : vector<16x16xbf16>, vector<16x16xbf16>, vector<16x16xf32> -> vector<16x16xf32>
    %356 = vector.extract_strided_slice %333 {offsets = [0, 16], sizes = [16, 16], strides = [1, 1]} : vector<16x96xf32> to vector<16x16xf32>
    %357 = vector.extract_strided_slice %333 {offsets = [0, 48], sizes = [16, 16], strides = [1, 1]} : vector<16x96xf32> to vector<16x16xf32>
    %358 = vector.extract_strided_slice %333 {offsets = [0, 80], sizes = [16, 16], strides = [1, 1]} : vector<16x96xf32> to vector<16x16xf32>
    %359 = arith.truncf %356 : vector<16x16xf32> to vector<16x16xbf16>
    %360 = arith.truncf %357 : vector<16x16xf32> to vector<16x16xbf16>
    %cst_136 = arith.constant dense<0.000000e+00> : vector<16x16xf32>
    %361 = tpu.matmul %359, %360, %cst_136 {dimension_numbers = #tpu.dot_dimension_numbers<[1], [1], [0], [0], [0, 0, 1, 0], [], []>} : vector<16x16xbf16>, vector<16x16xbf16>, vector<16x16xf32> -> vector<16x16xf32>
    %cst_137 = arith.constant 2.500000e-01 : f32
    %362 = vector.broadcast %cst_137 : f32 to vector<16x16xf32>
    %363 = arith.mulf %361, %362 : vector<16x16xf32>
    %364 = arith.addf %363, %316 : vector<16x16xf32>
    %cst_138 = arith.constant dense<0xFF800000> : vector<16xf32>
    %365 = vector.multi_reduction <maximumf>, %364, %cst_138 [1] : vector<16x16xf32> to vector<16xf32>
    %366 = vector.shape_cast %365 : vector<16xf32> to vector<16x1xf32>
    %367 = vector.broadcast %366 : vector<16x1xf32> to vector<16x16xf32>
    %368 = arith.subf %364, %367 : vector<16x16xf32>
    %369 = math.exp %368 : vector<16x16xf32>
    %cst_139 = arith.constant dense<0.000000e+00> : vector<16xf32>
    %370 = vector.multi_reduction <add>, %369, %cst_139 [1] : vector<16x16xf32> to vector<16xf32>
    %371 = vector.shape_cast %370 : vector<16xf32> to vector<16x1xf32>
    %372 = tpu.reciprocal %371 {approx = true} : vector<16x1xf32> -> vector<16x1xf32>
    %373 = vector.broadcast %372 : vector<16x1xf32> to vector<16x16xf32>
    %374 = arith.mulf %369, %373 : vector<16x16xf32>
    %375 = arith.truncf %374 : vector<16x16xf32> to vector<16x16xbf16>
    %376 = arith.truncf %358 : vector<16x16xf32> to vector<16x16xbf16>
    %cst_140 = arith.constant dense<0.000000e+00> : vector<16x16xf32>
    %377 = tpu.matmul %375, %376, %cst_140 {dimension_numbers = #tpu.dot_dimension_numbers<[1], [0], [0], [1], [0, 0, 1, 1], [], []>} : vector<16x16xbf16>, vector<16x16xbf16>, vector<16x16xf32> -> vector<16x16xf32>
    %378 = tpu.concatenate %355, %377 in 1 : vector<16x16xf32>, vector<16x16xf32> -> vector<16x32xf32>
    %379 = arith.truncf %378 : vector<16x32xf32> to vector<16x32xbf16>
    %c2_141 = arith.constant 2 : index
    %c0_142 = arith.constant 0 : index
    %c0_143 = arith.constant 0 : index
    %380 = vector.load %arg15[%c2_141, %c0_142, %c0_143] : memref<4x32x32xbf16, #tpu.memory_space<vmem>>, vector<1x32x32xbf16>
    %381 = vector.shape_cast %380 : vector<1x32x32xbf16> to vector<32x32xbf16>
    %cst_144 = arith.constant dense<0.000000e+00> : vector<16x32xf32>
    %382 = tpu.matmul %379, %381, %cst_144 {dimension_numbers = #tpu.dot_dimension_numbers<[1], [0], [0], [1], [0, 0, 1, 1], [], []>} : vector<16x32xbf16>, vector<32x32xbf16>, vector<16x32xf32> -> vector<16x32xf32>
    %383 = vector.broadcast %319 : vector<1x32xf32> to vector<16x32xf32>
    %384 = arith.addf %382, %383 : vector<16x32xf32>
    %385 = arith.addf %314, %384 : vector<16x32xf32>
    %cst_145 = arith.constant dense<0.000000e+00> : vector<16xf32>
    %386 = vector.multi_reduction <add>, %385, %cst_145 [1] : vector<16x32xf32> to vector<16xf32>
    %387 = vector.shape_cast %386 : vector<16xf32> to vector<16x1xf32>
    %cst_146 = arith.constant 3.200000e+01 : f32
    %388 = vector.broadcast %cst_146 : f32 to vector<16x1xf32>
    %389 = arith.divf %387, %388 : vector<16x1xf32>
    %390 = arith.mulf %385, %385 : vector<16x32xf32>
    %cst_147 = arith.constant dense<0.000000e+00> : vector<16xf32>
    %391 = vector.multi_reduction <add>, %390, %cst_147 [1] : vector<16x32xf32> to vector<16xf32>
    %392 = vector.shape_cast %391 : vector<16xf32> to vector<16x1xf32>
    %cst_148 = arith.constant 3.200000e+01 : f32
    %393 = vector.broadcast %cst_148 : f32 to vector<16x1xf32>
    %394 = arith.divf %392, %393 : vector<16x1xf32>
    %395 = arith.mulf %389, %389 : vector<16x1xf32>
    %396 = arith.subf %394, %395 : vector<16x1xf32>
    %cst_149 = arith.constant 0.000000e+00 : f32
    %397 = vector.broadcast %cst_149 : f32 to vector<16x1xf32>
    %398 = arith.maximumf %396, %397 : vector<16x1xf32>
    %399 = vector.broadcast %389 : vector<16x1xf32> to vector<16x32xf32>
    %400 = arith.subf %385, %399 : vector<16x32xf32>
    %cst_150 = arith.constant 9.99999974E-6 : f32
    %401 = vector.broadcast %cst_150 : f32 to vector<16x1xf32>
    %402 = arith.addf %398, %401 : vector<16x1xf32>
    %403 = math.rsqrt %402 : vector<16x1xf32>
    %404 = vector.broadcast %403 : vector<16x1xf32> to vector<16x32xf32>
    %405 = arith.mulf %400, %404 : vector<16x32xf32>
    %406 = vector.broadcast %320 : vector<1x32xf32> to vector<16x32xf32>
    %407 = arith.mulf %405, %406 : vector<16x32xf32>
    %408 = vector.broadcast %321 : vector<1x32xf32> to vector<16x32xf32>
    %409 = arith.addf %407, %408 : vector<16x32xf32>
    %410 = arith.truncf %409 : vector<16x32xf32> to vector<16x32xbf16>
    %c2_151 = arith.constant 2 : index
    %c0_152 = arith.constant 0 : index
    %c0_153 = arith.constant 0 : index
    %411 = vector.load %arg16[%c2_151, %c0_152, %c0_153] : memref<4x32x16xbf16, #tpu.memory_space<vmem>>, vector<1x32x16xbf16>
    %412 = vector.shape_cast %411 : vector<1x32x16xbf16> to vector<32x16xbf16>
    %cst_154 = arith.constant dense<0.000000e+00> : vector<16x16xf32>
    %413 = tpu.matmul %410, %412, %cst_154 {dimension_numbers = #tpu.dot_dimension_numbers<[1], [0], [0], [1], [0, 0, 1, 1], [], []>} : vector<16x32xbf16>, vector<32x16xbf16>, vector<16x16xf32> -> vector<16x16xf32>
    %414 = vector.broadcast %324 : vector<1x16xf32> to vector<16x16xf32>
    %415 = arith.addf %413, %414 : vector<16x16xf32>
    %cst_155 = arith.constant 0.000000e+00 : f32
    %416 = vector.broadcast %cst_155 : f32 to vector<16x16xf32>
    %417 = arith.maximumf %415, %416 : vector<16x16xf32>
    %418 = arith.truncf %417 : vector<16x16xf32> to vector<16x16xbf16>
    %c2_156 = arith.constant 2 : index
    %c0_157 = arith.constant 0 : index
    %c0_158 = arith.constant 0 : index
    %419 = vector.load %arg17[%c2_156, %c0_157, %c0_158] : memref<4x16x32xbf16, #tpu.memory_space<vmem>>, vector<1x16x32xbf16>
    %420 = vector.shape_cast %419 : vector<1x16x32xbf16> to vector<16x32xbf16>
    %cst_159 = arith.constant dense<0.000000e+00> : vector<16x32xf32>
    %421 = tpu.matmul %418, %420, %cst_159 {dimension_numbers = #tpu.dot_dimension_numbers<[1], [0], [0], [1], [0, 0, 1, 1], [], []>} : vector<16x16xbf16>, vector<16x32xbf16>, vector<16x32xf32> -> vector<16x32xf32>
    %422 = vector.broadcast %325 : vector<1x32xf32> to vector<16x32xf32>
    %423 = arith.addf %421, %422 : vector<16x32xf32>
    %424 = arith.addf %409, %423 : vector<16x32xf32>
    %cst_160 = arith.constant dense<0.000000e+00> : vector<16xf32>
    %425 = vector.multi_reduction <add>, %424, %cst_160 [1] : vector<16x32xf32> to vector<16xf32>
    %426 = vector.shape_cast %425 : vector<16xf32> to vector<16x1xf32>
    %cst_161 = arith.constant 3.200000e+01 : f32
    %427 = vector.broadcast %cst_161 : f32 to vector<16x1xf32>
    %428 = arith.divf %426, %427 : vector<16x1xf32>
    %429 = arith.mulf %424, %424 : vector<16x32xf32>
    %cst_162 = arith.constant dense<0.000000e+00> : vector<16xf32>
    %430 = vector.multi_reduction <add>, %429, %cst_162 [1] : vector<16x32xf32> to vector<16xf32>
    %431 = vector.shape_cast %430 : vector<16xf32> to vector<16x1xf32>
    %cst_163 = arith.constant 3.200000e+01 : f32
    %432 = vector.broadcast %cst_163 : f32 to vector<16x1xf32>
    %433 = arith.divf %431, %432 : vector<16x1xf32>
    %434 = arith.mulf %428, %428 : vector<16x1xf32>
    %435 = arith.subf %433, %434 : vector<16x1xf32>
    %cst_164 = arith.constant 0.000000e+00 : f32
    %436 = vector.broadcast %cst_164 : f32 to vector<16x1xf32>
    %437 = arith.maximumf %435, %436 : vector<16x1xf32>
    %438 = vector.broadcast %428 : vector<16x1xf32> to vector<16x32xf32>
    %439 = arith.subf %424, %438 : vector<16x32xf32>
    %cst_165 = arith.constant 9.99999974E-6 : f32
    %440 = vector.broadcast %cst_165 : f32 to vector<16x1xf32>
    %441 = arith.addf %437, %440 : vector<16x1xf32>
    %442 = math.rsqrt %441 : vector<16x1xf32>
    %443 = vector.broadcast %442 : vector<16x1xf32> to vector<16x32xf32>
    %444 = arith.mulf %439, %443 : vector<16x32xf32>
    %445 = vector.broadcast %322 : vector<1x32xf32> to vector<16x32xf32>
    %446 = arith.mulf %444, %445 : vector<16x32xf32>
    %447 = vector.broadcast %323 : vector<1x32xf32> to vector<16x32xf32>
    %448 = arith.addf %446, %447 : vector<16x32xf32>
    %c3 = arith.constant 3 : index
    %c0_166 = arith.constant 0 : index
    %c0_167 = arith.constant 0 : index
    %449 = vector.load %arg18[%c3, %c0_166, %c0_167] : memref<4x7x32xf32, #tpu.memory_space<vmem>>, vector<1x7x32xf32>
    %450 = vector.shape_cast %449 : vector<1x7x32xf32> to vector<7x32xf32>
    %451 = vector.extract_strided_slice %450 {offsets = [0, 0], sizes = [1, 32], strides = [1, 1]} : vector<7x32xf32> to vector<1x32xf32>
    %452 = vector.extract_strided_slice %450 {offsets = [1, 0], sizes = [1, 32], strides = [1, 1]} : vector<7x32xf32> to vector<1x32xf32>
    %453 = vector.extract_strided_slice %450 {offsets = [2, 0], sizes = [1, 32], strides = [1, 1]} : vector<7x32xf32> to vector<1x32xf32>
    %454 = vector.extract_strided_slice %450 {offsets = [3, 0], sizes = [1, 32], strides = [1, 1]} : vector<7x32xf32> to vector<1x32xf32>
    %455 = vector.extract_strided_slice %450 {offsets = [4, 0], sizes = [1, 32], strides = [1, 1]} : vector<7x32xf32> to vector<1x32xf32>
    %456 = vector.extract_strided_slice %450 {offsets = [5, 0], sizes = [1, 16], strides = [1, 1]} : vector<7x32xf32> to vector<1x16xf32>
    %457 = vector.extract_strided_slice %450 {offsets = [6, 0], sizes = [1, 32], strides = [1, 1]} : vector<7x32xf32> to vector<1x32xf32>
    %458 = arith.truncf %448 : vector<16x32xf32> to vector<16x32xbf16>
    %c3_168 = arith.constant 3 : index
    %c0_169 = arith.constant 0 : index
    %c0_170 = arith.constant 0 : index
    %459 = vector.load %arg13[%c3_168, %c0_169, %c0_170] : memref<4x32x96xbf16, #tpu.memory_space<vmem>>, vector<1x32x96xbf16>
    %460 = vector.shape_cast %459 : vector<1x32x96xbf16> to vector<32x96xbf16>
    %cst_171 = arith.constant dense<0.000000e+00> : vector<16x96xf32>
    %461 = tpu.matmul %458, %460, %cst_171 {dimension_numbers = #tpu.dot_dimension_numbers<[1], [0], [0], [1], [0, 0, 1, 1], [], []>} : vector<16x32xbf16>, vector<32x96xbf16>, vector<16x96xf32> -> vector<16x96xf32>
    %c3_172 = arith.constant 3 : index
    %c0_173 = arith.constant 0 : index
    %c0_174 = arith.constant 0 : index
    %462 = vector.load %arg14[%c3_172, %c0_173, %c0_174] : memref<4x1x96xf32, #tpu.memory_space<vmem>>, vector<1x1x96xf32>
    %463 = vector.shape_cast %462 : vector<1x1x96xf32> to vector<1x96xf32>
    %464 = vector.broadcast %463 : vector<1x96xf32> to vector<16x96xf32>
    %465 = arith.addf %461, %464 : vector<16x96xf32>
    %466 = vector.extract_strided_slice %465 {offsets = [0, 0], sizes = [16, 16], strides = [1, 1]} : vector<16x96xf32> to vector<16x16xf32>
    %467 = vector.extract_strided_slice %465 {offsets = [0, 32], sizes = [16, 16], strides = [1, 1]} : vector<16x96xf32> to vector<16x16xf32>
    %468 = vector.extract_strided_slice %465 {offsets = [0, 64], sizes = [16, 16], strides = [1, 1]} : vector<16x96xf32> to vector<16x16xf32>
    %469 = arith.truncf %466 : vector<16x16xf32> to vector<16x16xbf16>
    %470 = arith.truncf %467 : vector<16x16xf32> to vector<16x16xbf16>
    %cst_175 = arith.constant dense<0.000000e+00> : vector<16x16xf32>
    %471 = tpu.matmul %469, %470, %cst_175 {dimension_numbers = #tpu.dot_dimension_numbers<[1], [1], [0], [0], [0, 0, 1, 0], [], []>} : vector<16x16xbf16>, vector<16x16xbf16>, vector<16x16xf32> -> vector<16x16xf32>
    %cst_176 = arith.constant 2.500000e-01 : f32
    %472 = vector.broadcast %cst_176 : f32 to vector<16x16xf32>
    %473 = arith.mulf %471, %472 : vector<16x16xf32>
    %474 = arith.addf %473, %316 : vector<16x16xf32>
    %cst_177 = arith.constant dense<0xFF800000> : vector<16xf32>
    %475 = vector.multi_reduction <maximumf>, %474, %cst_177 [1] : vector<16x16xf32> to vector<16xf32>
    %476 = vector.shape_cast %475 : vector<16xf32> to vector<16x1xf32>
    %477 = vector.broadcast %476 : vector<16x1xf32> to vector<16x16xf32>
    %478 = arith.subf %474, %477 : vector<16x16xf32>
    %479 = math.exp %478 : vector<16x16xf32>
    %cst_178 = arith.constant dense<0.000000e+00> : vector<16xf32>
    %480 = vector.multi_reduction <add>, %479, %cst_178 [1] : vector<16x16xf32> to vector<16xf32>
    %481 = vector.shape_cast %480 : vector<16xf32> to vector<16x1xf32>
    %482 = tpu.reciprocal %481 {approx = true} : vector<16x1xf32> -> vector<16x1xf32>
    %483 = vector.broadcast %482 : vector<16x1xf32> to vector<16x16xf32>
    %484 = arith.mulf %479, %483 : vector<16x16xf32>
    %485 = arith.truncf %484 : vector<16x16xf32> to vector<16x16xbf16>
    %486 = arith.truncf %468 : vector<16x16xf32> to vector<16x16xbf16>
    %cst_179 = arith.constant dense<0.000000e+00> : vector<16x16xf32>
    %487 = tpu.matmul %485, %486, %cst_179 {dimension_numbers = #tpu.dot_dimension_numbers<[1], [0], [0], [1], [0, 0, 1, 1], [], []>} : vector<16x16xbf16>, vector<16x16xbf16>, vector<16x16xf32> -> vector<16x16xf32>
    %488 = vector.extract_strided_slice %465 {offsets = [0, 16], sizes = [16, 16], strides = [1, 1]} : vector<16x96xf32> to vector<16x16xf32>
    %489 = vector.extract_strided_slice %465 {offsets = [0, 48], sizes = [16, 16], strides = [1, 1]} : vector<16x96xf32> to vector<16x16xf32>
    %490 = vector.extract_strided_slice %465 {offsets = [0, 80], sizes = [16, 16], strides = [1, 1]} : vector<16x96xf32> to vector<16x16xf32>
    %491 = arith.truncf %488 : vector<16x16xf32> to vector<16x16xbf16>
    %492 = arith.truncf %489 : vector<16x16xf32> to vector<16x16xbf16>
    %cst_180 = arith.constant dense<0.000000e+00> : vector<16x16xf32>
    %493 = tpu.matmul %491, %492, %cst_180 {dimension_numbers = #tpu.dot_dimension_numbers<[1], [1], [0], [0], [0, 0, 1, 0], [], []>} : vector<16x16xbf16>, vector<16x16xbf16>, vector<16x16xf32> -> vector<16x16xf32>
    %cst_181 = arith.constant 2.500000e-01 : f32
    %494 = vector.broadcast %cst_181 : f32 to vector<16x16xf32>
    %495 = arith.mulf %493, %494 : vector<16x16xf32>
    %496 = arith.addf %495, %316 : vector<16x16xf32>
    %cst_182 = arith.constant dense<0xFF800000> : vector<16xf32>
    %497 = vector.multi_reduction <maximumf>, %496, %cst_182 [1] : vector<16x16xf32> to vector<16xf32>
    %498 = vector.shape_cast %497 : vector<16xf32> to vector<16x1xf32>
    %499 = vector.broadcast %498 : vector<16x1xf32> to vector<16x16xf32>
    %500 = arith.subf %496, %499 : vector<16x16xf32>
    %501 = math.exp %500 : vector<16x16xf32>
    %cst_183 = arith.constant dense<0.000000e+00> : vector<16xf32>
    %502 = vector.multi_reduction <add>, %501, %cst_183 [1] : vector<16x16xf32> to vector<16xf32>
    %503 = vector.shape_cast %502 : vector<16xf32> to vector<16x1xf32>
    %504 = tpu.reciprocal %503 {approx = true} : vector<16x1xf32> -> vector<16x1xf32>
    %505 = vector.broadcast %504 : vector<16x1xf32> to vector<16x16xf32>
    %506 = arith.mulf %501, %505 : vector<16x16xf32>
    %507 = arith.truncf %506 : vector<16x16xf32> to vector<16x16xbf16>
    %508 = arith.truncf %490 : vector<16x16xf32> to vector<16x16xbf16>
    %cst_184 = arith.constant dense<0.000000e+00> : vector<16x16xf32>
    %509 = tpu.matmul %507, %508, %cst_184 {dimension_numbers = #tpu.dot_dimension_numbers<[1], [0], [0], [1], [0, 0, 1, 1], [], []>} : vector<16x16xbf16>, vector<16x16xbf16>, vector<16x16xf32> -> vector<16x16xf32>
    %510 = tpu.concatenate %487, %509 in 1 : vector<16x16xf32>, vector<16x16xf32> -> vector<16x32xf32>
    %511 = arith.truncf %510 : vector<16x32xf32> to vector<16x32xbf16>
    %c3_185 = arith.constant 3 : index
    %c0_186 = arith.constant 0 : index
    %c0_187 = arith.constant 0 : index
    %512 = vector.load %arg15[%c3_185, %c0_186, %c0_187] : memref<4x32x32xbf16, #tpu.memory_space<vmem>>, vector<1x32x32xbf16>
    %513 = vector.shape_cast %512 : vector<1x32x32xbf16> to vector<32x32xbf16>
    %cst_188 = arith.constant dense<0.000000e+00> : vector<16x32xf32>
    %514 = tpu.matmul %511, %513, %cst_188 {dimension_numbers = #tpu.dot_dimension_numbers<[1], [0], [0], [1], [0, 0, 1, 1], [], []>} : vector<16x32xbf16>, vector<32x32xbf16>, vector<16x32xf32> -> vector<16x32xf32>
    %515 = vector.broadcast %451 : vector<1x32xf32> to vector<16x32xf32>
    %516 = arith.addf %514, %515 : vector<16x32xf32>
    %517 = arith.addf %448, %516 : vector<16x32xf32>
    %cst_189 = arith.constant dense<0.000000e+00> : vector<16xf32>
    %518 = vector.multi_reduction <add>, %517, %cst_189 [1] : vector<16x32xf32> to vector<16xf32>
    %519 = vector.shape_cast %518 : vector<16xf32> to vector<16x1xf32>
    %cst_190 = arith.constant 3.200000e+01 : f32
    %520 = vector.broadcast %cst_190 : f32 to vector<16x1xf32>
    %521 = arith.divf %519, %520 : vector<16x1xf32>
    %522 = arith.mulf %517, %517 : vector<16x32xf32>
    %cst_191 = arith.constant dense<0.000000e+00> : vector<16xf32>
    %523 = vector.multi_reduction <add>, %522, %cst_191 [1] : vector<16x32xf32> to vector<16xf32>
    %524 = vector.shape_cast %523 : vector<16xf32> to vector<16x1xf32>
    %cst_192 = arith.constant 3.200000e+01 : f32
    %525 = vector.broadcast %cst_192 : f32 to vector<16x1xf32>
    %526 = arith.divf %524, %525 : vector<16x1xf32>
    %527 = arith.mulf %521, %521 : vector<16x1xf32>
    %528 = arith.subf %526, %527 : vector<16x1xf32>
    %cst_193 = arith.constant 0.000000e+00 : f32
    %529 = vector.broadcast %cst_193 : f32 to vector<16x1xf32>
    %530 = arith.maximumf %528, %529 : vector<16x1xf32>
    %531 = vector.broadcast %521 : vector<16x1xf32> to vector<16x32xf32>
    %532 = arith.subf %517, %531 : vector<16x32xf32>
    %cst_194 = arith.constant 9.99999974E-6 : f32
    %533 = vector.broadcast %cst_194 : f32 to vector<16x1xf32>
    %534 = arith.addf %530, %533 : vector<16x1xf32>
    %535 = math.rsqrt %534 : vector<16x1xf32>
    %536 = vector.broadcast %535 : vector<16x1xf32> to vector<16x32xf32>
    %537 = arith.mulf %532, %536 : vector<16x32xf32>
    %538 = vector.broadcast %452 : vector<1x32xf32> to vector<16x32xf32>
    %539 = arith.mulf %537, %538 : vector<16x32xf32>
    %540 = vector.broadcast %453 : vector<1x32xf32> to vector<16x32xf32>
    %541 = arith.addf %539, %540 : vector<16x32xf32>
    %542 = arith.truncf %541 : vector<16x32xf32> to vector<16x32xbf16>
    %c3_195 = arith.constant 3 : index
    %c0_196 = arith.constant 0 : index
    %c0_197 = arith.constant 0 : index
    %543 = vector.load %arg16[%c3_195, %c0_196, %c0_197] : memref<4x32x16xbf16, #tpu.memory_space<vmem>>, vector<1x32x16xbf16>
    %544 = vector.shape_cast %543 : vector<1x32x16xbf16> to vector<32x16xbf16>
    %cst_198 = arith.constant dense<0.000000e+00> : vector<16x16xf32>
    %545 = tpu.matmul %542, %544, %cst_198 {dimension_numbers = #tpu.dot_dimension_numbers<[1], [0], [0], [1], [0, 0, 1, 1], [], []>} : vector<16x32xbf16>, vector<32x16xbf16>, vector<16x16xf32> -> vector<16x16xf32>
    %546 = vector.broadcast %456 : vector<1x16xf32> to vector<16x16xf32>
    %547 = arith.addf %545, %546 : vector<16x16xf32>
    %cst_199 = arith.constant 0.000000e+00 : f32
    %548 = vector.broadcast %cst_199 : f32 to vector<16x16xf32>
    %549 = arith.maximumf %547, %548 : vector<16x16xf32>
    %550 = arith.truncf %549 : vector<16x16xf32> to vector<16x16xbf16>
    %c3_200 = arith.constant 3 : index
    %c0_201 = arith.constant 0 : index
    %c0_202 = arith.constant 0 : index
    %551 = vector.load %arg17[%c3_200, %c0_201, %c0_202] : memref<4x16x32xbf16, #tpu.memory_space<vmem>>, vector<1x16x32xbf16>
    %552 = vector.shape_cast %551 : vector<1x16x32xbf16> to vector<16x32xbf16>
    %cst_203 = arith.constant dense<0.000000e+00> : vector<16x32xf32>
    %553 = tpu.matmul %550, %552, %cst_203 {dimension_numbers = #tpu.dot_dimension_numbers<[1], [0], [0], [1], [0, 0, 1, 1], [], []>} : vector<16x16xbf16>, vector<16x32xbf16>, vector<16x32xf32> -> vector<16x32xf32>
    %554 = vector.broadcast %457 : vector<1x32xf32> to vector<16x32xf32>
    %555 = arith.addf %553, %554 : vector<16x32xf32>
    %556 = arith.addf %541, %555 : vector<16x32xf32>
    %cst_204 = arith.constant dense<0.000000e+00> : vector<16xf32>
    %557 = vector.multi_reduction <add>, %556, %cst_204 [1] : vector<16x32xf32> to vector<16xf32>
    %558 = vector.shape_cast %557 : vector<16xf32> to vector<16x1xf32>
    %cst_205 = arith.constant 3.200000e+01 : f32
    %559 = vector.broadcast %cst_205 : f32 to vector<16x1xf32>
    %560 = arith.divf %558, %559 : vector<16x1xf32>
    %561 = arith.mulf %556, %556 : vector<16x32xf32>
    %cst_206 = arith.constant dense<0.000000e+00> : vector<16xf32>
    %562 = vector.multi_reduction <add>, %561, %cst_206 [1] : vector<16x32xf32> to vector<16xf32>
    %563 = vector.shape_cast %562 : vector<16xf32> to vector<16x1xf32>
    %cst_207 = arith.constant 3.200000e+01 : f32
    %564 = vector.broadcast %cst_207 : f32 to vector<16x1xf32>
    %565 = arith.divf %563, %564 : vector<16x1xf32>
    %566 = arith.mulf %560, %560 : vector<16x1xf32>
    %567 = arith.subf %565, %566 : vector<16x1xf32>
    %cst_208 = arith.constant 0.000000e+00 : f32
    %568 = vector.broadcast %cst_208 : f32 to vector<16x1xf32>
    %569 = arith.maximumf %567, %568 : vector<16x1xf32>
    %570 = vector.broadcast %560 : vector<16x1xf32> to vector<16x32xf32>
    %571 = arith.subf %556, %570 : vector<16x32xf32>
    %cst_209 = arith.constant 9.99999974E-6 : f32
    %572 = vector.broadcast %cst_209 : f32 to vector<16x1xf32>
    %573 = arith.addf %569, %572 : vector<16x1xf32>
    %574 = math.rsqrt %573 : vector<16x1xf32>
    %575 = vector.broadcast %574 : vector<16x1xf32> to vector<16x32xf32>
    %576 = arith.mulf %571, %575 : vector<16x32xf32>
    %577 = vector.broadcast %454 : vector<1x32xf32> to vector<16x32xf32>
    %578 = arith.mulf %576, %577 : vector<16x32xf32>
    %579 = vector.broadcast %455 : vector<1x32xf32> to vector<16x32xf32>
    %580 = arith.addf %578, %579 : vector<16x32xf32>
    %581 = arith.truncf %580 : vector<16x32xf32> to vector<16x32xbf16>
    %c0_210 = arith.constant 0 : index
    %c0_211 = arith.constant 0 : index
    %582 = vector.load %arg11[%c0_210, %c0_211] : memref<32x128xbf16, #tpu.memory_space<vmem>>, vector<32x128xbf16>
    %cst_212 = arith.constant dense<0.000000e+00> : vector<16x128xf32>
    %583 = tpu.matmul %581, %582, %cst_212 {dimension_numbers = #tpu.dot_dimension_numbers<[1], [0], [0], [1], [0, 0, 1, 1], [], []>} : vector<16x32xbf16>, vector<32x128xbf16>, vector<16x128xf32> -> vector<16x128xf32>
    %c0_213 = arith.constant 0 : index
    %c0_214 = arith.constant 0 : index
    %584 = vector.load %arg12[%c0_213, %c0_214] : memref<1x128xf32, #tpu.memory_space<vmem>>, vector<1x128xf32>
    %585 = vector.broadcast %584 : vector<1x128xf32> to vector<16x128xf32>
    %586 = arith.addf %583, %585 : vector<16x128xf32>
    %587 = tpu.iota {dimensions = array<i32: 1>} : vector<16x128xi32>
    %c8_i32 = arith.constant 8 : i32
    %588 = vector.broadcast %c8_i32 : i32 to vector<16x128xi32>
    %589 = arith.cmpi sge, %587, %588 : vector<16x128xi32>
    %c12_i32 = arith.constant 12 : i32
    %590 = vector.broadcast %c12_i32 : i32 to vector<16x128xi32>
    %591 = arith.cmpi slt, %587, %590 : vector<16x128xi32>
    %592 = arith.andi %589, %591 : vector<16x128xi1>
    %593 = arith.negf %586 : vector<16x128xf32>
    %594 = math.exp %593 : vector<16x128xf32>
    %cst_215 = arith.constant 1.000000e+00 : f32
    %595 = vector.broadcast %cst_215 : f32 to vector<16x128xf32>
    %596 = arith.addf %595, %594 : vector<16x128xf32>
    %597 = arith.divf %595, %596 : vector<16x128xf32>
    %598 = arith.select %592, %597, %586 : vector<16x128xi1>, vector<16x128xf32>
    %599 = vector.shape_cast %598 : vector<16x128xf32> to vector<2x8x128xf32>
    %600 = tpu.iota {dimensions = array<i32: 1>} : vector<2x8x128xi32>
    %601 = tpu.iota {dimensions = array<i32: 2>} : vector<2x8x128xi32>
    %c0_i32 = arith.constant 0 : i32
    %602 = vector.broadcast %c0_i32 : i32 to vector<2x8x128xi32>
    %603 = arith.cmpi eq, %600, %602 : vector<2x8x128xi32>
    %c12_i32_216 = arith.constant 12 : i32
    %604 = vector.broadcast %c12_i32_216 : i32 to vector<2x8x128xi32>
    %605 = arith.cmpi eq, %601, %604 : vector<2x8x128xi32>
    %606 = arith.andi %603, %605 : vector<2x8x128xi1>
    %607 = vector.shape_cast %303 : vector<2x128xf32> to vector<2x1x128xf32>
    %608 = vector.shape_cast %607 : vector<2x1x128xf32> to vector<2x1x128xf32>
    %609 = vector.broadcast %608 : vector<2x1x128xf32> to vector<2x8x128xf32>
    %610 = arith.select %606, %609, %599 : vector<2x8x128xi1>, vector<2x8x128xf32>
    %c0_217 = arith.constant 0 : index
    %c0_218 = arith.constant 0 : index
    %c0_219 = arith.constant 0 : index
    %611 = vector.load %arg19[%c0_217, %c0_218, %c0_219] : memref<2x8x128xf32, #tpu.memory_space<vmem>>, vector<2x8x128xf32>
    tpu.vector_store %arg19[%c0_217, %c0_218, %c0_219], %610 {strides = array<i32>} : memref<2x8x128xf32, #tpu.memory_space<vmem>>, vector<2x8x128xf32>,
    return
  }
  func.func @transform_0(%arg0: i32) -> (i32, i32, i32) {
    %c0_i32 = arith.constant 0 : i32
    %c0_i32_0 = arith.constant 0 : i32
    %c0_i32_1 = arith.constant 0 : i32
    return %arg0, %c0_i32, %c0_i32_0 : i32, i32, i32
  }
  func.func @transform_1(%arg0: i32) -> (i32, i32, i32) {
    %c0_i32 = arith.constant 0 : i32
    %c0_i32_0 = arith.constant 0 : i32
    %c0_i32_1 = arith.constant 0 : i32
    return %arg0, %c0_i32, %c0_i32_0 : i32, i32, i32
  }
  func.func @transform_2(%arg0: i32) -> (i32, i32, i32) {
    %c0_i32 = arith.constant 0 : i32
    %c0_i32_0 = arith.constant 0 : i32
    %c0_i32_1 = arith.constant 0 : i32
    return %arg0, %c0_i32, %c0_i32_0 : i32, i32, i32
  }
  func.func @transform_3(%arg0: i32) -> (i32, i32, i32) {
    %c0_i32 = arith.constant 0 : i32
    %c0_i32_0 = arith.constant 0 : i32
    %c0_i32_1 = arith.constant 0 : i32
    return %arg0, %c0_i32, %c0_i32_0 : i32, i32, i32
  }
  func.func @transform_4(%arg0: i32) -> (i32, i32) {
    %c0_i32 = arith.constant 0 : i32
    %c0_i32_0 = arith.constant 0 : i32
    %c0_i32_1 = arith.constant 0 : i32
    return %c0_i32, %c0_i32_0 : i32, i32
  }
  func.func @transform_5(%arg0: i32) -> (i32, i32) {
    %c0_i32 = arith.constant 0 : i32
    %c0_i32_0 = arith.constant 0 : i32
    %c0_i32_1 = arith.constant 0 : i32
    return %c0_i32, %c0_i32_0 : i32, i32
  }
  func.func @transform_6(%arg0: i32) -> (i32, i32) {
    %c0_i32 = arith.constant 0 : i32
    %c0_i32_0 = arith.constant 0 : i32
    %c0_i32_1 = arith.constant 0 : i32
    return %c0_i32, %c0_i32_0 : i32, i32
  }
  func.func @transform_7(%arg0: i32) -> (i32, i32) {
    %c0_i32 = arith.constant 0 : i32
    %c0_i32_0 = arith.constant 0 : i32
    %c0_i32_1 = arith.constant 0 : i32
    return %c0_i32, %c0_i32_0 : i32, i32
  }
  func.func @transform_8(%arg0: i32) -> (i32, i32) {
    %c0_i32 = arith.constant 0 : i32
    %c0_i32_0 = arith.constant 0 : i32
    %c0_i32_1 = arith.constant 0 : i32
    return %c0_i32, %c0_i32_0 : i32, i32
  }
  func.func @transform_9(%arg0: i32) -> (i32, i32) {
    %c0_i32 = arith.constant 0 : i32
    %c0_i32_0 = arith.constant 0 : i32
    %c0_i32_1 = arith.constant 0 : i32
    return %c0_i32, %c0_i32_0 : i32, i32
  }
  func.func @transform_10(%arg0: i32) -> (i32, i32) {
    %c0_i32 = arith.constant 0 : i32
    %c0_i32_0 = arith.constant 0 : i32
    %c0_i32_1 = arith.constant 0 : i32
    return %c0_i32, %c0_i32_0 : i32, i32
  }
  func.func @transform_11(%arg0: i32) -> (i32, i32) {
    %c0_i32 = arith.constant 0 : i32
    %c0_i32_0 = arith.constant 0 : i32
    %c0_i32_1 = arith.constant 0 : i32
    return %c0_i32, %c0_i32_0 : i32, i32
  }
  func.func @transform_12(%arg0: i32) -> (i32, i32, i32) {
    %c0_i32 = arith.constant 0 : i32
    %c0_i32_0 = arith.constant 0 : i32
    %c0_i32_1 = arith.constant 0 : i32
    %c0_i32_2 = arith.constant 0 : i32
    return %c0_i32, %c0_i32_0, %c0_i32_1 : i32, i32, i32
  }
  func.func @transform_13(%arg0: i32) -> (i32, i32, i32) {
    %c0_i32 = arith.constant 0 : i32
    %c0_i32_0 = arith.constant 0 : i32
    %c0_i32_1 = arith.constant 0 : i32
    %c0_i32_2 = arith.constant 0 : i32
    return %c0_i32, %c0_i32_0, %c0_i32_1 : i32, i32, i32
  }
  func.func @transform_14(%arg0: i32) -> (i32, i32, i32) {
    %c0_i32 = arith.constant 0 : i32
    %c0_i32_0 = arith.constant 0 : i32
    %c0_i32_1 = arith.constant 0 : i32
    %c0_i32_2 = arith.constant 0 : i32
    return %c0_i32, %c0_i32_0, %c0_i32_1 : i32, i32, i32
  }
  func.func @transform_15(%arg0: i32) -> (i32, i32, i32) {
    %c0_i32 = arith.constant 0 : i32
    %c0_i32_0 = arith.constant 0 : i32
    %c0_i32_1 = arith.constant 0 : i32
    %c0_i32_2 = arith.constant 0 : i32
    return %c0_i32, %c0_i32_0, %c0_i32_1 : i32, i32, i32
  }
  func.func @transform_16(%arg0: i32) -> (i32, i32, i32) {
    %c0_i32 = arith.constant 0 : i32
    %c0_i32_0 = arith.constant 0 : i32
    %c0_i32_1 = arith.constant 0 : i32
    %c0_i32_2 = arith.constant 0 : i32
    return %c0_i32, %c0_i32_0, %c0_i32_1 : i32, i32, i32
  }
  func.func @transform_17(%arg0: i32) -> (i32, i32, i32) {
    %c0_i32 = arith.constant 0 : i32
    %c0_i32_0 = arith.constant 0 : i32
    %c0_i32_1 = arith.constant 0 : i32
    %c0_i32_2 = arith.constant 0 : i32
    return %c0_i32, %c0_i32_0, %c0_i32_1 : i32, i32, i32
  }
  func.func @transform_18(%arg0: i32) -> (i32, i32, i32) {
    %c0_i32 = arith.constant 0 : i32
    %c0_i32_0 = arith.constant 0 : i32
    %c0_i32_1 = arith.constant 0 : i32
    return %arg0, %c0_i32, %c0_i32_0 : i32, i32, i32
  }
}

</mosaic_0001>

<llo_original>
// kernel: fidnet_forward.1
$region0: #{fidnet_forward.1}
  #allocation0 [shape = 'u32[]', space=smem, size = 0x4, offset = 0x4, fixed_abs, tag = 'smem constant byte address 0x4 - core index']
  #allocation1 [shape = 'u32[144,128]{1,0:T(1,128)}', space=vmem, size = 0x12000, scoped, tag = 'internal scratch']
  %s0 = inlined_call_operand.vmem [shape: f32[4,8,4], index: 0, kind: input, shape index: {}]
  %s1 = inlined_call_operand.vmem [shape: s32[4,8,1], index: 1, kind: input, shape index: {}]
  %s2 = inlined_call_operand.vmem [shape: f32[2,32,32], index: 2, kind: input, shape index: {}]
  %s3 = inlined_call_operand.vmem [shape: f32[2,16,16], index: 3, kind: input, shape index: {}]
  %s4 = inlined_call_operand.vmem [shape: bf16[4,32], index: 4, kind: input, shape index: {}]
  %s5 = inlined_call_operand.vmem [shape: bf16[8,32], index: 5, kind: input, shape index: {}]
  %s6 = inlined_call_operand.vmem [shape: f32[1,32], index: 6, kind: input, shape index: {}]
  %s7 = inlined_call_operand.vmem [shape: f32[1,32], index: 7, kind: input, shape index: {}]
  %s8 = inlined_call_operand.vmem [shape: bf16[32,32], index: 8, kind: input, shape index: {}]
  %s9 = inlined_call_operand.vmem [shape: f32[8,32], index: 9, kind: input, shape index: {}]
  %s10 = inlined_call_operand.vmem [shape: bf16[32,128], index: 10, kind: input, shape index: {}]
  %s11 = inlined_call_operand.vmem [shape: f32[1,128], index: 11, kind: input, shape index: {}]
  %s12 = inlined_call_operand.vmem [shape: bf16[4,32,96], index: 12, kind: input, shape index: {}]
  %s13 = inlined_call_operand.vmem [shape: f32[4,1,96], index: 13, kind: input, shape index: {}]
  %s14 = inlined_call_operand.vmem [shape: bf16[4,32,32], index: 14, kind: input, shape index: {}]
  %s15 = inlined_call_operand.vmem [shape: bf16[4,32,16], index: 15, kind: input, shape index: {}]
  %s16 = inlined_call_operand.vmem [shape: bf16[4,16,32], index: 16, kind: input, shape index: {}]
  %s17 = inlined_call_operand.vmem [shape: f32[4,7,32], index: 17, kind: input, shape index: {}]
  %s18 = inlined_call_operand.vmem [shape: f32[4,8,128], index: 18, kind: output, shape index: {}]
  %s19 = sld [smem:[#allocation0]]
  $region105: #{fidnet_forward.1} parent=0
    _
  %s21 = ssub.s32 1, %s19
  %s22 = scalar_select 0, %s21, %s19
  loop: start=0, step=1, limit=4
  $region2: #{fidnet_forward.1} parent=0 // loop_pre_header
    _
  $region3: #{fidnet_forward.1} parent=0 // loop_header
    %s24 = sphi 0, %s28
    %p25 = scmp.ge.s32.totalorder %s24, 4
    %s34 = sphi 0, %s36
    %s37 = sphi 0, %s34
    %s38 = sphi 0, %s37
    %s54 = sphi 0, %s38
    %s60 = sphi 0, %s62
    %s63 = sphi 0, %s60
    %s64 = sphi 0, %s63
    %s80 = sphi 0, %s64
    %s86 = sphi 0, %s88
    %s89 = sphi 0, %s86
    %s90 = sphi 0, %s89
    %s106 = sphi 0, %s90
    %s112 = sphi 0, %s114
    %s115 = sphi 0, %s112
    %s116 = sphi 0, %s115
    %s132 = sphi 0, %s116
    %s136 = sphi 0, %s136
    %s138 = sphi 0, %s136
    %s139 = sphi 0, %s138
    %s153 = sphi 0, %s139
    %s157 = sphi 0, %s157
    %s159 = sphi 0, %s157
    %s160 = sphi 0, %s159
    %s174 = sphi 0, %s160
    %s178 = sphi 0, %s178
    %s180 = sphi 0, %s178
    %s181 = sphi 0, %s180
    %s195 = sphi 0, %s181
    %s199 = sphi 0, %s199
    %s201 = sphi 0, %s199
    %s202 = sphi 0, %s201
    %s216 = sphi 0, %s202
    %s220 = sphi 0, %s220
    %s222 = sphi 0, %s220
    %s223 = sphi 0, %s222
    %s237 = sphi 0, %s223
    %s241 = sphi 0, %s241
    %s243 = sphi 0, %s241
    %s244 = sphi 0, %s243
    %s258 = sphi 0, %s244
    %s262 = sphi 0, %s262
    %s264 = sphi 0, %s262
    %s265 = sphi 0, %s264
    %s279 = sphi 0, %s265
    %s283 = sphi 0, %s283
    %s285 = sphi 0, %s283
    %s286 = sphi 0, %s285
    %s300 = sphi 0, %s286
    %s304 = sphi 0, %s304
    %s306 = sphi 0, %s304
    %s307 = sphi 0, %s306
    %s321 = sphi 0, %s307
    %s325 = sphi 0, %s325
    %s327 = sphi 0, %s325
    %s328 = sphi 0, %s327
    %s342 = sphi 0, %s328
    %s346 = sphi 0, %s346
    %s348 = sphi 0, %s346
    %s349 = sphi 0, %s348
    %s363 = sphi 0, %s349
    %s367 = sphi 0, %s367
    %s369 = sphi 0, %s367
    %s370 = sphi 0, %s369
    %s384 = sphi 0, %s370
    %s388 = sphi 0, %s388
    %s390 = sphi 0, %s388
    %s391 = sphi 0, %s390
    %s405 = sphi 0, %s391
    %s409 = sphi 0, %s409
    %s411 = sphi 0, %s409
    %s412 = sphi 0, %s411
    %s426 = sphi 0, %s412
    %s432 = sphi 0, %s434
    %s435 = sphi 0, %s432
    %s436 = sphi 0, %s435
    %s452 = sphi 0, %s436
  $region4: #{fidnet_forward.1} parent=0 // loop_header_branch
    %27 = sbr.rel (%p25) target = $region8
  $region5: #{fidnet_forward.1} parent=0 // loop_body
    %s29 = ssub.s32 %s24, 1
    %s30 = ssub.s32 %s24, 2
    %s31 = sadd.s32 %s24, 1
    %s32 = ssub.s32 %s24, %s31
    %p33 = scmp.eq.s32.totalorder %s32, 0
    %s35 = sadd.s32 %s34, 1
    %s36 = scalar_select %p33, %s34, %s35
    %p39 = pneg %p33
    %p40 = scmp.eq.s32.totalorder %s24, 1
    %p41 = por %p39, %p40
    %p42 = scmp.ne.s32.totalorder %s34, %s37
    %p43 = scmp.eq.s32.totalorder %s24, 0
    %p44 = por %p42, %p43
    %p45 = scmp.ne.s32.totalorder %s34, %s37
    %p46 = scmp.eq.s32.totalorder %s29, 1
    %p47 = por %p45, %p46
    %p48 = scmp.ne.s32.totalorder %s37, %s38
    %p49 = scmp.eq.s32.totalorder %s29, 0
    %p50 = por %p48, %p49
    %p51 = scmp.ne.s32.totalorder %s37, %s38
    %p52 = scmp.eq.s32.totalorder %s30, 1
    %p53 = por %p51, %p52
    %p55 = scmp.ne.s32.totalorder %s38, %s54
    %p56 = scmp.eq.s32.totalorder %s30, 0
    %p57 = por %p55, %p56
    %s58 = ssub.s32 %s24, %s31
    %p59 = scmp.eq.s32.totalorder %s58, 0
    %s61 = sadd.s32 %s60, 1
    %s62 = scalar_select %p59, %s60, %s61
    %p65 = pneg %p59
    %p66 = scmp.eq.s32.totalorder %s24, 1
    %p67 = por %p65, %p66
    %p68 = scmp.ne.s32.totalorder %s60, %s63
    %p69 = scmp.eq.s32.totalorder %s24, 0
    %p70 = por %p68, %p69
    %p71 = scmp.ne.s32.totalorder %s60, %s63
    %p72 = scmp.eq.s32.totalorder %s29, 1
    %p73 = por %p71, %p72
    %p74 = scmp.ne.s32.totalorder %s63, %s64
    %p75 = scmp.eq.s32.totalorder %s29, 0
    %p76 = por %p74, %p75
    %p77 = scmp.ne.s32.totalorder %s63, %s64
    %p78 = scmp.eq.s32.totalorder %s30, 1
    %p79 = por %p77, %p78
    %p81 = scmp.ne.s32.totalorder %s64, %s80
    %p82 = scmp.eq.s32.totalorder %s30, 0
    %p83 = por %p81, %p82
    %s84 = ssub.s32 %s24, %s31
    %p85 = scmp.eq.s32.totalorder %s84, 0
    %s87 = sadd.s32 %s86, 1
    %s88 = scalar_select %p85, %s86, %s87
    %p91 = pneg %p85
    %p92 = scmp.eq.s32.totalorder %s24, 1
    %p93 = por %p91, %p92
    %p94 = scmp.ne.s32.totalorder %s86, %s89
    %p95 = scmp.eq.s32.totalorder %s24, 0
    %p96 = por %p94, %p95
    %p97 = scmp.ne.s32.totalorder %s86, %s89
    %p98 = scmp.eq.s32.totalorder %s29, 1
    %p99 = por %p97, %p98
    %p100 = scmp.ne.s32.totalorder %s89, %s90
    %p101 = scmp.eq.s32.totalorder %s29, 0
    %p102 = por %p100, %p101
    %p103 = scmp.ne.s32.totalorder %s89, %s90
    %p104 = scmp.eq.s32.totalorder %s30, 1
    %p105 = por %p103, %p104
    %p107 = scmp.ne.s32.totalorder %s90, %s106
    %p108 = scmp.eq.s32.totalorder %s30, 0
    %p109 = por %p107, %p108
    %s110 = ssub.s32 %s24, %s31
    %p111 = scmp.eq.s32.totalorder %s110, 0
    %s113 = sadd.s32 %s112, 1
    %s114 = scalar_select %p111, %s112, %s113
    %p117 = pneg %p111
    %p118 = scmp.eq.s32.totalorder %s24, 1
    %p119 = por %p117, %p118
    %p120 = scmp.ne.s32.totalorder %s112, %s115
    %p121 = scmp.eq.s32.totalorder %s24, 0
    %p122 = por %p120, %p121
    %p123 = scmp.ne.s32.totalorder %s112, %s115
    %p124 = scmp.eq.s32.totalorder %s29, 1
    %p125 = por %p123, %p124
    %p126 = scmp.ne.s32.totalorder %s115, %s116
    %p127 = scmp.eq.s32.totalorder %s29, 0
    %p128 = por %p126, %p127
    %p129 = scmp.ne.s32.totalorder %s115, %s116
    %p130 = scmp.eq.s32.totalorder %s30, 1
    %p131 = por %p129, %p130
    %p133 = scmp.ne.s32.totalorder %s116, %s132
    %p134 = scmp.eq.s32.totalorder %s30, 0
    %p135 = por %p133, %p134
    %s137 = sadd.s32 %s136, 1
    %p140 = scmp.eq.s32.totalorder %s24, 1
    %p141 = scmp.ne.s32.totalorder %s136, %s138
    %p142 = scmp.eq.s32.totalorder %s24, 0
    %p143 = por %p141, %p142
    %p144 = scmp.ne.s32.totalorder %s136, %s138
    %p145 = scmp.eq.s32.totalorder %s29, 1
    %p146 = por %p144, %p145
    %p147 = scmp.ne.s32.totalorder %s138, %s139
    %p148 = scmp.eq.s32.totalorder %s29, 0
    %p149 = por %p147, %p148
    %p150 = scmp.ne.s32.totalorder %s138, %s139
    %p151 = scmp.eq.s32.totalorder %s30, 1
    %p152 = por %p150, %p151
    %p154 = scmp.ne.s32.totalorder %s139, %s153
    %p155 = scmp.eq.s32.totalorder %s30, 0
    %p156 = por %p154, %p155
    %s158 = sadd.s32 %s157, 1
    %p161 = scmp.eq.s32.totalorder %s24, 1
    %p162 = scmp.ne.s32.totalorder %s157, %s159
    %p163 = scmp.eq.s32.totalorder %s24, 0
    %p164 = por %p162, %p163
    %p165 = scmp.ne.s32.totalorder %s157, %s159
    %p166 = scmp.eq.s32.totalorder %s29, 1
    %p167 = por %p165, %p166
    %p168 = scmp.ne.s32.totalorder %s159, %s160
    %p169 = scmp.eq.s32.totalorder %s29, 0
    %p170 = por %p168, %p169
    %p171 = scmp.ne.s32.totalorder %s159, %s160
    %p172 = scmp.eq.s32.totalorder %s30, 1
    %p173 = por %p171, %p172
    %p175 = scmp.ne.s32.totalorder %s160, %s174
    %p176 = scmp.eq.s32.totalorder %s30, 0
    %p177 = por %p175, %p176
    %s179 = sadd.s32 %s178, 1
    %p182 = scmp.eq.s32.totalorder %s24, 1
    %p183 = scmp.ne.s32.totalorder %s178, %s180
    %p184 = scmp.eq.s32.totalorder %s24, 0
    %p185 = por %p183, %p184
    %p186 = scmp.ne.s32.totalorder %s178, %s180
    %p187 = scmp.eq.s32.totalorder %s29, 1
    %p188 = por %p186, %p187
    %p189 = scmp.ne.s32.totalorder %s180, %s181
    %p190 = scmp.eq.s32.totalorder %s29, 0
    %p191 = por %p189, %p190
    %p192 = scmp.ne.s32.totalorder %s180, %s181
    %p193 = scmp.eq.s32.totalorder %s30, 1
    %p194 = por %p192, %p193
    %p196 = scmp.ne.s32.totalorder %s181, %s195
    %p197 = scmp.eq.s32.totalorder %s30, 0
    %p198 = por %p196, %p197
    %s200 = sadd.s32 %s199, 1
    %p203 = scmp.eq.s32.totalorder %s24, 1
    %p204 = scmp.ne.s32.totalorder %s199, %s201
    %p205 = scmp.eq.s32.totalorder %s24, 0
    %p206 = por %p204, %p205
    %p207 = scmp.ne.s32.totalorder %s199, %s201
    %p208 = scmp.eq.s32.totalorder %s29, 1
    %p209 = por %p207, %p208
    %p210 = scmp.ne.s32.totalorder %s201, %s202
    %p211 = scmp.eq.s32.totalorder %s29, 0
    %p212 = por %p210, %p211
    %p213 = scmp.ne.s32.totalorder %s201, %s202
    %p214 = scmp.eq.s32.totalorder %s30, 1
    %p215 = por %p213, %p214
    %p217 = scmp.ne.s32.totalorder %s202, %s216
    %p218 = scmp.eq.s32.totalorder %s30, 0
    %p219 = por %p217, %p218
    %s221 = sadd.s32 %s220, 1
    %p224 = scmp.eq.s32.totalorder %s24, 1
    %p225 = scmp.ne.s32.totalorder %s220, %s222
    %p226 = scmp.eq.s32.totalorder %s24, 0
    %p227 = por %p225, %p226
    %p228 = scmp.ne.s32.totalorder %s220, %s222
    %p229 = scmp.eq.s32.totalorder %s29, 1
    %p230 = por %p228, %p229
    %p231 = scmp.ne.s32.totalorder %s222, %s223
    %p232 = scmp.eq.s32.totalorder %s29, 0
    %p233 = por %p231, %p232
    %p234 = scmp.ne.s32.totalorder %s222, %s223
    %p235 = scmp.eq.s32.totalorder %s30, 1
    %p236 = por %p234, %p235
    %p238 = scmp.ne.s32.totalorder %s223, %s237
    %p239 = scmp.eq.s32.totalorder %s30, 0
    %p240 = por %p238, %p239
    %s242 = sadd.s32 %s241, 1
    %p245 = scmp.eq.s32.totalorder %s24, 1
    %p246 = scmp.ne.s32.totalorder %s241, %s243
    %p247 = scmp.eq.s32.totalorder %s24, 0
    %p248 = por %p246, %p247
    %p249 = scmp.ne.s32.totalorder %s241, %s243
    %p250 = scmp.eq.s32.totalorder %s29, 1
    %p251 = por %p249, %p250
    %p252 = scmp.ne.s32.totalorder %s243, %s244
    %p253 = scmp.eq.s32.totalorder %s29, 0
    %p254 = por %p252, %p253
    %p255 = scmp.ne.s32.totalorder %s243, %s244
    %p256 = scmp.eq.s32.totalorder %s30, 1
    %p257 = por %p255, %p256
    %p259 = scmp.ne.s32.totalorder %s244, %s258
    %p260 = scmp.eq.s32.totalorder %s30, 0
    %p261 = por %p259, %p260
    %s263 = sadd.s32 %s262, 1
    %p266 = scmp.eq.s32.totalorder %s24, 1
    %p267 = scmp.ne.s32.totalorder %s262, %s264
    %p268 = scmp.eq.s32.totalorder %s24, 0
    %p269 = por %p267, %p268
    %p270 = scmp.ne.s32.totalorder %s262, %s264
    %p271 = scmp.eq.s32.totalorder %s29, 1
    %p272 = por %p270, %p271
    %p273 = scmp.ne.s32.totalorder %s264, %s265
    %p274 = scmp.eq.s32.totalorder %s29, 0
    %p275 = por %p273, %p274
    %p276 = scmp.ne.s32.totalorder %s264, %s265
    %p277 = scmp.eq.s32.totalorder %s30, 1
    %p278 = por %p276, %p277
    %p280 = scmp.ne.s32.totalorder %s265, %s279
    %p281 = scmp.eq.s32.totalorder %s30, 0
    %p282 = por %p280, %p281
    %s284 = sadd.s32 %s283, 1
    %p287 = scmp.eq.s32.totalorder %s24, 1
    %p288 = scmp.ne.s32.totalorder %s283, %s285
    %p289 = scmp.eq.s32.totalorder %s24, 0
    %p290 = por %p288, %p289
    %p291 = scmp.ne.s32.totalorder %s283, %s285
    %p292 = scmp.eq.s32.totalorder %s29, 1
    %p293 = por %p291, %p292
    %p294 = scmp.ne.s32.totalorder %s285, %s286
    %p295 = scmp.eq.s32.totalorder %s29, 0
    %p296 = por %p294, %p295
    %p297 = scmp.ne.s32.totalorder %s285, %s286
    %p298 = scmp.eq.s32.totalorder %s30, 1
    %p299 = por %p297, %p298
    %p301 = scmp.ne.s32.totalorder %s286, %s300
    %p302 = scmp.eq.s32.totalorder %s30, 0
    %p303 = por %p301, %p302
    %s305 = sadd.s32 %s304, 1
    %p308 = scmp.eq.s32.totalorder %s24, 1
    %p309 = scmp.ne.s32.totalorder %s304, %s306
    %p310 = scmp.eq.s32.totalorder %s24, 0
    %p311 = por %p309, %p310
    %p312 = scmp.ne.s32.totalorder %s304, %s306
    %p313 = scmp.eq.s32.totalorder %s29, 1
    %p314 = por %p312, %p313
    %p315 = scmp.ne.s32.totalorder %s306, %s307
    %p316 = scmp.eq.s32.totalorder %s29, 0
    %p317 = por %p315, %p316
    %p318 = scmp.ne.s32.totalorder %s306, %s307
    %p319 = scmp.eq.s32.totalorder %s30, 1
    %p320 = por %p318, %p319
    %p322 = scmp.ne.s32.totalorder %s307, %s321
    %p323 = scmp.eq.s32.totalorder %s30, 0
    %p324 = por %p322, %p323
    %s326 = sadd.s32 %s325, 1
    %p329 = scmp.eq.s32.totalorder %s24, 1
    %p330 = scmp.ne.s32.totalorder %s325, %s327
    %p331 = scmp.eq.s32.totalorder %s24, 0
    %p332 = por %p330, %p331
    %p333 = scmp.ne.s32.totalorder %s325, %s327
    %p334 = scmp.eq.s32.totalorder %s29, 1
    %p335 = por %p333, %p334
    %p336 = scmp.ne.s32.totalorder %s327, %s328
    %p337 = scmp.eq.s32.totalorder %s29, 0
    %p338 = por %p336, %p337
    %p339 = scmp.ne.s32.totalorder %s327, %s328
    %p340 = scmp.eq.s32.totalorder %s30, 1
    %p341 = por %p339, %p340
    %p343 = scmp.ne.s32.totalorder %s328, %s342
    %p344 = scmp.eq.s32.totalorder %s30, 0
    %p345 = por %p343, %p344
    %s347 = sadd.s32 %s346, 1
    %p350 = scmp.eq.s32.totalorder %s24, 1
    %p351 = scmp.ne.s32.totalorder %s346, %s348
    %p352 = scmp.eq.s32.totalorder %s24, 0
    %p353 = por %p351, %p352
    %p354 = scmp.ne.s32.totalorder %s346, %s348
    %p355 = scmp.eq.s32.totalorder %s29, 1
    %p356 = por %p354, %p355
    %p357 = scmp.ne.s32.totalorder %s348, %s349
    %p358 = scmp.eq.s32.totalorder %s29, 0
    %p359 = por %p357, %p358
    %p360 = scmp.ne.s32.totalorder %s348, %s349
    %p361 = scmp.eq.s32.totalorder %s30, 1
    %p362 = por %p360, %p361
    %p364 = scmp.ne.s32.totalorder %s349, %s363
    %p365 = scmp.eq.s32.totalorder %s30, 0
    %p366 = por %p364, %p365
    %s368 = sadd.s32 %s367, 1
    %p371 = scmp.eq.s32.totalorder %s24, 1
    %p372 = scmp.ne.s32.totalorder %s367, %s369
    %p373 = scmp.eq.s32.totalorder %s24, 0
    %p374 = por %p372, %p373
    %p375 = scmp.ne.s32.totalorder %s367, %s369
    %p376 = scmp.eq.s32.totalorder %s29, 1
    %p377 = por %p375, %p376
    %p378 = scmp.ne.s32.totalorder %s369, %s370
    %p379 = scmp.eq.s32.totalorder %s29, 0
    %p380 = por %p378, %p379
    %p381 = scmp.ne.s32.totalorder %s369, %s370
    %p382 = scmp.eq.s32.totalorder %s30, 1
    %p383 = por %p381, %p382
    %p385 = scmp.ne.s32.totalorder %s370, %s384
    %p386 = scmp.eq.s32.totalorder %s30, 0
    %p387 = por %p385, %p386
    %s389 = sadd.s32 %s388, 1
    %p392 = scmp.eq.s32.totalorder %s24, 1
    %p393 = scmp.ne.s32.totalorder %s388, %s390
    %p394 = scmp.eq.s32.totalorder %s24, 0
    %p395 = por %p393, %p394
    %p396 = scmp.ne.s32.totalorder %s388, %s390
    %p397 = scmp.eq.s32.totalorder %s29, 1
    %p398 = por %p396, %p397
    %p399 = scmp.ne.s32.totalorder %s390, %s391
    %p400 = scmp.eq.s32.totalorder %s29, 0
    %p401 = por %p399, %p400
    %p402 = scmp.ne.s32.totalorder %s390, %s391
    %p403 = scmp.eq.s32.totalorder %s30, 1
    %p404 = por %p402, %p403
    %p406 = scmp.ne.s32.totalorder %s391, %s405
    %p407 = scmp.eq.s32.totalorder %s30, 0
    %p408 = por %p406, %p407
    %s410 = sadd.s32 %s409, 1
    %p413 = scmp.eq.s32.totalorder %s24, 1
    %p414 = scmp.ne.s32.totalorder %s409, %s411
    %p415 = scmp.eq.s32.totalorder %s24, 0
    %p416 = por %p414, %p415
    %p417 = scmp.ne.s32.totalorder %s409, %s411
    %p418 = scmp.eq.s32.totalorder %s29, 1
    %p419 = por %p417, %p418
    %p420 = scmp.ne.s32.totalorder %s411, %s412
    %p421 = scmp.eq.s32.totalorder %s29, 0
    %p422 = por %p420, %p421
    %p423 = scmp.ne.s32.totalorder %s411, %s412
    %p424 = scmp.eq.s32.totalorder %s30, 1
    %p425 = por %p423, %p424
    %p427 = scmp.ne.s32.totalorder %s412, %s426
    %p428 = scmp.eq.s32.totalorder %s30, 0
    %p429 = por %p427, %p428
    %s430 = ssub.s32 %s24, %s31
    %p431 = scmp.eq.s32.totalorder %s430, 0
    %s433 = sadd.s32 %s432, 1
    %s434 = scalar_select %p431, %s432, %s433
    %p437 = pneg %p431
    %p438 = scmp.eq.s32.totalorder %s24, 1
    %p439 = por %p437, %p438
    %p440 = scmp.ne.s32.totalorder %s432, %s435
    %p441 = scmp.eq.s32.totalorder %s24, 0
    %p442 = por %p440, %p441
    %p443 = scmp.ne.s32.totalorder %s432, %s435
    %p444 = scmp.eq.s32.totalorder %s29, 1
    %p445 = por %p443, %p444
    %p446 = scmp.ne.s32.totalorder %s435, %s436
    %p447 = scmp.eq.s32.totalorder %s29, 0
    %p448 = por %p446, %p447
    %p449 = scmp.ne.s32.totalorder %s435, %s436
    %p450 = scmp.eq.s32.totalorder %s30, 1
    %p451 = por %p449, %p450
    %p453 = scmp.ne.s32.totalorder %s436, %s452
    %p454 = scmp.eq.s32.totalorder %s30, 0
    %p455 = por %p453, %p454
    %p456 = scmp.le.s32.totalorder 1, %s24
    %p457 = scmp.lt.s32.totalorder %s24, 3
    %p458 = pnand %p456, %p457
    %p459 = pneg %p458
    // Predicated region
    $region9: #{fidnet_forward.1} parent=5 // pred_check
      _
    $region10: #{fidnet_forward.1} parent=5 // pred_check_branch
      %461 = sbr.rel (%p458) target = $region12
    $region11: #{fidnet_forward.1} parent=5 // pred_region
      %s462 = ssub.s32 %s24, 1
      // Predicated region
      $region13: #{fidnet_forward.1} parent=11 // pred_check
        %p463 = pneg %p149
      $region14: #{fidnet_forward.1} parent=11 // pred_check_branch
        %465 = sbr.rel (%p463) target = $region16
      $region15: #{fidnet_forward.1} parent=11 // pred_region
        _
      $region16: #{fidnet_forward.1} parent=11 // pred_fallthru
        _
      // Predicated region
      $region17: #{fidnet_forward.1} parent=11 // pred_check
        %p466 = pneg %p170
      $region18: #{fidnet_forward.1} parent=11 // pred_check_branch
        %468 = sbr.rel (%p466) target = $region20
      $region19: #{fidnet_forward.1} parent=11 // pred_region
        _
      $region20: #{fidnet_forward.1} parent=11 // pred_fallthru
        _
      // Predicated region
      $region21: #{fidnet_forward.1} parent=11 // pred_check
        %p469 = pneg %p191
      $region22: #{fidnet_forward.1} parent=11 // pred_check_branch
        %471 = sbr.rel (%p469) target = $region24
      $region23: #{fidnet_forward.1} parent=11 // pred_region
        _
      $region24: #{fidnet_forward.1} parent=11 // pred_fallthru
        _
      // Predicated region
      $region25: #{fidnet_forward.1} parent=11 // pred_check
        %p472 = pneg %p212
      $region26: #{fidnet_forward.1} parent=11 // pred_check_branch
        %474 = sbr.rel (%p472) target = $region28
      $region27: #{fidnet_forward.1} parent=11 // pred_region
        _
      $region28: #{fidnet_forward.1} parent=11 // pred_fallthru
        _
      // Predicated region
      $region29: #{fidnet_forward.1} parent=11 // pred_check
        %p475 = pneg %p233
      $region30: #{fidnet_forward.1} parent=11 // pred_check_branch
        %477 = sbr.rel (%p475) target = $region32
      $region31: #{fidnet_forward.1} parent=11 // pred_region
        _
      $region32: #{fidnet_forward.1} parent=11 // pred_fallthru
        _
      // Predicated region
      $region33: #{fidnet_forward.1} parent=11 // pred_check
        %p478 = pneg %p254
      $region34: #{fidnet_forward.1} parent=11 // pred_check_branch
        %480 = sbr.rel (%p478) target = $region36
      $region35: #{fidnet_forward.1} parent=11 // pred_region
        _
      $region36: #{fidnet_forward.1} parent=11 // pred_fallthru
        _
      // Predicated region
      $region37: #{fidnet_forward.1} parent=11 // pred_check
        %p481 = pneg %p275
      $region38: #{fidnet_forward.1} parent=11 // pred_check_branch
        %483 = sbr.rel (%p481) target = $region40
      $region39: #{fidnet_forward.1} parent=11 // pred_region
        _
      $region40: #{fidnet_forward.1} parent=11 // pred_fallthru
        _
      // Predicated region
      $region41: #{fidnet_forward.1} parent=11 // pred_check
        %p484 = pneg %p296
      $region42: #{fidnet_forward.1} parent=11 // pred_check_branch
        %486 = sbr.rel (%p484) target = $region44
      $region43: #{fidnet_forward.1} parent=11 // pred_region
        _
      $region44: #{fidnet_forward.1} parent=11 // pred_fallthru
        _
      // Predicated region
      $region45: #{fidnet_forward.1} parent=11 // pred_check
        %p487 = pneg %p317
      $region46: #{fidnet_forward.1} parent=11 // pred_check_branch
        %489 = sbr.rel (%p487) target = $region48
      $region47: #{fidnet_forward.1} parent=11 // pred_region
        _
      $region48: #{fidnet_forward.1} parent=11 // pred_fallthru
        _
      // Predicated region
      $region49: #{fidnet_forward.1} parent=11 // pred_check
        %p490 = pneg %p338
      $region50: #{fidnet_forward.1} parent=11 // pred_check_branch
        %492 = sbr.rel (%p490) target = $region52
      $region51: #{fidnet_forward.1} parent=11 // pred_region
        _
      $region52: #{fidnet_forward.1} parent=11 // pred_fallthru
        _
      // Predicated region
      $region53: #{fidnet_forward.1} parent=11 // pred_check
        %p493 = pneg %p359
      $region54: #{fidnet_forward.1} parent=11 // pred_check_branch
        %495 = sbr.rel (%p493) target = $region56
      $region55: #{fidnet_forward.1} parent=11 // pred_region
        _
      $region56: #{fidnet_forward.1} parent=11 // pred_fallthru
        _
      // Predicated region
      $region57: #{fidnet_forward.1} parent=11 // pred_check
        %p496 = pneg %p380
      $region58: #{fidnet_forward.1} parent=11 // pred_check_branch
        %498 = sbr.rel (%p496) target = $region60
      $region59: #{fidnet_forward.1} parent=11 // pred_region
        _
      $region60: #{fidnet_forward.1} parent=11 // pred_fallthru
        _
      // Predicated region
      $region61: #{fidnet_forward.1} parent=11 // pred_check
        %p499 = pneg %p401
      $region62: #{fidnet_forward.1} parent=11 // pred_check_branch
        %501 = sbr.rel (%p499) target = $region64
      $region63: #{fidnet_forward.1} parent=11 // pred_region
        _
      $region64: #{fidnet_forward.1} parent=11 // pred_fallthru
        _
      // Predicated region
      $region65: #{fidnet_forward.1} parent=11 // pred_check
        %p502 = pneg %p422
      $region66: #{fidnet_forward.1} parent=11 // pred_check_branch
        %504 = sbr.rel (%p502) target = $region68
      $region67: #{fidnet_forward.1} parent=11 // pred_region
        _
      $region68: #{fidnet_forward.1} parent=11 // pred_fallthru
        _
    $region12: #{fidnet_forward.1} parent=5 // pred_fallthru
      _
    %p505 = scmp.lt.s32.totalorder %s24, 2
    // Predicated region
    $region69: #{fidnet_forward.1} parent=5 // pred_check
      %p506 = pneg %p505
    $region70: #{fidnet_forward.1} parent=5 // pred_check_branch
      %508 = sbr.rel (%p506) target = $region72
    $region71: #{fidnet_forward.1} parent=5 // pred_region
      // Predicated region
      $region73: #{fidnet_forward.1} parent=71 // pred_check
        %p509 = pneg %p44
      $region74: #{fidnet_forward.1} parent=71 // pred_check_branch
        %511 = sbr.rel (%p509) target = $region76
      $region75: #{fidnet_forward.1} parent=71 // pred_region
        %s512 = smul.u32 2, %s24
        %p513 = scmp.lt.s32.totalorder %s512, 3
        %s514 = scalar_select %p513, %s512, 3
        %s515 = smul.addr %s514, 8
        %s516 = scalar_lea.vmem %s0, %s515
        %s517 = smul.u32 2, %s24
      $region76: #{fidnet_forward.1} parent=71 // pred_fallthru
        _
      // Predicated region
      $region77: #{fidnet_forward.1} parent=71 // pred_check
        %p518 = pneg %p70
      $region78: #{fidnet_forward.1} parent=71 // pred_check_branch
        %520 = sbr.rel (%p518) target = $region80
      $region79: #{fidnet_forward.1} parent=71 // pred_region
        %s521 = smul.u32 2, %s24
        %p522 = scmp.lt.s32.totalorder %s521, 3
        %s523 = scalar_select %p522, %s521, 3
        %s524 = smul.addr %s523, 8
        %s525 = scalar_lea.vmem %s1, %s524
        %s526 = smul.u32 2, %s24
      $region80: #{fidnet_forward.1} parent=71 // pred_fallthru
        _
      // Predicated region
      $region81: #{fidnet_forward.1} parent=71 // pred_check
        %p527 = pneg %p96
      $region82: #{fidnet_forward.1} parent=71 // pred_check_branch
        %529 = sbr.rel (%p527) target = $region84
      $region83: #{fidnet_forward.1} parent=71 // pred_region
        %p530 = scmp.lt.s32.totalorder %s24, 1
        %s531 = scalar_select %p530, %s24, 1
        %s532 = smul.addr %s531, 4
        %s533 = smul.addr %s532, 8
        %s534 = scalar_lea.vmem %s2, %s533
      $region84: #{fidnet_forward.1} parent=71 // pred_fallthru
        _
      // Predicated region
      $region85: #{fidnet_forward.1} parent=71 // pred_check
        %p535 = pneg %p122
      $region86: #{fidnet_forward.1} parent=71 // pred_check_branch
        %537 = sbr.rel (%p535) target = $region88
      $region87: #{fidnet_forward.1} parent=71 // pred_region
        %p538 = scmp.lt.s32.totalorder %s24, 1
        %s539 = scalar_select %p538, %s24, 1
        %s540 = smul.addr %s539, 2
        %s541 = smul.addr %s540, 8
        %s542 = scalar_lea.vmem %s3, %s541
      $region88: #{fidnet_forward.1} parent=71 // pred_fallthru
        _
    $region72: #{fidnet_forward.1} parent=5 // pred_fallthru
      _
    %p543 = scmp.le.s32.totalorder 1, %s24
    %p544 = scmp.lt.s32.totalorder %s24, 3
    %p545 = pnand %p543, %p544
    %p546 = pneg %p545
    // Predicated region
    $region89: #{fidnet_forward.1} parent=5 // pred_check
      _
    $region90: #{fidnet_forward.1} parent=5 // pred_check_branch
      %548 = sbr.rel (%p545) target = $region92
    $region91: #{fidnet_forward.1} parent=5 // pred_region
      %s549 = ssub.s32 %s24, 1
      %s550 = smul.u32 2, %s29
      %p551 = scmp.lt.s32.totalorder %s550, 3
      %s552 = scalar_select %p551, %s550, 3
      %s553 = smul.addr %s552, 8
      %s554 = scalar_lea.vmem %s0, %s553
      %p555 = pneg %p50
      %p556 = pneg %p47
      %s557 = smul.u32 2, %s29
      %p558 = scmp.lt.s32.totalorder %s557, 3
      %s559 = scalar_select %p558, %s557, 3
      %s560 = smul.addr %s559, 8
      %s561 = scalar_lea.vmem %s1, %s560
      %p562 = pneg %p76
      %p563 = pneg %p73
      %p564 = scmp.lt.s32.totalorder %s29, 1
      %s565 = scalar_select %p564, %s29, 1
      %s566 = smul.addr %s565, 4
      %s567 = smul.addr %s566, 8
      %s568 = scalar_lea.vmem %s2, %s567
      %p569 = pneg %p102
      %p570 = pneg %p99
      %p571 = scmp.lt.s32.totalorder %s29, 1
      %s572 = scalar_select %p571, %s29, 1
      %s573 = smul.addr %s572, 2
      %s574 = smul.addr %s573, 8
      %s575 = scalar_lea.vmem %s3, %s574
      %p576 = pneg %p128
      %p577 = pneg %p125
      %p578 = pneg %p149
      %p579 = pneg %p146
      %p580 = pneg %p170
      %p581 = pneg %p167
      %p582 = pneg %p191
      %p583 = pneg %p188
      %p584 = pneg %p212
      %p585 = pneg %p209
      %p586 = pneg %p233
      %p587 = pneg %p230
      %p588 = pneg %p254
      %p589 = pneg %p251
      %p590 = pneg %p275
      %p591 = pneg %p272
      %p592 = pneg %p296
      %p593 = pneg %p293
      %p594 = pneg %p317
      %p595 = pneg %p314
      %p596 = pneg %p338
      %p597 = pneg %p335
      %p598 = pneg %p359
      %p599 = pneg %p356
      %p600 = pneg %p380
      %p601 = pneg %p377
      %p602 = pneg %p401
      %p603 = pneg %p398
      %p604 = pneg %p422
      %p605 = pneg %p419
      %p606 = pneg %p448
      %p607 = pneg %p445
      %s608 = smul.u32 2, %s29
      %p609 = scmp.lt.s32.totalorder %s608, 3
      %s610 = scalar_select %p609, %s608, 3
      %s611 = smul.addr %s610, 8
      %s612 = scalar_lea.vmem %s18, %s611
      %s613 = smul.u32 2, %s29
      %p614 = scmp.lt.s32.totalorder %s613, 3
      %s615 = scalar_select %p614, %s613, 3
      %s616 = smul.addr %s615, 8
      %s617 = scalar_lea.vmem %s0, %s616
      %s618 = smul.u32 2, %s29
      %s619 = smul.u32 2, %s29
      %p620 = scmp.lt.s32.totalorder %s619, 3
      %s621 = scalar_select %p620, %s619, 3
      %s622 = smul.addr %s621, 8
      %s623 = scalar_lea.vmem %s1, %s622
      %s624 = smul.u32 2, %s29
      %p625 = scmp.lt.s32.totalorder %s29, 1
      %s626 = scalar_select %p625, %s29, 1
      %s627 = smul.addr %s626, 4
      %s628 = smul.addr %s627, 8
      %s629 = scalar_lea.vmem %s2, %s628
      %p630 = scmp.lt.s32.totalorder %s29, 1
      %s631 = scalar_select %p630, %s29, 1
      %s632 = smul.addr %s631, 2
      %s633 = smul.addr %s632, 8
      %s634 = scalar_lea.vmem %s3, %s633
      %s635 = smul.u32 2, %s29
      %p636 = scmp.lt.s32.totalorder %s635, 3
      %s637 = scalar_select %p636, %s635, 3
      %s638 = smul.addr %s637, 8
      %s639 = scalar_lea.vmem %s18, %s638
      %s640 = smul.u32 2, %s29
      %v642 = vld [vmem:[%s617] sm:$0xff]
      %v643 = vld [vmem:[%s617 + $0x8] sm:$0xff]
      %v644 = vld [vmem:[%s623] sm:$0xff]
      %v645 = vld [vmem:[%s623 + $0x8] sm:$0xff]
      %v646 = vlaneseq
      %v647 = vand.u32 %v646, 127
      %648 = vset.pattern.permute.xlu0 0
      %649 = vperm.xlu0 %648, %v644
      %v650 = vpop.permute.xlu0 %649
      %651 = vset.pattern.permute.xlu0 0
      %652 = vperm.xlu0 %651, %v645
      %v653 = vpop.permute.xlu0 %652
      %vm654 = vcmp.eq.s32.totalorder %v647, %v650
      %vm655 = vcmp.eq.s32.totalorder %v647, %v653
      %v656 = vpack.c.bf16 %v643, %v642
      %v657 = vld [vmem:[%s4] sm:$0x3]
      %v658 = vsel %vm654, 1, 0
      %v659 = vsel %vm655, 1, 0
      %v660 = vcvt.s32.f32 %v658
      %v661 = vcvt.s32.f32 %v659
      %v662 = vpack.c.bf16 %v661, %v660
      %v663 = vld [vmem:[%s5] sm:$0xf]
      %vm664 = vcmask 64512
      %v666 = vsel %vm664, %v662, 0
      %vm668 = vcmask 1043456
      %v670 = vsel %vm668, %v663, 0
      %672 = vmatprep.subr.bf16.mxu0 0
      %673 = vmatpush1.bf16.msra.mxu0 %v670
      %674 = vmatprep.subr.bf16.mxu0 0
      %675 = vmatpush1.bf16.msra.mxu0 0
      %676 = vmatprep.subr.bf16.mxu0 0
      %677 = vmatpush1.bf16.msra.mxu0 0
      %678 = vmatprep.subr.bf16.mxu0 0
      %679 = vmatpush1.bf16.msra.mxu0 0
      %680 = vmatprep.subr.bf16.mxu0 0
      %681 = vmatpush1.bf16.msra.mxu0 0
      %682 = vmatprep.subr.bf16.mxu0 0
      %683 = vmatpush1.bf16.msra.mxu0 0
      %684 = vmatprep.subr.bf16.mxu0 0
      %685 = vmatpush1.bf16.msra.mxu0 0
      %686 = vmatprep.subr.bf16.mxu0 0
      %687 = vmatpush1.bf16.msra.mxu0 0
      %688 = vmatprep.subr.bf16.mxu0 0
      %689 = vmatpush1.bf16.msra.mxu0 0
      %690 = vmatprep.subr.bf16.mxu0 0
      %691 = vmatpush1.bf16.msra.mxu0 0
      %692 = vmatprep.subr.bf16.mxu0 0
      %693 = vmatpush1.bf16.msra.mxu0 0
      %694 = vmatprep.subr.bf16.mxu0 0
      %695 = vmatpush1.bf16.msra.mxu0 0
      %696 = vmatprep.subr.bf16.mxu0 0
      %697 = vmatpush1.bf16.msra.mxu0 0
      %698 = vmatprep.subr.bf16.mxu0 0
      %699 = vmatpush1.bf16.msra.mxu0 0
      %700 = vmatprep.subr.bf16.mxu0 0
      %701 = vmatpush1.bf16.msra.mxu0 0
      %702 = vmatprep.subr.bf16.mxu0 0
      %703 = vmatpush1.bf16.msra.mxu0 0
      %704 = vmatprep.mubr.bf16.mxu0 0
      %705 = vmatmul.mubr.bf16.gmra.mrb[0].mxu0 %v666
      %v706 = vpop.f32.mrb[0].mxu0
      %v707 = vadd.f32 0.0, %v706
      %v708 = vpop.f32.mrb[0].mxu0
      %v709 = vpop.f32.mrb[0].mxu0
      %v710 = vadd.f32 0.0, %v709
      %v711 = vpop.f32.mrb[0].mxu0
      %712 = vdwg.mxu0
      %vm713 = vcmask 31744
      %v715 = vsel %vm713, %v656, 0
      %vm717 = vcmask 1041408
      %v719 = vsel %vm717, %v657, 0
      %721 = vmatprep.subr.bf16.mxu0 0
      %722 = vmatpush1.bf16.msra.mxu0 %v719
      %723 = vmatprep.subr.bf16.mxu0 0
      %724 = vmatpush1.bf16.msra.mxu0 0
      %725 = vmatprep.subr.bf16.mxu0 0
      %726 = vmatpush1.bf16.msra.mxu0 0
      %727 = vmatprep.subr.bf16.mxu0 0
      %728 = vmatpush1.bf16.msra.mxu0 0
      %729 = vmatprep.subr.bf16.mxu0 0
      %730 = vmatpush1.bf16.msra.mxu0 0
      %731 = vmatprep.subr.bf16.mxu0 0
      %732 = vmatpush1.bf16.msra.mxu0 0
      %733 = vmatprep.subr.bf16.mxu0 0
      %734 = vmatpush1.bf16.msra.mxu0 0
      %735 = vmatprep.subr.bf16.mxu0 0
      %736 = vmatpush1.bf16.msra.mxu0 0
      %737 = vmatprep.subr.bf16.mxu0 0
      %738 = vmatpush1.bf16.msra.mxu0 0
      %739 = vmatprep.subr.bf16.mxu0 0
      %740 = vmatpush1.bf16.msra.mxu0 0
      %741 = vmatprep.subr.bf16.mxu0 0
      %742 = vmatpush1.bf16.msra.mxu0 0
      %743 = vmatprep.subr.bf16.mxu0 0
      %744 = vmatpush1.bf16.msra.mxu0 0
      %745 = vmatprep.subr.bf16.mxu0 0
      %746 = vmatpush1.bf16.msra.mxu0 0
      %747 = vmatprep.subr.bf16.mxu0 0
      %748 = vmatpush1.bf16.msra.mxu0 0
      %749 = vmatprep.subr.bf16.mxu0 0
      %750 = vmatpush1.bf16.msra.mxu0 0
      %751 = vmatprep.subr.bf16.mxu0 0
      %752 = vmatpush1.bf16.msra.mxu0 0
      %753 = vmatprep.mubr.bf16.mxu0 0
      %754 = vmatmul.mubr.bf16.gmra.mrb[0].mxu0 %v715
      %v755 = vpop.f32.mrb[0].mxu0
      %v756 = vadd.f32 %v707, %v755
      %v757 = vpop.f32.mrb[0].mxu0
      %v758 = vpop.f32.mrb[0].mxu0
      %v759 = vadd.f32 %v710, %v758
      %v760 = vpop.f32.mrb[0].mxu0
      %761 = vdwg.mxu0
      %v762 = vld [vmem:[%s6] sm:$0x1]
      %v764 = vlaneseq
      %v765 = vshrl.u32 %v764, 7
      %v766 = vsub.s32 0, %v765
      %v767 = vrot.slane %v762, %v766
      %v769 = vadd.f32 %v756, %v767
      %v770 = vadd.f32 %v759, %v767
      %v771 = vmax.f32 %v769, 0.0
      %v772 = vmax.f32 %v770, 0.0
      %v773 = vld [vmem:[%s7] sm:$0x1]
      %v776 = vrot.slane %v771, 7
      %v777 = vrot.slane %v772, 7
      %vm780 = vcmask 1040384
      %v781 = vsel %vm780, %v773, %v776
      %v782 = vsel %vm780, %v773, %v777
      %v783 = vsel %vm780, %v776, 0.0
      %v784 = vsel %vm780, %v777, 0.0
      %v785 = vld [vmem:[%s629] sm:$0xff]
      %v786 = vld [vmem:[%s629 + $0x8] sm:$0xff]
      %v787 = vld [vmem:[%s629 + $0x10] sm:$0xff]
      %v788 = vld [vmem:[%s629 + $0x18] sm:$0xff]
      %v789 = vld [vmem:[%s17] sm:$0x7f]
      %v790 = vpack.c.bf16 %v783, %v781
      %v791 = vpack.c.bf16 %v784, %v782
      %v792 = vld [vmem:[%s12] sm:$0xf]
      %v793 = vld [vmem:[%s12 + $0x4] sm:$0xf]
      %v794 = vld [vmem:[%s12 + $0x8] sm:$0xf]
      %v795 = vld [vmem:[%s12 + $0xc] sm:$0xf]
      %v796 = vld [vmem:[%s13] sm:$0x1]
      %v798 = vlaneseq
      %v799 = vshrl.u32 %v798, 7
      %v800 = vsub.s32 0, %v799
      %v801 = vrot.slane %v796, %v800
      %v807 = vunpack.c.l.b16 %v792
      %v808 = vunpack.c.l.b16 %v793
      %v809 = vunpack.c.l.b16 %v794
      %v810 = vunpack.c.l.b16 %v795
      %v811 = vpack.c.b16 %v808, %v807
      %v812 = vpack.c.b16 %v810, %v809
      %vm815 = vcmask 261120
      %v817 = vsel %vm815, %v790, 0
      %v820 = vsel %vm815, %v791, 0
      %822 = vmatprep.subr.bf16.mxu0 0
      %823 = vmatpush1.bf16.msra.mxu0 %v811
      %824 = vmatprep.subr.bf16.mxu0 0
      %825 = vmatpush1.bf16.msra.mxu0 %v812
      %826 = vmatprep.subr.bf16.mxu0 0
      %827 = vmatpush1.bf16.msra.mxu0 0
      %828 = vmatprep.subr.bf16.mxu0 0
      %829 = vmatpush1.bf16.msra.mxu0 0
      %830 = vmatprep.subr.bf16.mxu0 0
      %831 = vmatpush1.bf16.msra.mxu0 0
      %832 = vmatprep.subr.bf16.mxu0 0
      %833 = vmatpush1.bf16.msra.mxu0 0
      %834 = vmatprep.subr.bf16.mxu0 0
      %835 = vmatpush1.bf16.msra.mxu0 0
      %836 = vmatprep.subr.bf16.mxu0 0
      %837 = vmatpush1.bf16.msra.mxu0 0
      %838 = vmatprep.subr.bf16.mxu0 0
      %839 = vmatpush1.bf16.msra.mxu0 0
      %840 = vmatprep.subr.bf16.mxu0 0
      %841 = vmatpush1.bf16.msra.mxu0 0
      %842 = vmatprep.subr.bf16.mxu0 0
      %843 = vmatpush1.bf16.msra.mxu0 0
      %844 = vmatprep.subr.bf16.mxu0 0
      %845 = vmatpush1.bf16.msra.mxu0 0
      %846 = vmatprep.subr.bf16.mxu0 0
      %847 = vmatpush1.bf16.msra.mxu0 0
      %848 = vmatprep.subr.bf16.mxu0 0
      %849 = vmatpush1.bf16.msra.mxu0 0
      %850 = vmatprep.subr.bf16.mxu0 0
      %851 = vmatpush1.bf16.msra.mxu0 0
      %852 = vmatprep.subr.bf16.mxu0 0
      %853 = vmatpush1.bf16.msra.mxu0 0
      %854 = vmatprep.mubr.bf16.mxu0 0
      %855 = vmatmul.mubr.bf16.gmra.mrb[0].mxu0 %v817
      %v856 = vpop.f32.mrb[0].mxu0
      %v857 = vadd.f32 %v801, %v856
      %v858 = vpop.f32.mrb[0].mxu0
      %v859 = vpop.f32.mrb[0].mxu0
      %v860 = vadd.f32 %v801, %v859
      %v861 = vpop.f32.mrb[0].mxu0
      %862 = vmatprep.mubr.bf16.mxu0 0
      %863 = vmatmul.mubr.bf16.gmra.mrb[0].mxu0 %v820
      %v864 = vpop.f32.mrb[0].mxu0
      %v865 = vadd.f32 %v801, %v864
      %v866 = vpop.f32.mrb[0].mxu0
      %v867 = vpop.f32.mrb[0].mxu0
      %v868 = vadd.f32 %v801, %v867
      %v869 = vpop.f32.mrb[0].mxu0
      %870 = vdwg.mxu0
      %v871 = vpack.c.bf16 %v860, %v857
      %v872 = vpack.c.bf16 %v868, %v865
      %875 = vrot.lane.b32.xlu0 %v871, 96
      %v876 = vpop.permute.xlu0 %875
      %877 = vrot.lane.b32.xlu0 %v872, 96
      %v878 = vpop.permute.xlu0 %877
      %vm879 = vcmask 130048
      %v881 = vsel %vm879, %v871, 0
      %v884 = vsel %vm879, %v872, 0
      %v887 = vsel %vm879, %v876, 0
      %v890 = vsel %vm879, %v878, 0
      %892 = vmatprep.subr.bf16.mxu0 0
      %893 = vmatpush1.bf16.xpose.msra.mxu0 %v887
      %894 = vmatprep.subr.bf16.mxu0 0
      %895 = vmatpush1.bf16.xpose.msra.mxu0 %v890
      %896 = vmatprep.subr.bf16.mxu0 0
      %897 = vmatpush1.bf16.xpose.msra.mxu0 0
      %898 = vmatprep.subr.bf16.mxu0 0
      %899 = vmatpush1.bf16.xpose.msra.mxu0 0
      %900 = vmatprep.subr.bf16.mxu0 0
      %901 = vmatpush1.bf16.xpose.msra.mxu0 0
      %902 = vmatprep.subr.bf16.mxu0 0
      %903 = vmatpush1.bf16.xpose.msra.mxu0 0
      %904 = vmatprep.subr.bf16.mxu0 0
      %905 = vmatpush1.bf16.xpose.msra.mxu0 0
      %906 = vmatprep.subr.bf16.mxu0 0
      %907 = vmatpush1.bf16.xpose.msra.mxu0 0
      %908 = vmatprep.subr.bf16.mxu0 0
      %909 = vmatpush1.bf16.xpose.msra.mxu0 0
      %910 = vmatprep.subr.bf16.mxu0 0
      %911 = vmatpush1.bf16.xpose.msra.mxu0 0
      %912 = vmatprep.subr.bf16.mxu0 0
      %913 = vmatpush1.bf16.xpose.msra.mxu0 0
      %914 = vmatprep.subr.bf16.mxu0 0
      %915 = vmatpush1.bf16.xpose.msra.mxu0 0
      %916 = vmatprep.subr.bf16.mxu0 0
      %917 = vmatpush1.bf16.xpose.msra.mxu0 0
      %918 = vmatprep.subr.bf16.mxu0 0
      %919 = vmatpush1.bf16.xpose.msra.mxu0 0
      %920 = vmatprep.subr.bf16.mxu0 0
      %921 = vmatpush1.bf16.xpose.msra.mxu0 0
      %922 = vmatprep.subr.bf16.mxu0 0
      %923 = vmatpush1.bf16.xpose.msra.mxu0 0
      %924 = vmatprep.mubr.bf16.mxu0 0
      %925 = vmatmul.mubr.bf16.gmra.mrb[0].mxu0 %v881
      %v926 = vpop.f32.mrb[0].mxu0
      %v927 = vadd.f32 0.0, %v926
      %v928 = vpop.f32.mrb[0].mxu0
      %v929 = vpop.f32.mrb[0].mxu0
      %v930 = vadd.f32 0.0, %v929
      %v931 = vpop.f32.mrb[0].mxu0
      %932 = vmatprep.mubr.bf16.mxu0 0
      %933 = vmatmul.mubr.bf16.gmra.mrb[0].mxu0 %v884
      %v934 = vpop.f32.mrb[0].mxu0
      %v935 = vadd.f32 0.0, %v934
      %v936 = vpop.f32.mrb[0].mxu0
      %v937 = vpop.f32.mrb[0].mxu0
      %v938 = vadd.f32 0.0, %v937
      %v939 = vpop.f32.mrb[0].mxu0
      %940 = vdwg.mxu0
      %v941 = vmul.f32 %v927, 0.25
      %v942 = vmul.f32 %v930, 0.25
      %v943 = vmul.f32 %v935, 0.25
      %v944 = vmul.f32 %v938, 0.25
      %v945 = vadd.f32 %v941, %v785
      %v946 = vadd.f32 %v942, %v786
      %v947 = vadd.f32 %v943, %v787
      %v948 = vadd.f32 %v944, %v788
      %v949 = vsel %vm815, %v945, -inf
      %950 = vmax.xlane.f32.xlu0 %v949
      %v951 = vpop.xlane.xlu0 %950
      %v952 = vsel %vm815, %v946, -inf
      %953 = vmax.xlane.f32.xlu0 %v952
      %v954 = vpop.xlane.xlu0 %953
      %v955 = vsel %vm815, %v947, -inf
      %956 = vmax.xlane.f32.xlu0 %v955
      %v957 = vpop.xlane.xlu0 %956
      %v958 = vsel %vm815, %v948, -inf
      %959 = vmax.xlane.f32.xlu0 %v958
      %v960 = vpop.xlane.xlu0 %959
      %v961 = vsub.f32 %v945, %v951
      %v962 = vsub.f32 %v946, %v954
      %v963 = vsub.f32 %v947, %v957
      %v964 = vsub.f32 %v948, %v960
      %v965 = vmul.f32 %v961, 1.442695
      %v966 = vpow.pop %v965
      %v967 = vmul.f32 %v962, 1.442695
      %v968 = vpow.pop %v967
      %v969 = vmul.f32 %v963, 1.442695
      %v970 = vpow.pop %v969
      %v971 = vmul.f32 %v964, 1.442695
      %v972 = vpow.pop %v971
      %v973 = vsel %vm815, %v966, 0.0
      %974 = vadd.xlane.f32.xlu0 %v973
      %v975 = vpop.xlane.xlu0 %974
      %v976 = vsel %vm815, %v968, 0.0
      %977 = vadd.xlane.f32.xlu0 %v976
      %v978 = vpop.xlane.xlu0 %977
      %v979 = vsel %vm815, %v970, 0.0
      %980 = vadd.xlane.f32.xlu0 %v979
      %v981 = vpop.xlane.xlu0 %980
      %v982 = vsel %vm815, %v972, 0.0
      %983 = vadd.xlane.f32.xlu0 %v982
      %v984 = vpop.xlane.xlu0 %983
      %v985 = vrcp.pop %v975
      %v986 = vrcp.pop %v978
      %v987 = vrcp.pop %v981
      %v988 = vrcp.pop %v984
      %v989 = vmul.f32 %v966, %v985
      %v990 = vmul.f32 %v968, %v986
      %v991 = vmul.f32 %v970, %v987
      %v992 = vmul.f32 %v972, %v988
      %v993 = vpack.c.bf16 %v990, %v989
      %v994 = vpack.c.bf16 %v992, %v991
      %995 = vrot.lane.b32.xlu0 %v871, 64
      %v996 = vpop.permute.xlu0 %995
      %997 = vrot.lane.b32.xlu0 %v872, 64
      %v998 = vpop.permute.xlu0 %997
      %v1002 = vsel %vm815, %v993, 0
      %v1005 = vsel %vm815, %v994, 0
      %1007 = vmatprep.subr.bf16.mxu0 0
      %1008 = vmatpush1.bf16.msra.mxu0 %v996
      %1009 = vmatprep.subr.bf16.mxu0 0
      %1010 = vmatpush1.bf16.msra.mxu0 %v998
      %1011 = vmatprep.subr.bf16.mxu0 0
      %1012 = vmatpush1.bf16.msra.mxu0 0
      %1013 = vmatprep.subr.bf16.mxu0 0
      %1014 = vmatpush1.bf16.msra.mxu0 0
      %1015 = vmatprep.subr.bf16.mxu0 0
      %1016 = vmatpush1.bf16.msra.mxu0 0
      %1017 = vmatprep.subr.bf16.mxu0 0
      %1018 = vmatpush1.bf16.msra.mxu0 0
      %1019 = vmatprep.subr.bf16.mxu0 0
      %1020 = vmatpush1.bf16.msra.mxu0 0
      %1021 = vmatprep.subr.bf16.mxu0 0
      %1022 = vmatpush1.bf16.msra.mxu0 0
      %1023 = vmatprep.subr.bf16.mxu0 0
      %1024 = vmatpush1.bf16.msra.mxu0 0
      %1025 = vmatprep.subr.bf16.mxu0 0
      %1026 = vmatpush1.bf16.msra.mxu0 0
      %1027 = vmatprep.subr.bf16.mxu0 0
      %1028 = vmatpush1.bf16.msra.mxu0 0
      %1029 = vmatprep.subr.bf16.mxu0 0
      %1030 = vmatpush1.bf16.msra.mxu0 0
      %1031 = vmatprep.subr.bf16.mxu0 0
      %1032 = vmatpush1.bf16.msra.mxu0 0
      %1033 = vmatprep.subr.bf16.mxu0 0
      %1034 = vmatpush1.bf16.msra.mxu0 0
      %1035 = vmatprep.subr.bf16.mxu0 0
      %1036 = vmatpush1.bf16.msra.mxu0 0
      %1037 = vmatprep.subr.bf16.mxu0 0
      %1038 = vmatpush1.bf16.msra.mxu0 0
      %1039 = vmatprep.mubr.bf16.mxu0 0
      %1040 = vmatmul.mubr.bf16.gmra.mrb[0].mxu0 %v1002
      %v1041 = vpop.f32.mrb[0].mxu0
      %v1042 = vadd.f32 0.0, %v1041
      %v1043 = vpop.f32.mrb[0].mxu0
      %v1044 = vpop.f32.mrb[0].mxu0
      %v1045 = vadd.f32 0.0, %v1044
      %v1046 = vpop.f32.mrb[0].mxu0
      %1047 = vmatprep.mubr.bf16.mxu0 0
      %1048 = vmatmul.mubr.bf16.gmra.mrb[0].mxu0 %v1005
      %v1049 = vpop.f32.mrb[0].mxu0
      %v1050 = vadd.f32 0.0, %v1049
      %v1051 = vpop.f32.mrb[0].mxu0
      %v1052 = vpop.f32.mrb[0].mxu0
      %v1053 = vadd.f32 0.0, %v1052
      %v1054 = vpop.f32.mrb[0].mxu0
      %1055 = vdwg.mxu0
      %1056 = vrot.lane.b32.xlu0 %v871, 112
      %v1057 = vpop.permute.xlu0 %1056
      %1058 = vrot.lane.b32.xlu0 %v872, 112
      %v1059 = vpop.permute.xlu0 %1058
      %1060 = vrot.lane.b32.xlu0 %v871, 80
      %v1061 = vpop.permute.xlu0 %1060
      %1062 = vrot.lane.b32.xlu0 %v872, 80
      %v1063 = vpop.permute.xlu0 %1062
      %v1065 = vsel %vm879, %v1057, 0
      %v1068 = vsel %vm879, %v1059, 0
      %v1071 = vsel %vm879, %v1061, 0
      %v1074 = vsel %vm879, %v1063, 0
      %1076 = vmatprep.subr.bf16.mxu0 0
      %1077 = vmatpush1.bf16.xpose.msra.mxu0 %v1071
      %1078 = vmatprep.subr.bf16.mxu0 0
      %1079 = vmatpush1.bf16.xpose.msra.mxu0 %v1074
      %1080 = vmatprep.subr.bf16.mxu0 0
      %1081 = vmatpush1.bf16.xpose.msra.mxu0 0
      %1082 = vmatprep.subr.bf16.mxu0 0
      %1083 = vmatpush1.bf16.xpose.msra.mxu0 0
      %1084 = vmatprep.subr.bf16.mxu0 0
      %1085 = vmatpush1.bf16.xpose.msra.mxu0 0
      %1086 = vmatprep.subr.bf16.mxu0 0
      %1087 = vmatpush1.bf16.xpose.msra.mxu0 0
      %1088 = vmatprep.subr.bf16.mxu0 0
      %1089 = vmatpush1.bf16.xpose.msra.mxu0 0
      %1090 = vmatprep.subr.bf16.mxu0 0
      %1091 = vmatpush1.bf16.xpose.msra.mxu0 0
      %1092 = vmatprep.subr.bf16.mxu0 0
      %1093 = vmatpush1.bf16.xpose.msra.mxu0 0
      %1094 = vmatprep.subr.bf16.mxu0 0
      %1095 = vmatpush1.bf16.xpose.msra.mxu0 0
      %1096 = vmatprep.subr.bf16.mxu0 0
      %1097 = vmatpush1.bf16.xpose.msra.mxu0 0
      %1098 = vmatprep.subr.bf16.mxu0 0
      %1099 = vmatpush1.bf16.xpose.msra.mxu0 0
      %1100 = vmatprep.subr.bf16.mxu0 0
      %1101 = vmatpush1.bf16.xpose.msra.mxu0 0
      %1102 = vmatprep.subr.bf16.mxu0 0
      %1103 = vmatpush1.bf16.xpose.msra.mxu0 0
      %1104 = vmatprep.subr.bf16.mxu0 0
      %1105 = vmatpush1.bf16.xpose.msra.mxu0 0
      %1106 = vmatprep.subr.bf16.mxu0 0
      %1107 = vmatpush1.bf16.xpose.msra.mxu0 0
      %1108 = vmatprep.mubr.bf16.mxu0 0
      %1109 = vmatmul.mubr.bf16.gmra.mrb[0].mxu0 %v1065
      %v1110 = vpop.f32.mrb[0].mxu0
      %v1111 = vadd.f32 0.0, %v1110
      %v1112 = vpop.f32.mrb[0].mxu0
      %v1113 = vpop.f32.mrb[0].mxu0
      %v1114 = vadd.f32 0.0, %v1113
      %v1115 = vpop.f32.mrb[0].mxu0
      %1116 = vmatprep.mubr.bf16.mxu0 0
      %1117 = vmatmul.mubr.bf16.gmra.mrb[0].mxu0 %v1068
      %v1118 = vpop.f32.mrb[0].mxu0
      %v1119 = vadd.f32 0.0, %v1118
      %v1120 = vpop.f32.mrb[0].mxu0
      %v1121 = vpop.f32.mrb[0].mxu0
      %v1122 = vadd.f32 0.0, %v1121
      %v1123 = vpop.f32.mrb[0].mxu0
      %1124 = vdwg.mxu0
      %v1125 = vmul.f32 %v1111, 0.25
      %v1126 = vmul.f32 %v1114, 0.25
      %v1127 = vmul.f32 %v1119, 0.25
      %v1128 = vmul.f32 %v1122, 0.25
      %v1129 = vadd.f32 %v1125, %v785
      %v1130 = vadd.f32 %v1126, %v786
      %v1131 = vadd.f32 %v1127, %v787
      %v1132 = vadd.f32 %v1128, %v788
      %v1133 = vsel %vm815, %v1129, -inf
      %1134 = vmax.xlane.f32.xlu0 %v1133
      %v1135 = vpop.xlane.xlu0 %1134
      %v1136 = vsel %vm815, %v1130, -inf
      %1137 = vmax.xlane.f32.xlu0 %v1136
      %v1138 = vpop.xlane.xlu0 %1137
      %v1139 = vsel %vm815, %v1131, -inf
      %1140 = vmax.xlane.f32.xlu0 %v1139
      %v1141 = vpop.xlane.xlu0 %1140
      %v1142 = vsel %vm815, %v1132, -inf
      %1143 = vmax.xlane.f32.xlu0 %v1142
      %v1144 = vpop.xlane.xlu0 %1143
      %v1145 = vsub.f32 %v1129, %v1135
      %v1146 = vsub.f32 %v1130, %v1138
      %v1147 = vsub.f32 %v1131, %v1141
      %v1148 = vsub.f32 %v1132, %v1144
      %v1149 = vmul.f32 %v1145, 1.442695
      %v1150 = vpow.pop %v1149
      %v1151 = vmul.f32 %v1146, 1.442695
      %v1152 = vpow.pop %v1151
      %v1153 = vmul.f32 %v1147, 1.442695
      %v1154 = vpow.pop %v1153
      %v1155 = vmul.f32 %v1148, 1.442695
      %v1156 = vpow.pop %v1155
      %v1157 = vsel %vm815, %v1150, 0.0
      %1158 = vadd.xlane.f32.xlu0 %v1157
      %v1159 = vpop.xlane.xlu0 %1158
      %v1160 = vsel %vm815, %v1152, 0.0
      %1161 = vadd.xlane.f32.xlu0 %v1160
      %v1162 = vpop.xlane.xlu0 %1161
      %v1163 = vsel %vm815, %v1154, 0.0
      %1164 = vadd.xlane.f32.xlu0 %v1163
      %v1165 = vpop.xlane.xlu0 %1164
      %v1166 = vsel %vm815, %v1156, 0.0
      %1167 = vadd.xlane.f32.xlu0 %v1166
      %v1168 = vpop.xlane.xlu0 %1167
      %v1169 = vrcp.pop %v1159
      %v1170 = vrcp.pop %v1162
      %v1171 = vrcp.pop %v1165
      %v1172 = vrcp.pop %v1168
      %v1173 = vmul.f32 %v1150, %v1169
      %v1174 = vmul.f32 %v1152, %v1170
      %v1175 = vmul.f32 %v1154, %v1171
      %v1176 = vmul.f32 %v1156, %v1172
      %v1177 = vpack.c.bf16 %v1174, %v1173
      %v1178 = vpack.c.bf16 %v1176, %v1175
      %1179 = vrot.lane.b32.xlu0 %v871, 48
      %v1180 = vpop.permute.xlu0 %1179
      %1181 = vrot.lane.b32.xlu0 %v872, 48
      %v1182 = vpop.permute.xlu0 %1181
      %v1186 = vsel %vm815, %v1177, 0
      %v1189 = vsel %vm815, %v1178, 0
      %1191 = vmatprep.subr.bf16.mxu0 0
      %1192 = vmatpush1.bf16.msra.mxu0 %v1180
      %1193 = vmatprep.subr.bf16.mxu0 0
      %1194 = vmatpush1.bf16.msra.mxu0 %v1182
      %1195 = vmatprep.subr.bf16.mxu0 0
      %1196 = vmatpush1.bf16.msra.mxu0 0
      %1197 = vmatprep.subr.bf16.mxu0 0
      %1198 = vmatpush1.bf16.msra.mxu0 0
      %1199 = vmatprep.subr.bf16.mxu0 0
      %1200 = vmatpush1.bf16.msra.mxu0 0
      %1201 = vmatprep.subr.bf16.mxu0 0
      %1202 = vmatpush1.bf16.msra.mxu0 0
      %1203 = vmatprep.subr.bf16.mxu0 0
      %1204 = vmatpush1.bf16.msra.mxu0 0
      %1205 = vmatprep.subr.bf16.mxu0 0
      %1206 = vmatpush1.bf16.msra.mxu0 0
      %1207 = vmatprep.subr.bf16.mxu0 0
      %1208 = vmatpush1.bf16.msra.mxu0 0
      %1209 = vmatprep.subr.bf16.mxu0 0
      %1210 = vmatpush1.bf16.msra.mxu0 0
      %1211 = vmatprep.subr.bf16.mxu0 0
      %1212 = vmatpush1.bf16.msra.mxu0 0
      %1213 = vmatprep.subr.bf16.mxu0 0
      %1214 = vmatpush1.bf16.msra.mxu0 0
      %1215 = vmatprep.subr.bf16.mxu0 0
      %1216 = vmatpush1.bf16.msra.mxu0 0
      %1217 = vmatprep.subr.bf16.mxu0 0
      %1218 = vmatpush1.bf16.msra.mxu0 0
      %1219 = vmatprep.subr.bf16.mxu0 0
      %1220 = vmatpush1.bf16.msra.mxu0 0
      %1221 = vmatprep.subr.bf16.mxu0 0
      %1222 = vmatpush1.bf16.msra.mxu0 0
      %1223 = vmatprep.mubr.bf16.mxu0 0
      %1224 = vmatmul.mubr.bf16.gmra.mrb[0].mxu0 %v1186
      %v1225 = vpop.f32.mrb[0].mxu0
      %v1226 = vadd.f32 0.0, %v1225
      %v1227 = vpop.f32.mrb[0].mxu0
      %v1228 = vpop.f32.mrb[0].mxu0
      %v1229 = vadd.f32 0.0, %v1228
      %v1230 = vpop.f32.mrb[0].mxu0
      %1231 = vmatprep.mubr.bf16.mxu0 0
      %1232 = vmatmul.mubr.bf16.gmra.mrb[0].mxu0 %v1189
      %v1233 = vpop.f32.mrb[0].mxu0
      %v1234 = vadd.f32 0.0, %v1233
      %v1235 = vpop.f32.mrb[0].mxu0
      %v1236 = vpop.f32.mrb[0].mxu0
      %v1237 = vadd.f32 0.0, %v1236
      %v1238 = vpop.f32.mrb[0].mxu0
      %1239 = vdwg.mxu0
      %1244 = vrot.lane.b32.xlu0 %v1226, 16
      %v1245 = vpop.permute.xlu0 %1244
      %1246 = vrot.lane.b32.xlu0 %v1229, 16
      %v1247 = vpop.permute.xlu0 %1246
      %1248 = vrot.lane.b32.xlu0 %v1234, 16
      %v1249 = vpop.permute.xlu0 %1248
      %1250 = vrot.lane.b32.xlu0 %v1237, 16
      %v1251 = vpop.permute.xlu0 %1250
      %v1256 = vsel %vm879, %v1042, %v1245
      %v1257 = vsel %vm879, %v1045, %v1247
      %v1258 = vsel %vm879, %v1050, %v1249
      %v1259 = vsel %vm879, %v1053, %v1251
      %v1260 = vpack.c.bf16 %v1257, %v1256
      %v1261 = vpack.c.bf16 %v1259, %v1258
      %v1262 = vld [vmem:[%s14] sm:$0xf]
      %v1263 = vld [vmem:[%s14 + $0x4] sm:$0xf]
      %v1264 = vld [vmem:[%s14 + $0x8] sm:$0xf]
      %v1265 = vld [vmem:[%s14 + $0xc] sm:$0xf]
      %v1266 = vlaneseq
      %v1267 = vshrl.u32 %v1266, 7
      %v1268 = vsub.s32 0, %v1267
      %v1269 = vrot.slane %v789, %v1268
      %v1274 = vunpack.c.l.b16 %v1262
      %v1275 = vunpack.c.l.b16 %v1263
      %v1276 = vunpack.c.l.b16 %v1264
      %v1277 = vunpack.c.l.b16 %v1265
      %v1278 = vpack.c.b16 %v1275, %v1274
      %v1279 = vpack.c.b16 %v1277, %v1276
      %v1283 = vsel %vm815, %v1260, 0
      %v1286 = vsel %vm815, %v1261, 0
      %1288 = vmatprep.subr.bf16.mxu0 0
      %1289 = vmatpush1.bf16.msra.mxu0 %v1278
      %1290 = vmatprep.subr.bf16.mxu0 0
      %1291 = vmatpush1.bf16.msra.mxu0 %v1279
      %1292 = vmatprep.subr.bf16.mxu0 0
      %1293 = vmatpush1.bf16.msra.mxu0 0
      %1294 = vmatprep.subr.bf16.mxu0 0
      %1295 = vmatpush1.bf16.msra.mxu0 0
      %1296 = vmatprep.subr.bf16.mxu0 0
      %1297 = vmatpush1.bf16.msra.mxu0 0
      %1298 = vmatprep.subr.bf16.mxu0 0
      %1299 = vmatpush1.bf16.msra.mxu0 0
      %1300 = vmatprep.subr.bf16.mxu0 0
      %1301 = vmatpush1.bf16.msra.mxu0 0
      %1302 = vmatprep.subr.bf16.mxu0 0
      %1303 = vmatpush1.bf16.msra.mxu0 0
      %1304 = vmatprep.subr.bf16.mxu0 0
      %1305 = vmatpush1.bf16.msra.mxu0 0
      %1306 = vmatprep.subr.bf16.mxu0 0
      %1307 = vmatpush1.bf16.msra.mxu0 0
      %1308 = vmatprep.subr.bf16.mxu0 0
      %1309 = vmatpush1.bf16.msra.mxu0 0
      %1310 = vmatprep.subr.bf16.mxu0 0
      %1311 = vmatpush1.bf16.msra.mxu0 0
      %1312 = vmatprep.subr.bf16.mxu0 0
      %1313 = vmatpush1.bf16.msra.mxu0 0
      %1314 = vmatprep.subr.bf16.mxu0 0
      %1315 = vmatpush1.bf16.msra.mxu0 0
      %1316 = vmatprep.subr.bf16.mxu0 0
      %1317 = vmatpush1.bf16.msra.mxu0 0
      %1318 = vmatprep.subr.bf16.mxu0 0
      %1319 = vmatpush1.bf16.msra.mxu0 0
      %1320 = vmatprep.mubr.bf16.mxu0 0
      %1321 = vmatmul.mubr.bf16.gmra.mrb[0].mxu0 %v1283
      %v1322 = vpop.f32.mrb[0].mxu0
      %v1323 = vadd.f32 %v1269, %v1322
      %v1324 = vpop.f32.mrb[0].mxu0
      %v1325 = vpop.f32.mrb[0].mxu0
      %v1326 = vadd.f32 %v1269, %v1325
      %v1327 = vpop.f32.mrb[0].mxu0
      %1328 = vmatprep.mubr.bf16.mxu0 0
      %1329 = vmatmul.mubr.bf16.gmra.mrb[0].mxu0 %v1286
      %v1330 = vpop.f32.mrb[0].mxu0
      %v1331 = vadd.f32 %v1269, %v1330
      %v1332 = vpop.f32.mrb[0].mxu0
      %v1333 = vpop.f32.mrb[0].mxu0
      %v1334 = vadd.f32 %v1269, %v1333
      %v1335 = vpop.f32.mrb[0].mxu0
      %1336 = vdwg.mxu0
      %v1337 = vadd.f32 %v781, %v1323
      %v1338 = vadd.f32 %v783, %v1326
      %v1339 = vadd.f32 %v782, %v1331
      %v1340 = vadd.f32 %v784, %v1334
      %v1341 = vsel %vm815, %v1337, 0.0
      %1342 = vadd.xlane.f32.xlu0 %v1341
      %v1343 = vpop.xlane.xlu0 %1342
      %v1344 = vsel %vm815, %v1338, 0.0
      %1345 = vadd.xlane.f32.xlu0 %v1344
      %v1346 = vpop.xlane.xlu0 %1345
      %v1347 = vsel %vm815, %v1339, 0.0
      %1348 = vadd.xlane.f32.xlu0 %v1347
      %v1349 = vpop.xlane.xlu0 %1348
      %v1350 = vsel %vm815, %v1340, 0.0
      %1351 = vadd.xlane.f32.xlu0 %v1350
      %v1352 = vpop.xlane.xlu0 %1351
      %v1353 = vrcp.pop 32.0
      %v1354 = vmul.f32 %v1343, %v1353
      %v1355 = vmul.f32 %v1346, %v1353
      %v1356 = vmul.f32 %v1349, %v1353
      %v1357 = vmul.f32 %v1352, %v1353
      %v1358 = vmul.f32 %v1337, %v1337
      %v1359 = vmul.f32 %v1338, %v1338
      %v1360 = vmul.f32 %v1339, %v1339
      %v1361 = vmul.f32 %v1340, %v1340
      %v1362 = vsel %vm815, %v1358, 0.0
      %1363 = vadd.xlane.f32.xlu0 %v1362
      %v1364 = vpop.xlane.xlu0 %1363
      %v1365 = vsel %vm815, %v1359, 0.0
      %1366 = vadd.xlane.f32.xlu0 %v1365
      %v1367 = vpop.xlane.xlu0 %1366
      %v1368 = vsel %vm815, %v1360, 0.0
      %1369 = vadd.xlane.f32.xlu0 %v1368
      %v1370 = vpop.xlane.xlu0 %1369
      %v1371 = vsel %vm815, %v1361, 0.0
      %1372 = vadd.xlane.f32.xlu0 %v1371
      %v1373 = vpop.xlane.xlu0 %1372
      %v1374 = vmul.f32 %v1364, %v1353
      %v1375 = vmul.f32 %v1367, %v1353
      %v1376 = vmul.f32 %v1370, %v1353
      %v1377 = vmul.f32 %v1373, %v1353
      %v1378 = vmul.f32 %v1354, %v1354
      %v1379 = vmul.f32 %v1355, %v1355
      %v1380 = vmul.f32 %v1356, %v1356
      %v1381 = vmul.f32 %v1357, %v1357
      %v1382 = vsub.f32 %v1374, %v1378
      %v1383 = vsub.f32 %v1375, %v1379
      %v1384 = vsub.f32 %v1376, %v1380
      %v1385 = vsub.f32 %v1377, %v1381
      %v1386 = vmax.f32 %v1382, 0.0
      %v1387 = vmax.f32 %v1383, 0.0
      %v1388 = vmax.f32 %v1384, 0.0
      %v1389 = vmax.f32 %v1385, 0.0
      %v1390 = vsub.f32 %v1337, %v1354
      %v1391 = vsub.f32 %v1338, %v1355
      %v1392 = vsub.f32 %v1339, %v1356
      %v1393 = vsub.f32 %v1340, %v1357
      %v1394 = vadd.f32 %v1386, 1e-05
      %v1395 = vadd.f32 %v1387, 1e-05
      %v1396 = vadd.f32 %v1388, 1e-05
      %v1397 = vadd.f32 %v1389, 1e-05
      %v1398 = vrsqrt.pop %v1394
      %v1399 = vrsqrt.pop %v1395
      %v1400 = vrsqrt.pop %v1396
      %v1401 = vrsqrt.pop %v1397
      %v1402 = vmul.f32 %v1390, %v1398
      %v1403 = vmul.f32 %v1391, %v1399
      %v1404 = vmul.f32 %v1392, %v1400
      %v1405 = vmul.f32 %v1393, %v1401
      %v1406 = vlaneseq
      %v1407 = vshrl.u32 %v1406, 7
      %v1408 = vsub.s32 1, %v1407
      %v1409 = vrot.slane %v789, %v1408
      %v1410 = vmul.f32 %v1402, %v1409
      %v1411 = vmul.f32 %v1403, %v1409
      %v1412 = vmul.f32 %v1404, %v1409
      %v1413 = vmul.f32 %v1405, %v1409
      %v1414 = vlaneseq
      %v1415 = vshrl.u32 %v1414, 7
      %v1416 = vsub.s32 2, %v1415
      %v1417 = vrot.slane %v789, %v1416
      %v1418 = vadd.f32 %v1410, %v1417
      %v1419 = vadd.f32 %v1411, %v1417
      %v1420 = vadd.f32 %v1412, %v1417
      %v1421 = vadd.f32 %v1413, %v1417
      %v1422 = vpack.c.bf16 %v1419, %v1418
      %v1423 = vpack.c.bf16 %v1421, %v1420
      %v1424 = vld [vmem:[%s15] sm:$0xf]
      %v1425 = vld [vmem:[%s15 + $0x4] sm:$0xf]
      %v1426 = vld [vmem:[%s15 + $0x8] sm:$0xf]
      %v1427 = vld [vmem:[%s15 + $0xc] sm:$0xf]
      %v1428 = vlaneseq
      %v1429 = vshrl.u32 %v1428, 7
      %v1430 = vsub.s32 5, %v1429
      %v1431 = vrot.slane %v789, %v1430
      %v1436 = vunpack.c.l.b16 %v1424
      %v1437 = vunpack.c.l.b16 %v1425
      %v1438 = vunpack.c.l.b16 %v1426
      %v1439 = vunpack.c.l.b16 %v1427
      %v1440 = vpack.c.b16 %v1437, %v1436
      %v1441 = vpack.c.b16 %v1439, %v1438
      %v1445 = vsel %vm815, %v1422, 0
      %v1448 = vsel %vm815, %v1423, 0
      %1450 = vmatprep.subr.bf16.mxu0 0
      %1451 = vmatpush1.bf16.msra.mxu0 %v1440
      %1452 = vmatprep.subr.bf16.mxu0 0
      %1453 = vmatpush1.bf16.msra.mxu0 %v1441
      %1454 = vmatprep.subr.bf16.mxu0 0
      %1455 = vmatpush1.bf16.msra.mxu0 0
      %1456 = vmatprep.subr.bf16.mxu0 0
      %1457 = vmatpush1.bf16.msra.mxu0 0
      %1458 = vmatprep.subr.bf16.mxu0 0
      %1459 = vmatpush1.bf16.msra.mxu0 0
      %1460 = vmatprep.subr.bf16.mxu0 0
      %1461 = vmatpush1.bf16.msra.mxu0 0
      %1462 = vmatprep.subr.bf16.mxu0 0
      %1463 = vmatpush1.bf16.msra.mxu0 0
      %1464 = vmatprep.subr.bf16.mxu0 0
      %1465 = vmatpush1.bf16.msra.mxu0 0
      %1466 = vmatprep.subr.bf16.mxu0 0
      %1467 = vmatpush1.bf16.msra.mxu0 0
      %1468 = vmatprep.subr.bf16.mxu0 0
      %1469 = vmatpush1.bf16.msra.mxu0 0
      %1470 = vmatprep.subr.bf16.mxu0 0
      %1471 = vmatpush1.bf16.msra.mxu0 0
      %1472 = vmatprep.subr.bf16.mxu0 0
      %1473 = vmatpush1.bf16.msra.mxu0 0
      %1474 = vmatprep.subr.bf16.mxu0 0
      %1475 = vmatpush1.bf16.msra.mxu0 0
      %1476 = vmatprep.subr.bf16.mxu0 0
      %1477 = vmatpush1.bf16.msra.mxu0 0
      %1478 = vmatprep.subr.bf16.mxu0 0
      %1479 = vmatpush1.bf16.msra.mxu0 0
      %1480 = vmatprep.subr.bf16.mxu0 0
      %1481 = vmatpush1.bf16.msra.mxu0 0
      %1482 = vmatprep.mubr.bf16.mxu0 0
      %1483 = vmatmul.mubr.bf16.gmra.mrb[0].mxu0 %v1445
      %v1484 = vpop.f32.mrb[0].mxu0
      %v1485 = vadd.f32 %v1431, %v1484
      %v1486 = vpop.f32.mrb[0].mxu0
      %v1487 = vpop.f32.mrb[0].mxu0
      %v1488 = vadd.f32 %v1431, %v1487
      %v1489 = vpop.f32.mrb[0].mxu0
      %1490 = vmatprep.mubr.bf16.mxu0 0
      %1491 = vmatmul.mubr.bf16.gmra.mrb[0].mxu0 %v1448
      %v1492 = vpop.f32.mrb[0].mxu0
      %v1493 = vadd.f32 %v1431, %v1492
      %v1494 = vpop.f32.mrb[0].mxu0
      %v1495 = vpop.f32.mrb[0].mxu0
      %v1496 = vadd.f32 %v1431, %v1495
      %v1497 = vpop.f32.mrb[0].mxu0
      %1498 = vdwg.mxu0
      %v1499 = vmax.f32 %v1485, 0.0
      %v1500 = vmax.f32 %v1488, 0.0
      %v1501 = vmax.f32 %v1493, 0.0
      %v1502 = vmax.f32 %v1496, 0.0
      %v1503 = vpack.c.bf16 %v1500, %v1499
      %v1504 = vpack.c.bf16 %v1502, %v1501
      %v1505 = vld [vmem:[%s16] sm:$0xf]
      %v1506 = vld [vmem:[%s16 + $0x4] sm:$0xf]
      %v1507 = vlaneseq
      %v1508 = vshrl.u32 %v1507, 7
      %v1509 = vsub.s32 6, %v1508
      %v1510 = vrot.slane %v789, %v1509
      %v1513 = vunpack.c.l.b16 %v1505
      %v1514 = vunpack.c.l.b16 %v1506
      %v1515 = vpack.c.b16 %v1514, %v1513
      %v1518 = vsel %vm879, %v1503, 0
      %v1521 = vsel %vm879, %v1504, 0
      %1523 = vmatprep.subr.bf16.mxu0 0
      %1524 = vmatpush1.bf16.msra.mxu0 %v1515
      %1525 = vmatprep.subr.bf16.mxu0 0
      %1526 = vmatpush1.bf16.msra.mxu0 0
      %1527 = vmatprep.subr.bf16.mxu0 0
      %1528 = vmatpush1.bf16.msra.mxu0 0
      %1529 = vmatprep.subr.bf16.mxu0 0
      %1530 = vmatpush1.bf16.msra.mxu0 0
      %1531 = vmatprep.subr.bf16.mxu0 0
      %1532 = vmatpush1.bf16.msra.mxu0 0
      %1533 = vmatprep.subr.bf16.mxu0 0
      %1534 = vmatpush1.bf16.msra.mxu0 0
      %1535 = vmatprep.subr.bf16.mxu0 0
      %1536 = vmatpush1.bf16.msra.mxu0 0
      %1537 = vmatprep.subr.bf16.mxu0 0
      %1538 = vmatpush1.bf16.msra.mxu0 0
      %1539 = vmatprep.subr.bf16.mxu0 0
      %1540 = vmatpush1.bf16.msra.mxu0 0
      %1541 = vmatprep.subr.bf16.mxu0 0
      %1542 = vmatpush1.bf16.msra.mxu0 0
      %1543 = vmatprep.subr.bf16.mxu0 0
      %1544 = vmatpush1.bf16.msra.mxu0 0
      %1545 = vmatprep.subr.bf16.mxu0 0
      %1546 = vmatpush1.bf16.msra.mxu0 0
      %1547 = vmatprep.subr.bf16.mxu0 0
      %1548 = vmatpush1.bf16.msra.mxu0 0
      %1549 = vmatprep.subr.bf16.mxu0 0
      %1550 = vmatpush1.bf16.msra.mxu0 0
      %1551 = vmatprep.subr.bf16.mxu0 0
      %1552 = vmatpush1.bf16.msra.mxu0 0
      %1553 = vmatprep.subr.bf16.mxu0 0
      %1554 = vmatpush1.bf16.msra.mxu0 0
      %1555 = vmatprep.mubr.bf16.mxu0 0
      %1556 = vmatmul.mubr.bf16.gmra.mrb[0].mxu0 %v1518
      %v1557 = vpop.f32.mrb[0].mxu0
      %v1558 = vadd.f32 %v1510, %v1557
      %v1559 = vpop.f32.mrb[0].mxu0
      %v1560 = vpop.f32.mrb[0].mxu0
      %v1561 = vadd.f32 %v1510, %v1560
      %v1562 = vpop.f32.mrb[0].mxu0
      %1563 = vmatprep.mubr.bf16.mxu0 0
      %1564 = vmatmul.mubr.bf16.gmra.mrb[0].mxu0 %v1521
      %v1565 = vpop.f32.mrb[0].mxu0
      %v1566 = vadd.f32 %v1510, %v1565
      %v1567 = vpop.f32.mrb[0].mxu0
      %v1568 = vpop.f32.mrb[0].mxu0
      %v1569 = vadd.f32 %v1510, %v1568
      %v1570 = vpop.f32.mrb[0].mxu0
      %1571 = vdwg.mxu0
      %v1572 = vadd.f32 %v1418, %v1558
      %v1573 = vadd.f32 %v1419, %v1561
      %v1574 = vadd.f32 %v1420, %v1566
      %v1575 = vadd.f32 %v1421, %v1569
      %v1576 = vsel %vm815, %v1572, 0.0
      %1577 = vadd.xlane.f32.xlu0 %v1576
      %v1578 = vpop.xlane.xlu0 %1577
      %v1579 = vsel %vm815, %v1573, 0.0
      %1580 = vadd.xlane.f32.xlu0 %v1579
      %v1581 = vpop.xlane.xlu0 %1580
      %v1582 = vsel %vm815, %v1574, 0.0
      %1583 = vadd.xlane.f32.xlu0 %v1582
      %v1584 = vpop.xlane.xlu0 %1583
      %v1585 = vsel %vm815, %v1575, 0.0
      %1586 = vadd.xlane.f32.xlu0 %v1585
      %v1587 = vpop.xlane.xlu0 %1586
      %v1588 = vmul.f32 %v1578, %v1353
      %v1589 = vmul.f32 %v1581, %v1353
      %v1590 = vmul.f32 %v1584, %v1353
      %v1591 = vmul.f32 %v1587, %v1353
      %v1592 = vmul.f32 %v1572, %v1572
      %v1593 = vmul.f32 %v1573, %v1573
      %v1594 = vmul.f32 %v1574, %v1574
      %v1595 = vmul.f32 %v1575, %v1575
      %v1596 = vsel %vm815, %v1592, 0.0
      %1597 = vadd.xlane.f32.xlu0 %v1596
      %v1598 = vpop.xlane.xlu0 %1597
      %v1599 = vsel %vm815, %v1593, 0.0
      %1600 = vadd.xlane.f32.xlu0 %v1599
      %v1601 = vpop.xlane.xlu0 %1600
      %v1602 = vsel %vm815, %v1594, 0.0
      %1603 = vadd.xlane.f32.xlu0 %v1602
      %v1604 = vpop.xlane.xlu0 %1603
      %v1605 = vsel %vm815, %v1595, 0.0
      %1606 = vadd.xlane.f32.xlu0 %v1605
      %v1607 = vpop.xlane.xlu0 %1606
      %v1608 = vmul.f32 %v1598, %v1353
      %v1609 = vmul.f32 %v1601, %v1353
      %v1610 = vmul.f32 %v1604, %v1353
      %v1611 = vmul.f32 %v1607, %v1353
      %v1612 = vmul.f32 %v1588, %v1588
      %v1613 = vmul.f32 %v1589, %v1589
      %v1614 = vmul.f32 %v1590, %v1590
      %v1615 = vmul.f32 %v1591, %v1591
      %v1616 = vsub.f32 %v1608, %v1612
      %v1617 = vsub.f32 %v1609, %v1613
      %v1618 = vsub.f32 %v1610, %v1614
      %v1619 = vsub.f32 %v1611, %v1615
      %v1620 = vmax.f32 %v1616, 0.0
      %v1621 = vmax.f32 %v1617, 0.0
      %v1622 = vmax.f32 %v1618, 0.0
      %v1623 = vmax.f32 %v1619, 0.0
      %v1624 = vsub.f32 %v1572, %v1588
      %v1625 = vsub.f32 %v1573, %v1589
      %v1626 = vsub.f32 %v1574, %v1590
      %v1627 = vsub.f32 %v1575, %v1591
      %v1628 = vadd.f32 %v1620, 1e-05
      %v1629 = vadd.f32 %v1621, 1e-05
      %v1630 = vadd.f32 %v1622, 1e-05
      %v1631 = vadd.f32 %v1623, 1e-05
      %v1632 = vrsqrt.pop %v1628
      %v1633 = vrsqrt.pop %v1629
      %v1634 = vrsqrt.pop %v1630
      %v1635 = vrsqrt.pop %v1631
      %v1636 = vmul.f32 %v1624, %v1632
      %v1637 = vmul.f32 %v1625, %v1633
      %v1638 = vmul.f32 %v1626, %v1634
      %v1639 = vmul.f32 %v1627, %v1635
      %v1640 = vlaneseq
      %v1641 = vshrl.u32 %v1640, 7
      %v1642 = vsub.s32 3, %v1641
      %v1643 = vrot.slane %v789, %v1642
      %v1644 = vmul.f32 %v1636, %v1643
      %v1645 = vmul.f32 %v1637, %v1643
      %v1646 = vmul.f32 %v1638, %v1643
      %v1647 = vmul.f32 %v1639, %v1643
      %v1648 = vlaneseq
      %v1649 = vshrl.u32 %v1648, 7
      %v1650 = vsub.s32 4, %v1649
      %v1651 = vrot.slane %v789, %v1650
      %v1652 = vadd.f32 %v1644, %v1651
      %v1653 = vadd.f32 %v1645, %v1651
      %v1654 = vadd.f32 %v1646, %v1651
      %v1655 = vadd.f32 %v1647, %v1651
      %s1656 = scalar_lea.vmem %s17, 8
      %v1657 = vld [vmem:[%s1656] sm:$0x7f]
      %v1658 = vpack.c.bf16 %v1653, %v1652
      %v1659 = vpack.c.bf16 %v1655, %v1654
      %s1660 = scalar_lea.vmem %s12, 16
      %v1661 = vld [vmem:[%s1660] sm:$0xf]
      %v1662 = vld [vmem:[%s1660 + $0x4] sm:$0xf]
      %v1663 = vld [vmem:[%s1660 + $0x8] sm:$0xf]
      %v1664 = vld [vmem:[%s1660 + $0xc] sm:$0xf]
      %s1665 = scalar_lea.vmem %s13, 1
      %v1666 = vld [vmem:[%s1665] sm:$0x1]
      %v1668 = vlaneseq
      %v1669 = vshrl.u32 %v1668, 7
      %v1670 = vsub.s32 0, %v1669
      %v1671 = vrot.slane %v1666, %v1670
      %v1677 = vunpack.c.l.b16 %v1661
      %v1678 = vunpack.c.l.b16 %v1662
      %v1679 = vunpack.c.l.b16 %v1663
      %v1680 = vunpack.c.l.b16 %v1664
      %v1681 = vpack.c.b16 %v1678, %v1677
      %v1682 = vpack.c.b16 %v1680, %v1679
      %v1686 = vsel %vm815, %v1658, 0
      %v1689 = vsel %vm815, %v1659, 0
      %1691 = vmatprep.subr.bf16.mxu0 0
      %1692 = vmatpush1.bf16.msra.mxu0 %v1681
      %1693 = vmatprep.subr.bf16.mxu0 0
      %1694 = vmatpush1.bf16.msra.mxu0 %v1682
      %1695 = vmatprep.subr.bf16.mxu0 0
      %1696 = vmatpush1.bf16.msra.mxu0 0
      %1697 = vmatprep.subr.bf16.mxu0 0
      %1698 = vmatpush1.bf16.msra.mxu0 0
      %1699 = vmatprep.subr.bf16.mxu0 0
      %1700 = vmatpush1.bf16.msra.mxu0 0
      %1701 = vmatprep.subr.bf16.mxu0 0
      %1702 = vmatpush1.bf16.msra.mxu0 0
      %1703 = vmatprep.subr.bf16.mxu0 0
      %1704 = vmatpush1.bf16.msra.mxu0 0
      %1705 = vmatprep.subr.bf16.mxu0 0
      %1706 = vmatpush1.bf16.msra.mxu0 0
      %1707 = vmatprep.subr.bf16.mxu0 0
      %1708 = vmatpush1.bf16.msra.mxu0 0
      %1709 = vmatprep.subr.bf16.mxu0 0
      %1710 = vmatpush1.bf16.msra.mxu0 0
      %1711 = vmatprep.subr.bf16.mxu0 0
      %1712 = vmatpush1.bf16.msra.mxu0 0
      %1713 = vmatprep.subr.bf16.mxu0 0
      %1714 = vmatpush1.bf16.msra.mxu0 0
      %1715 = vmatprep.subr.bf16.mxu0 0
      %1716 = vmatpush1.bf16.msra.mxu0 0
      %1717 = vmatprep.subr.bf16.mxu0 0
      %1718 = vmatpush1.bf16.msra.mxu0 0
      %1719 = vmatprep.subr.bf16.mxu0 0
      %1720 = vmatpush1.bf16.msra.mxu0 0
      %1721 = vmatprep.subr.bf16.mxu0 0
      %1722 = vmatpush1.bf16.msra.mxu0 0
      %1723 = vmatprep.mubr.bf16.mxu0 0
      %1724 = vmatmul.mubr.bf16.gmra.mrb[0].mxu0 %v1686
      %v1725 = vpop.f32.mrb[0].mxu0
      %v1726 = vadd.f32 %v1671, %v1725
      %v1727 = vpop.f32.mrb[0].mxu0
      %v1728 = vpop.f32.mrb[0].mxu0
      %v1729 = vadd.f32 %v1671, %v1728
      %v1730 = vpop.f32.mrb[0].mxu0
      %1731 = vmatprep.mubr.bf16.mxu0 0
      %1732 = vmatmul.mubr.bf16.gmra.mrb[0].mxu0 %v1689
      %v1733 = vpop.f32.mrb[0].mxu0
      %v1734 = vadd.f32 %v1671, %v1733
      %v1735 = vpop.f32.mrb[0].mxu0
      %v1736 = vpop.f32.mrb[0].mxu0
      %v1737 = vadd.f32 %v1671, %v1736
      %v1738 = vpop.f32.mrb[0].mxu0
      %1739 = vdwg.mxu0
      %v1740 = vpack.c.bf16 %v1729, %v1726
      %v1741 = vpack.c.bf16 %v1737, %v1734
      %1744 = vrot.lane.b32.xlu0 %v1740, 96
      %v1745 = vpop.permute.xlu0 %1744
      %1746 = vrot.lane.b32.xlu0 %v1741, 96
      %v1747 = vpop.permute.xlu0 %1746
      %v1749 = vsel %vm879, %v1740, 0
      %v1752 = vsel %vm879, %v1741, 0
      %v1755 = vsel %vm879, %v1745, 0
      %v1758 = vsel %vm879, %v1747, 0
      %1760 = vmatprep.subr.bf16.mxu0 0
      %1761 = vmatpush1.bf16.xpose.msra.mxu0 %v1755
      %1762 = vmatprep.subr.bf16.mxu0 0
      %1763 = vmatpush1.bf16.xpose.msra.mxu0 %v1758
      %1764 = vmatprep.subr.bf16.mxu0 0
      %1765 = vmatpush1.bf16.xpose.msra.mxu0 0
      %1766 = vmatprep.subr.bf16.mxu0 0
      %1767 = vmatpush1.bf16.xpose.msra.mxu0 0
      %1768 = vmatprep.subr.bf16.mxu0 0
      %1769 = vmatpush1.bf16.xpose.msra.mxu0 0
      %1770 = vmatprep.subr.bf16.mxu0 0
      %1771 = vmatpush1.bf16.xpose.msra.mxu0 0
      %1772 = vmatprep.subr.bf16.mxu0 0
      %1773 = vmatpush1.bf16.xpose.msra.mxu0 0
      %1774 = vmatprep.subr.bf16.mxu0 0
      %1775 = vmatpush1.bf16.xpose.msra.mxu0 0
      %1776 = vmatprep.subr.bf16.mxu0 0
      %1777 = vmatpush1.bf16.xpose.msra.mxu0 0
      %1778 = vmatprep.subr.bf16.mxu0 0
      %1779 = vmatpush1.bf16.xpose.msra.mxu0 0
      %1780 = vmatprep.subr.bf16.mxu0 0
      %1781 = vmatpush1.bf16.xpose.msra.mxu0 0
      %1782 = vmatprep.subr.bf16.mxu0 0
      %1783 = vmatpush1.bf16.xpose.msra.mxu0 0
      %1784 = vmatprep.subr.bf16.mxu0 0
      %1785 = vmatpush1.bf16.xpose.msra.mxu0 0
      %1786 = vmatprep.subr.bf16.mxu0 0
      %1787 = vmatpush1.bf16.xpose.msra.mxu0 0
      %1788 = vmatprep.subr.bf16.mxu0 0
      %1789 = vmatpush1.bf16.xpose.msra.mxu0 0
      %1790 = vmatprep.subr.bf16.mxu0 0
      %1791 = vmatpush1.bf16.xpose.msra.mxu0 0
      %1792 = vmatprep.mubr.bf16.mxu0 0
      %1793 = vmatmul.mubr.bf16.gmra.mrb[0].mxu0 %v1749
      %v1794 = vpop.f32.mrb[0].mxu0
      %v1795 = vadd.f32 0.0, %v1794
      %v1796 = vpop.f32.mrb[0].mxu0
      %v1797 = vpop.f32.mrb[0].mxu0
      %v1798 = vadd.f32 0.0, %v1797
      %v1799 = vpop.f32.mrb[0].mxu0
      %1800 = vmatprep.mubr.bf16.mxu0 0
      %1801 = vmatmul.mubr.bf16.gmra.mrb[0].mxu0 %v1752
      %v1802 = vpop.f32.mrb[0].mxu0
      %v1803 = vadd.f32 0.0, %v1802
      %v1804 = vpop.f32.mrb[0].mxu0
      %v1805 = vpop.f32.mrb[0].mxu0
      %v1806 = vadd.f32 0.0, %v1805
      %v1807 = vpop.f32.mrb[0].mxu0
      %1808 = vdwg.mxu0
      %v1809 = vmul.f32 %v1795, 0.25
      %v1810 = vmul.f32 %v1798, 0.25
      %v1811 = vmul.f32 %v1803, 0.25
      %v1812 = vmul.f32 %v1806, 0.25
      %v1813 = vadd.f32 %v1809, %v785
      %v1814 = vadd.f32 %v1810, %v786
      %v1815 = vadd.f32 %v1811, %v787
      %v1816 = vadd.f32 %v1812, %v788
      %v1817 = vsel %vm815, %v1813, -inf
      %1818 = vmax.xlane.f32.xlu0 %v1817
      %v1819 = vpop.xlane.xlu0 %1818
      %v1820 = vsel %vm815, %v1814, -inf
      %1821 = vmax.xlane.f32.xlu0 %v1820
      %v1822 = vpop.xlane.xlu0 %1821
      %v1823 = vsel %vm815, %v1815, -inf
      %1824 = vmax.xlane.f32.xlu0 %v1823
      %v1825 = vpop.xlane.xlu0 %1824
      %v1826 = vsel %vm815, %v1816, -inf
      %1827 = vmax.xlane.f32.xlu0 %v1826
      %v1828 = vpop.xlane.xlu0 %1827
      %v1829 = vsub.f32 %v1813, %v1819
      %v1830 = vsub.f32 %v1814, %v1822
      %v1831 = vsub.f32 %v1815, %v1825
      %v1832 = vsub.f32 %v1816, %v1828
      %v1833 = vmul.f32 %v1829, 1.442695
      %v1834 = vpow.pop %v1833
      %v1835 = vmul.f32 %v1830, 1.442695
      %v1836 = vpow.pop %v1835
      %v1837 = vmul.f32 %v1831, 1.442695
      %v1838 = vpow.pop %v1837
      %v1839 = vmul.f32 %v1832, 1.442695
      %v1840 = vpow.pop %v1839
      %v1841 = vsel %vm815, %v1834, 0.0
      %1842 = vadd.xlane.f32.xlu0 %v1841
      %v1843 = vpop.xlane.xlu0 %1842
      %v1844 = vsel %vm815, %v1836, 0.0
      %1845 = vadd.xlane.f32.xlu0 %v1844
      %v1846 = vpop.xlane.xlu0 %1845
      %v1847 = vsel %vm815, %v1838, 0.0
      %1848 = vadd.xlane.f32.xlu0 %v1847
      %v1849 = vpop.xlane.xlu0 %1848
      %v1850 = vsel %vm815, %v1840, 0.0
      %1851 = vadd.xlane.f32.xlu0 %v1850
      %v1852 = vpop.xlane.xlu0 %1851
      %v1853 = vrcp.pop %v1843
      %v1854 = vrcp.pop %v1846
      %v1855 = vrcp.pop %v1849
      %v1856 = vrcp.pop %v1852
      %v1857 = vmul.f32 %v1834, %v1853
      %v1858 = vmul.f32 %v1836, %v1854
      %v1859 = vmul.f32 %v1838, %v1855
      %v1860 = vmul.f32 %v1840, %v1856
      %v1861 = vpack.c.bf16 %v1858, %v1857
      %v1862 = vpack.c.bf16 %v1860, %v1859
      %1863 = vrot.lane.b32.xlu0 %v1740, 64
      %v1864 = vpop.permute.xlu0 %1863
      %1865 = vrot.lane.b32.xlu0 %v1741, 64
      %v1866 = vpop.permute.xlu0 %1865
      %v1870 = vsel %vm815, %v1861, 0
      %v1873 = vsel %vm815, %v1862, 0
      %1875 = vmatprep.subr.bf16.mxu0 0
      %1876 = vmatpush1.bf16.msra.mxu0 %v1864
      %1877 = vmatprep.subr.bf16.mxu0 0
      %1878 = vmatpush1.bf16.msra.mxu0 %v1866
      %1879 = vmatprep.subr.bf16.mxu0 0
      %1880 = vmatpush1.bf16.msra.mxu0 0
      %1881 = vmatprep.subr.bf16.mxu0 0
      %1882 = vmatpush1.bf16.msra.mxu0 0
      %1883 = vmatprep.subr.bf16.mxu0 0
      %1884 = vmatpush1.bf16.msra.mxu0 0
      %1885 = vmatprep.subr.bf16.mxu0 0
      %1886 = vmatpush1.bf16.msra.mxu0 0
      %1887 = vmatprep.subr.bf16.mxu0 0
      %1888 = vmatpush1.bf16.msra.mxu0 0
      %1889 = vmatprep.subr.bf16.mxu0 0
      %1890 = vmatpush1.bf16.msra.mxu0 0
      %1891 = vmatprep.subr.bf16.mxu0 0
      %1892 = vmatpush1.bf16.msra.mxu0 0
      %1893 = vmatprep.subr.bf16.mxu0 0
      %1894 = vmatpush1.bf16.msra.mxu0 0
      %1895 = vmatprep.subr.bf16.mxu0 0
      %1896 = vmatpush1.bf16.msra.mxu0 0
      %1897 = vmatprep.subr.bf16.mxu0 0
      %1898 = vmatpush1.bf16.msra.mxu0 0
      %1899 = vmatprep.subr.bf16.mxu0 0
      %1900 = vmatpush1.bf16.msra.mxu0 0
      %1901 = vmatprep.subr.bf16.mxu0 0
      %1902 = vmatpush1.bf16.msra.mxu0 0
      %1903 = vmatprep.subr.bf16.mxu0 0
      %1904 = vmatpush1.bf16.msra.mxu0 0
      %1905 = vmatprep.subr.bf16.mxu0 0
      %1906 = vmatpush1.bf16.msra.mxu0 0
      %1907 = vmatprep.mubr.bf16.mxu0 0
      %1908 = vmatmul.mubr.bf16.gmra.mrb[0].mxu0 %v1870
      %v1909 = vpop.f32.mrb[0].mxu0
      %v1910 = vadd.f32 0.0, %v1909
      %v1911 = vpop.f32.mrb[0].mxu0
      %v1912 = vpop.f32.mrb[0].mxu0
      %v1913 = vadd.f32 0.0, %v1912
      %v1914 = vpop.f32.mrb[0].mxu0
      %1915 = vmatprep.mubr.bf16.mxu0 0
      %1916 = vmatmul.mubr.bf16.gmra.mrb[0].mxu0 %v1873
      %v1917 = vpop.f32.mrb[0].mxu0
      %v1918 = vadd.f32 0.0, %v1917
      %v1919 = vpop.f32.mrb[0].mxu0
      %v1920 = vpop.f32.mrb[0].mxu0
      %v1921 = vadd.f32 0.0, %v1920
      %v1922 = vpop.f32.mrb[0].mxu0
      %1923 = vdwg.mxu0
      %1924 = vrot.lane.b32.xlu0 %v1740, 112
      %v1925 = vpop.permute.xlu0 %1924
      %1926 = vrot.lane.b32.xlu0 %v1741, 112
      %v1927 = vpop.permute.xlu0 %1926
      %1928 = vrot.lane.b32.xlu0 %v1740, 80
      %v1929 = vpop.permute.xlu0 %1928
      %1930 = vrot.lane.b32.xlu0 %v1741, 80
      %v1931 = vpop.permute.xlu0 %1930
      %v1933 = vsel %vm879, %v1925, 0
      %v1936 = vsel %vm879, %v1927, 0
      %v1939 = vsel %vm879, %v1929, 0
      %v1942 = vsel %vm879, %v1931, 0
      %1944 = vmatprep.subr.bf16.mxu0 0
      %1945 = vmatpush1.bf16.xpose.msra.mxu0 %v1939
      %1946 = vmatprep.subr.bf16.mxu0 0
      %1947 = vmatpush1.bf16.xpose.msra.mxu0 %v1942
      %1948 = vmatprep.subr.bf16.mxu0 0
      %1949 = vmatpush1.bf16.xpose.msra.mxu0 0
      %1950 = vmatprep.subr.bf16.mxu0 0
      %1951 = vmatpush1.bf16.xpose.msra.mxu0 0
      %1952 = vmatprep.subr.bf16.mxu0 0
      %1953 = vmatpush1.bf16.xpose.msra.mxu0 0
      %1954 = vmatprep.subr.bf16.mxu0 0
      %1955 = vmatpush1.bf16.xpose.msra.mxu0 0
      %1956 = vmatprep.subr.bf16.mxu0 0
      %1957 = vmatpush1.bf16.xpose.msra.mxu0 0
      %1958 = vmatprep.subr.bf16.mxu0 0
      %1959 = vmatpush1.bf16.xpose.msra.mxu0 0
      %1960 = vmatprep.subr.bf16.mxu0 0
      %1961 = vmatpush1.bf16.xpose.msra.mxu0 0
      %1962 = vmatprep.subr.bf16.mxu0 0
      %1963 = vmatpush1.bf16.xpose.msra.mxu0 0
      %1964 = vmatprep.subr.bf16.mxu0 0
      %1965 = vmatpush1.bf16.xpose.msra.mxu0 0
      %1966 = vmatprep.subr.bf16.mxu0 0
      %1967 = vmatpush1.bf16.xpose.msra.mxu0 0
      %1968 = vmatprep.subr.bf16.mxu0 0
      %1969 = vmatpush1.bf16.xpose.msra.mxu0 0
      %1970 = vmatprep.subr.bf16.mxu0 0
      %1971 = vmatpush1.bf16.xpose.msra.mxu0 0
      %1972 = vmatprep.subr.bf16.mxu0 0
      %1973 = vmatpush1.bf16.xpose.msra.mxu0 0
      %1974 = vmatprep.subr.bf16.mxu0 0
      %1975 = vmatpush1.bf16.xpose.msra.mxu0 0
      %1976 = vmatprep.mubr.bf16.mxu0 0
      %1977 = vmatmul.mubr.bf16.gmra.mrb[0].mxu0 %v1933
      %v1978 = vpop.f32.mrb[0].mxu0
      %v1979 = vadd.f32 0.0, %v1978
      %v1980 = vpop.f32.mrb[0].mxu0
      %v1981 = vpop.f32.mrb[0].mxu0
      %v1982 = vadd.f32 0.0, %v1981
      %v1983 = vpop.f32.mrb[0].mxu0
      %1984 = vmatprep.mubr.bf16.mxu0 0
      %1985 = vmatmul.mubr.bf16.gmra.mrb[0].mxu0 %v1936
      %v1986 = vpop.f32.mrb[0].mxu0
      %v1987 = vadd.f32 0.0, %v1986
      %v1988 = vpop.f32.mrb[0].mxu0
      %v1989 = vpop.f32.mrb[0].mxu0
      %v1990 = vadd.f32 0.0, %v1989
      %v1991 = vpop.f32.mrb[0].mxu0
      %1992 = vdwg.mxu0
      %v1993 = vmul.f32 %v1979, 0.25
      %v1994 = vmul.f32 %v1982, 0.25
      %v1995 = vmul.f32 %v1987, 0.25
      %v1996 = vmul.f32 %v1990, 0.25
      %v1997 = vadd.f32 %v1993, %v785
      %v1998 = vadd.f32 %v1994, %v786
      %v1999 = vadd.f32 %v1995, %v787
      %v2000 = vadd.f32 %v1996, %v788
      %v2001 = vsel %vm815, %v1997, -inf
      %2002 = vmax.xlane.f32.xlu0 %v2001
      %v2003 = vpop.xlane.xlu0 %2002
      %v2004 = vsel %vm815, %v1998, -inf
      %2005 = vmax.xlane.f32.xlu0 %v2004
      %v2006 = vpop.xlane.xlu0 %2005
      %v2007 = vsel %vm815, %v1999, -inf
      %2008 = vmax.xlane.f32.xlu0 %v2007
      %v2009 = vpop.xlane.xlu0 %2008
      %v2010 = vsel %vm815, %v2000, -inf
      %2011 = vmax.xlane.f32.xlu0 %v2010
      %v2012 = vpop.xlane.xlu0 %2011
      %v2013 = vsub.f32 %v1997, %v2003
      %v2014 = vsub.f32 %v1998, %v2006
      %v2015 = vsub.f32 %v1999, %v2009
      %v2016 = vsub.f32 %v2000, %v2012
      %v2017 = vmul.f32 %v2013, 1.442695
      %v2018 = vpow.pop %v2017
      %v2019 = vmul.f32 %v2014, 1.442695
      %v2020 = vpow.pop %v2019
      %v2021 = vmul.f32 %v2015, 1.442695
      %v2022 = vpow.pop %v2021
      %v2023 = vmul.f32 %v2016, 1.442695
      %v2024 = vpow.pop %v2023
      %v2025 = vsel %vm815, %v2018, 0.0
      %2026 = vadd.xlane.f32.xlu0 %v2025
      %v2027 = vpop.xlane.xlu0 %2026
      %v2028 = vsel %vm815, %v2020, 0.0
      %2029 = vadd.xlane.f32.xlu0 %v2028
      %v2030 = vpop.xlane.xlu0 %2029
      %v2031 = vsel %vm815, %v2022, 0.0
      %2032 = vadd.xlane.f32.xlu0 %v2031
      %v2033 = vpop.xlane.xlu0 %2032
      %v2034 = vsel %vm815, %v2024, 0.0
      %2035 = vadd.xlane.f32.xlu0 %v2034
      %v2036 = vpop.xlane.xlu0 %2035
      %v2037 = vrcp.pop %v2027
      %v2038 = vrcp.pop %v2030
      %v2039 = vrcp.pop %v2033
      %v2040 = vrcp.pop %v2036
      %v2041 = vmul.f32 %v2018, %v2037
      %v2042 = vmul.f32 %v2020, %v2038
      %v2043 = vmul.f32 %v2022, %v2039
      %v2044 = vmul.f32 %v2024, %v2040
      %v2045 = vpack.c.bf16 %v2042, %v2041
      %v2046 = vpack.c.bf16 %v2044, %v2043
      %2047 = vrot.lane.b32.xlu0 %v1740, 48
      %v2048 = vpop.permute.xlu0 %2047
      %2049 = vrot.lane.b32.xlu0 %v1741, 48
      %v2050 = vpop.permute.xlu0 %2049
      %v2054 = vsel %vm815, %v2045, 0
      %v2057 = vsel %vm815, %v2046, 0
      %2059 = vmatprep.subr.bf16.mxu0 0
      %2060 = vmatpush1.bf16.msra.mxu0 %v2048
      %2061 = vmatprep.subr.bf16.mxu0 0
      %2062 = vmatpush1.bf16.msra.mxu0 %v2050
      %2063 = vmatprep.subr.bf16.mxu0 0
      %2064 = vmatpush1.bf16.msra.mxu0 0
      %2065 = vmatprep.subr.bf16.mxu0 0
      %2066 = vmatpush1.bf16.msra.mxu0 0
      %2067 = vmatprep.subr.bf16.mxu0 0
      %2068 = vmatpush1.bf16.msra.mxu0 0
      %2069 = vmatprep.subr.bf16.mxu0 0
      %2070 = vmatpush1.bf16.msra.mxu0 0
      %2071 = vmatprep.subr.bf16.mxu0 0
      %2072 = vmatpush1.bf16.msra.mxu0 0
      %2073 = vmatprep.subr.bf16.mxu0 0
      %2074 = vmatpush1.bf16.msra.mxu0 0
      %2075 = vmatprep.subr.bf16.mxu0 0
      %2076 = vmatpush1.bf16.msra.mxu0 0
      %2077 = vmatprep.subr.bf16.mxu0 0
      %2078 = vmatpush1.bf16.msra.mxu0 0
      %2079 = vmatprep.subr.bf16.mxu0 0
      %2080 = vmatpush1.bf16.msra.mxu0 0
      %2081 = vmatprep.subr.bf16.mxu0 0
      %2082 = vmatpush1.bf16.msra.mxu0 0
      %2083 = vmatprep.subr.bf16.mxu0 0
      %2084 = vmatpush1.bf16.msra.mxu0 0
      %2085 = vmatprep.subr.bf16.mxu0 0
      %2086 = vmatpush1.bf16.msra.mxu0 0
      %2087 = vmatprep.subr.bf16.mxu0 0
      %2088 = vmatpush1.bf16.msra.mxu0 0
      %2089 = vmatprep.subr.bf16.mxu0 0
      %2090 = vmatpush1.bf16.msra.mxu0 0
      %2091 = vmatprep.mubr.bf16.mxu0 0
      %2092 = vmatmul.mubr.bf16.gmra.mrb[0].mxu0 %v2054
      %v2093 = vpop.f32.mrb[0].mxu0
      %v2094 = vadd.f32 0.0, %v2093
      %v2095 = vpop.f32.mrb[0].mxu0
      %v2096 = vpop.f32.mrb[0].mxu0
      %v2097 = vadd.f32 0.0, %v2096
      %v2098 = vpop.f32.mrb[0].mxu0
      %2099 = vmatprep.mubr.bf16.mxu0 0
      %2100 = vmatmul.mubr.bf16.gmra.mrb[0].mxu0 %v2057
      %v2101 = vpop.f32.mrb[0].mxu0
      %v2102 = vadd.f32 0.0, %v2101
      %v2103 = vpop.f32.mrb[0].mxu0
      %v2104 = vpop.f32.mrb[0].mxu0
      %v2105 = vadd.f32 0.0, %v2104
      %v2106 = vpop.f32.mrb[0].mxu0
      %2107 = vdwg.mxu0
      %2112 = vrot.lane.b32.xlu0 %v2094, 16
      %v2113 = vpop.permute.xlu0 %2112
      %2114 = vrot.lane.b32.xlu0 %v2097, 16
      %v2115 = vpop.permute.xlu0 %2114
      %2116 = vrot.lane.b32.xlu0 %v2102, 16
      %v2117 = vpop.permute.xlu0 %2116
      %2118 = vrot.lane.b32.xlu0 %v2105, 16
      %v2119 = vpop.permute.xlu0 %2118
      %v2124 = vsel %vm879, %v1910, %v2113
      %v2125 = vsel %vm879, %v1913, %v2115
      %v2126 = vsel %vm879, %v1918, %v2117
      %v2127 = vsel %vm879, %v1921, %v2119
      %v2128 = vpack.c.bf16 %v2125, %v2124
      %v2129 = vpack.c.bf16 %v2127, %v2126
      %s2130 = scalar_lea.vmem %s14, 16
      %v2131 = vld [vmem:[%s2130] sm:$0xf]
      %v2132 = vld [vmem:[%s2130 + $0x4] sm:$0xf]
      %v2133 = vld [vmem:[%s2130 + $0x8] sm:$0xf]
      %v2134 = vld [vmem:[%s2130 + $0xc] sm:$0xf]
      %v2135 = vlaneseq
      %v2136 = vshrl.u32 %v2135, 7
      %v2137 = vsub.s32 0, %v2136
      %v2138 = vrot.slane %v1657, %v2137
      %v2143 = vunpack.c.l.b16 %v2131
      %v2144 = vunpack.c.l.b16 %v2132
      %v2145 = vunpack.c.l.b16 %v2133
      %v2146 = vunpack.c.l.b16 %v2134
      %v2147 = vpack.c.b16 %v2144, %v2143
      %v2148 = vpack.c.b16 %v2146, %v2145
      %v2152 = vsel %vm815, %v2128, 0
      %v2155 = vsel %vm815, %v2129, 0
      %2157 = vmatprep.subr.bf16.mxu0 0
      %2158 = vmatpush1.bf16.msra.mxu0 %v2147
      %2159 = vmatprep.subr.bf16.mxu0 0
      %2160 = vmatpush1.bf16.msra.mxu0 %v2148
      %2161 = vmatprep.subr.bf16.mxu0 0
      %2162 = vmatpush1.bf16.msra.mxu0 0
      %2163 = vmatprep.subr.bf16.mxu0 0
      %2164 = vmatpush1.bf16.msra.mxu0 0
      %2165 = vmatprep.subr.bf16.mxu0 0
      %2166 = vmatpush1.bf16.msra.mxu0 0
      %2167 = vmatprep.subr.bf16.mxu0 0
      %2168 = vmatpush1.bf16.msra.mxu0 0
      %2169 = vmatprep.subr.bf16.mxu0 0
      %2170 = vmatpush1.bf16.msra.mxu0 0
      %2171 = vmatprep.subr.bf16.mxu0 0
      %2172 = vmatpush1.bf16.msra.mxu0 0
      %2173 = vmatprep.subr.bf16.mxu0 0
      %2174 = vmatpush1.bf16.msra.mxu0 0
      %2175 = vmatprep.subr.bf16.mxu0 0
      %2176 = vmatpush1.bf16.msra.mxu0 0
      %2177 = vmatprep.subr.bf16.mxu0 0
      %2178 = vmatpush1.bf16.msra.mxu0 0
      %2179 = vmatprep.subr.bf16.mxu0 0
      %2180 = vmatpush1.bf16.msra.mxu0 0
      %2181 = vmatprep.subr.bf16.mxu0 0
      %2182 = vmatpush1.bf16.msra.mxu0 0
      %2183 = vmatprep.subr.bf16.mxu0 0
      %2184 = vmatpush1.bf16.msra.mxu0 0
      %2185 = vmatprep.subr.bf16.mxu0 0
      %2186 = vmatpush1.bf16.msra.mxu0 0
      %2187 = vmatprep.subr.bf16.mxu0 0
      %2188 = vmatpush1.bf16.msra.mxu0 0
      %2189 = vmatprep.mubr.bf16.mxu0 0
      %2190 = vmatmul.mubr.bf16.gmra.mrb[0].mxu0 %v2152
      %v2191 = vpop.f32.mrb[0].mxu0
      %v2192 = vadd.f32 %v2138, %v2191
      %v2193 = vpop.f32.mrb[0].mxu0
      %v2194 = vpop.f32.mrb[0].mxu0
      %v2195 = vadd.f32 %v2138, %v2194
      %v2196 = vpop.f32.mrb[0].mxu0
      %2197 = vmatprep.mubr.bf16.mxu0 0
      %2198 = vmatmul.mubr.bf16.gmra.mrb[0].mxu0 %v2155
      %v2199 = vpop.f32.mrb[0].mxu0
      %v2200 = vadd.f32 %v2138, %v2199
      %v2201 = vpop.f32.mrb[0].mxu0
      %v2202 = vpop.f32.mrb[0].mxu0
      %v2203 = vadd.f32 %v2138, %v2202
      %v2204 = vpop.f32.mrb[0].mxu0
      %2205 = vdwg.mxu0
      %v2206 = vadd.f32 %v1652, %v2192
      %v2207 = vadd.f32 %v1653, %v2195
      %v2208 = vadd.f32 %v1654, %v2200
      %v2209 = vadd.f32 %v1655, %v2203
      %v2210 = vsel %vm815, %v2206, 0.0
      %2211 = vadd.xlane.f32.xlu0 %v2210
      %v2212 = vpop.xlane.xlu0 %2211
      %v2213 = vsel %vm815, %v2207, 0.0
      %2214 = vadd.xlane.f32.xlu0 %v2213
      %v2215 = vpop.xlane.xlu0 %2214
      %v2216 = vsel %vm815, %v2208, 0.0
      %2217 = vadd.xlane.f32.xlu0 %v2216
      %v2218 = vpop.xlane.xlu0 %2217
      %v2219 = vsel %vm815, %v2209, 0.0
      %2220 = vadd.xlane.f32.xlu0 %v2219
      %v2221 = vpop.xlane.xlu0 %2220
      %v2222 = vmul.f32 %v2212, %v1353
      %v2223 = vmul.f32 %v2215, %v1353
      %v2224 = vmul.f32 %v2218, %v1353
      %v2225 = vmul.f32 %v2221, %v1353
      %v2226 = vmul.f32 %v2206, %v2206
      %v2227 = vmul.f32 %v2207, %v2207
      %v2228 = vmul.f32 %v2208, %v2208
      %v2229 = vmul.f32 %v2209, %v2209
      %v2230 = vsel %vm815, %v2226, 0.0
      %2231 = vadd.xlane.f32.xlu0 %v2230
      %v2232 = vpop.xlane.xlu0 %2231
      %v2233 = vsel %vm815, %v2227, 0.0
      %2234 = vadd.xlane.f32.xlu0 %v2233
      %v2235 = vpop.xlane.xlu0 %2234
      %v2236 = vsel %vm815, %v2228, 0.0
      %2237 = vadd.xlane.f32.xlu0 %v2236
      %v2238 = vpop.xlane.xlu0 %2237
      %v2239 = vsel %vm815, %v2229, 0.0
      %2240 = vadd.xlane.f32.xlu0 %v2239
      %v2241 = vpop.xlane.xlu0 %2240
      %v2242 = vmul.f32 %v2232, %v1353
      %v2243 = vmul.f32 %v2235, %v1353
      %v2244 = vmul.f32 %v2238, %v1353
      %v2245 = vmul.f32 %v2241, %v1353
      %v2246 = vmul.f32 %v2222, %v2222
      %v2247 = vmul.f32 %v2223, %v2223
      %v2248 = vmul.f32 %v2224, %v2224
      %v2249 = vmul.f32 %v2225, %v2225
      %v2250 = vsub.f32 %v2242, %v2246
      %v2251 = vsub.f32 %v2243, %v2247
      %v2252 = vsub.f32 %v2244, %v2248
      %v2253 = vsub.f32 %v2245, %v2249
      %v2254 = vmax.f32 %v2250, 0.0
      %v2255 = vmax.f32 %v2251, 0.0
      %v2256 = vmax.f32 %v2252, 0.0
      %v2257 = vmax.f32 %v2253, 0.0
      %v2258 = vsub.f32 %v2206, %v2222
      %v2259 = vsub.f32 %v2207, %v2223
      %v2260 = vsub.f32 %v2208, %v2224
      %v2261 = vsub.f32 %v2209, %v2225
      %v2262 = vadd.f32 %v2254, 1e-05
      %v2263 = vadd.f32 %v2255, 1e-05
      %v2264 = vadd.f32 %v2256, 1e-05
      %v2265 = vadd.f32 %v2257, 1e-05
      %v2266 = vrsqrt.pop %v2262
      %v2267 = vrsqrt.pop %v2263
      %v2268 = vrsqrt.pop %v2264
      %v2269 = vrsqrt.pop %v2265
      %v2270 = vmul.f32 %v2258, %v2266
      %v2271 = vmul.f32 %v2259, %v2267
      %v2272 = vmul.f32 %v2260, %v2268
      %v2273 = vmul.f32 %v2261, %v2269
      %v2274 = vlaneseq
      %v2275 = vshrl.u32 %v2274, 7
      %v2276 = vsub.s32 1, %v2275
      %v2277 = vrot.slane %v1657, %v2276
      %v2278 = vmul.f32 %v2270, %v2277
      %v2279 = vmul.f32 %v2271, %v2277
      %v2280 = vmul.f32 %v2272, %v2277
      %v2281 = vmul.f32 %v2273, %v2277
      %v2282 = vlaneseq
      %v2283 = vshrl.u32 %v2282, 7
      %v2284 = vsub.s32 2, %v2283
      %v2285 = vrot.slane %v1657, %v2284
      %v2286 = vadd.f32 %v2278, %v2285
      %v2287 = vadd.f32 %v2279, %v2285
      %v2288 = vadd.f32 %v2280, %v2285
      %v2289 = vadd.f32 %v2281, %v2285
      %v2290 = vpack.c.bf16 %v2287, %v2286
      %v2291 = vpack.c.bf16 %v2289, %v2288
      %s2292 = scalar_lea.vmem %s15, 16
      %v2293 = vld [vmem:[%s2292] sm:$0xf]
      %v2294 = vld [vmem:[%s2292 + $0x4] sm:$0xf]
      %v2295 = vld [vmem:[%s2292 + $0x8] sm:$0xf]
      %v2296 = vld [vmem:[%s2292 + $0xc] sm:$0xf]
      %v2297 = vlaneseq
      %v2298 = vshrl.u32 %v2297, 7
      %v2299 = vsub.s32 5, %v2298
      %v2300 = vrot.slane %v1657, %v2299
      %v2305 = vunpack.c.l.b16 %v2293
      %v2306 = vunpack.c.l.b16 %v2294
      %v2307 = vunpack.c.l.b16 %v2295
      %v2308 = vunpack.c.l.b16 %v2296
      %v2309 = vpack.c.b16 %v2306, %v2305
      %v2310 = vpack.c.b16 %v2308, %v2307
      %v2314 = vsel %vm815, %v2290, 0
      %v2317 = vsel %vm815, %v2291, 0
      %2319 = vmatprep.subr.bf16.mxu0 0
      %2320 = vmatpush1.bf16.msra.mxu0 %v2309
      %2321 = vmatprep.subr.bf16.mxu0 0
      %2322 = vmatpush1.bf16.msra.mxu0 %v2310
      %2323 = vmatprep.subr.bf16.mxu0 0
      %2324 = vmatpush1.bf16.msra.mxu0 0
      %2325 = vmatprep.subr.bf16.mxu0 0
      %2326 = vmatpush1.bf16.msra.mxu0 0
      %2327 = vmatprep.subr.bf16.mxu0 0
      %2328 = vmatpush1.bf16.msra.mxu0 0
      %2329 = vmatprep.subr.bf16.mxu0 0
      %2330 = vmatpush1.bf16.msra.mxu0 0
      %2331 = vmatprep.subr.bf16.mxu0 0
      %2332 = vmatpush1.bf16.msra.mxu0 0
      %2333 = vmatprep.subr.bf16.mxu0 0
      %2334 = vmatpush1.bf16.msra.mxu0 0
      %2335 = vmatprep.subr.bf16.mxu0 0
      %2336 = vmatpush1.bf16.msra.mxu0 0
      %2337 = vmatprep.subr.bf16.mxu0 0
      %2338 = vmatpush1.bf16.msra.mxu0 0
      %2339 = vmatprep.subr.bf16.mxu0 0
      %2340 = vmatpush1.bf16.msra.mxu0 0
      %2341 = vmatprep.subr.bf16.mxu0 0
      %2342 = vmatpush1.bf16.msra.mxu0 0
      %2343 = vmatprep.subr.bf16.mxu0 0
      %2344 = vmatpush1.bf16.msra.mxu0 0
      %2345 = vmatprep.subr.bf16.mxu0 0
      %2346 = vmatpush1.bf16.msra.mxu0 0
      %2347 = vmatprep.subr.bf16.mxu0 0
      %2348 = vmatpush1.bf16.msra.mxu0 0
      %2349 = vmatprep.subr.bf16.mxu0 0
      %2350 = vmatpush1.bf16.msra.mxu0 0
      %2351 = vmatprep.mubr.bf16.mxu0 0
      %2352 = vmatmul.mubr.bf16.gmra.mrb[0].mxu0 %v2314
      %v2353 = vpop.f32.mrb[0].mxu0
      %v2354 = vadd.f32 %v2300, %v2353
      %v2355 = vpop.f32.mrb[0].mxu0
      %v2356 = vpop.f32.mrb[0].mxu0
      %v2357 = vadd.f32 %v2300, %v2356
      %v2358 = vpop.f32.mrb[0].mxu0
      %2359 = vmatprep.mubr.bf16.mxu0 0
      %2360 = vmatmul.mubr.bf16.gmra.mrb[0].mxu0 %v2317
      %v2361 = vpop.f32.mrb[0].mxu0
      %v2362 = vadd.f32 %v2300, %v2361
      %v2363 = vpop.f32.mrb[0].mxu0
      %v2364 = vpop.f32.mrb[0].mxu0
      %v2365 = vadd.f32 %v2300, %v2364
      %v2366 = vpop.f32.mrb[0].mxu0
      %2367 = vdwg.mxu0
      %v2368 = vmax.f32 %v2354, 0.0
      %v2369 = vmax.f32 %v2357, 0.0
      %v2370 = vmax.f32 %v2362, 0.0
      %v2371 = vmax.f32 %v2365, 0.0
      %v2372 = vpack.c.bf16 %v2369, %v2368
      %v2373 = vpack.c.bf16 %v2371, %v2370
      %s2374 = scalar_lea.vmem %s16, 8
      %v2375 = vld [vmem:[%s2374] sm:$0xf]
      %v2376 = vld [vmem:[%s2374 + $0x4] sm:$0xf]
      %v2377 = vlaneseq
      %v2378 = vshrl.u32 %v2377, 7
      %v2379 = vsub.s32 6, %v2378
      %v2380 = vrot.slane %v1657, %v2379
      %v2383 = vunpack.c.l.b16 %v2375
      %v2384 = vunpack.c.l.b16 %v2376
      %v2385 = vpack.c.b16 %v2384, %v2383
      %v2388 = vsel %vm879, %v2372, 0
      %v2391 = vsel %vm879, %v2373, 0
      %2393 = vmatprep.subr.bf16.mxu0 0
      %2394 = vmatpush1.bf16.msra.mxu0 %v2385
      %2395 = vmatprep.subr.bf16.mxu0 0
      %2396 = vmatpush1.bf16.msra.mxu0 0
      %2397 = vmatprep.subr.bf16.mxu0 0
      %2398 = vmatpush1.bf16.msra.mxu0 0
      %2399 = vmatprep.subr.bf16.mxu0 0
      %2400 = vmatpush1.bf16.msra.mxu0 0
      %2401 = vmatprep.subr.bf16.mxu0 0
      %2402 = vmatpush1.bf16.msra.mxu0 0
      %2403 = vmatprep.subr.bf16.mxu0 0
      %2404 = vmatpush1.bf16.msra.mxu0 0
      %2405 = vmatprep.subr.bf16.mxu0 0
      %2406 = vmatpush1.bf16.msra.mxu0 0
      %2407 = vmatprep.subr.bf16.mxu0 0
      %2408 = vmatpush1.bf16.msra.mxu0 0
      %2409 = vmatprep.subr.bf16.mxu0 0
      %2410 = vmatpush1.bf16.msra.mxu0 0
      %2411 = vmatprep.subr.bf16.mxu0 0
      %2412 = vmatpush1.bf16.msra.mxu0 0
      %2413 = vmatprep.subr.bf16.mxu0 0
      %2414 = vmatpush1.bf16.msra.mxu0 0
      %2415 = vmatprep.subr.bf16.mxu0 0
      %2416 = vmatpush1.bf16.msra.mxu0 0
      %2417 = vmatprep.subr.bf16.mxu0 0
      %2418 = vmatpush1.bf16.msra.mxu0 0
      %2419 = vmatprep.subr.bf16.mxu0 0
      %2420 = vmatpush1.bf16.msra.mxu0 0
      %2421 = vmatprep.subr.bf16.mxu0 0
      %2422 = vmatpush1.bf16.msra.mxu0 0
      %2423 = vmatprep.subr.bf16.mxu0 0
      %2424 = vmatpush1.bf16.msra.mxu0 0
      %2425 = vmatprep.mubr.bf16.mxu0 0
      %2426 = vmatmul.mubr.bf16.gmra.mrb[0].mxu0 %v2388
      %v2427 = vpop.f32.mrb[0].mxu0
      %v2428 = vadd.f32 %v2380, %v2427
      %v2429 = vpop.f32.mrb[0].mxu0
      %v2430 = vpop.f32.mrb[0].mxu0
      %v2431 = vpop.f32.mrb[0].mxu0
      %2432 = vmatprep.mubr.bf16.mxu0 0
      %2433 = vmatmul.mubr.bf16.gmra.mrb[0].mxu0 %v2391
      %v2434 = vpop.f32.mrb[0].mxu0
      %v2435 = vadd.f32 %v2380, %v2434
      %v2436 = vpop.f32.mrb[0].mxu0
      %v2437 = vpop.f32.mrb[0].mxu0
      %v2438 = vpop.f32.mrb[0].mxu0
      %2439 = vdwg.mxu0
      %v2440 = vadd.f32 %v2286, %v2428
      %v2441 = vadd.f32 %v2288, %v2435
      %v2442 = vsel %vm815, %v2440, 0.0
      %2443 = vadd.xlane.f32.xlu0 %v2442
      %v2444 = vpop.xlane.xlu0 %2443
      %v2445 = vsel %vm815, %v2441, 0.0
      %2446 = vadd.xlane.f32.xlu0 %v2445
      %v2447 = vpop.xlane.xlu0 %2446
      %v2448 = vmul.f32 %v2444, %v1353
      %v2449 = vmul.f32 %v2447, %v1353
      %v2450 = vmul.f32 %v2440, %v2440
      %v2451 = vmul.f32 %v2441, %v2441
      %v2452 = vsel %vm815, %v2450, 0.0
      %2453 = vadd.xlane.f32.xlu0 %v2452
      %v2454 = vpop.xlane.xlu0 %2453
      %v2455 = vsel %vm815, %v2451, 0.0
      %2456 = vadd.xlane.f32.xlu0 %v2455
      %v2457 = vpop.xlane.xlu0 %2456
      %v2458 = vmul.f32 %v2454, %v1353
      %v2459 = vmul.f32 %v2457, %v1353
      %v2460 = vmul.f32 %v2448, %v2448
      %v2461 = vmul.f32 %v2449, %v2449
      %v2462 = vsub.f32 %v2458, %v2460
      %v2463 = vsub.f32 %v2459, %v2461
      %v2464 = vmax.f32 %v2462, 0.0
      %v2465 = vmax.f32 %v2463, 0.0
      %v2466 = vsub.f32 %v2440, %v2448
      %v2467 = vsub.f32 %v2441, %v2449
      %v2468 = vadd.f32 %v2464, 1e-05
      %v2469 = vadd.f32 %v2465, 1e-05
      %v2470 = vrsqrt.pop %v2468
      %v2471 = vrsqrt.pop %v2469
      %v2472 = vmul.f32 %v2466, %v2470
      %v2473 = vmul.f32 %v2467, %v2471
      %v2474 = vlaneseq
      %v2475 = vshrl.u32 %v2474, 7
      %v2476 = vsub.s32 3, %v2475
      %v2477 = vrot.slane %v1657, %v2476
      %v2478 = vmul.f32 %v2472, %v2477
      %v2479 = vmul.f32 %v2473, %v2477
      %v2480 = vlaneseq
      %v2481 = vshrl.u32 %v2480, 7
      %v2482 = vsub.s32 4, %v2481
      %v2483 = vrot.slane %v1657, %v2482
      %v2484 = vadd.f32 %v2478, %v2483
      %v2485 = vadd.f32 %v2479, %v2483
      %v2486 = vpack.c.bf16 %v2484, %v2484
      %v2487 = vpack.c.bf16 %v2485, %v2485
      %v2488 = vld [vmem:[%s10] sm:$0xf]
      %v2489 = vld [vmem:[%s10 + $0x4] sm:$0xf]
      %v2490 = vld [vmem:[%s10 + $0x8] sm:$0xf]
      %v2491 = vld [vmem:[%s10 + $0xc] sm:$0xf]
      %v2492 = vld [vmem:[%s11] sm:$0x1]
      %v2494 = vlaneseq
      %v2495 = vshrl.u32 %v2494, 7
      %v2496 = vsub.s32 0, %v2495
      %v2497 = vrot.slane %v2492, %v2496
      %v2501 = vunpack.c.l.b16 %v2486
      %v2502 = vunpack.c.l.b16 %v2487
      %v2503 = vrot.slane %v2502, 7
      %vm2504 = vcmask 1041409
      %v2505 = vsel %vm2504, %v2503, %v2501
      %v2506 = vpack.c.b16 %v2505, %v2505
      %v2511 = vunpack.c.l.b16 %v2488
      %v2512 = vunpack.c.l.b16 %v2489
      %v2513 = vunpack.c.l.b16 %v2490
      %v2514 = vunpack.c.l.b16 %v2491
      %v2515 = vpack.c.b16 %v2512, %v2511
      %v2516 = vpack.c.b16 %v2514, %v2513
      %v2520 = vsel %vm815, %v2506, 0
      %2522 = vmatprep.subr.bf16.mxu0 0
      %2523 = vmatpush1.bf16.msra.mxu0 %v2515
      %2524 = vmatprep.subr.bf16.mxu0 0
      %2525 = vmatpush1.bf16.msra.mxu0 %v2516
      %2526 = vmatprep.subr.bf16.mxu0 0
      %2527 = vmatpush1.bf16.msra.mxu0 0
      %2528 = vmatprep.subr.bf16.mxu0 0
      %2529 = vmatpush1.bf16.msra.mxu0 0
      %2530 = vmatprep.subr.bf16.mxu0 0
      %2531 = vmatpush1.bf16.msra.mxu0 0
      %2532 = vmatprep.subr.bf16.mxu0 0
      %2533 = vmatpush1.bf16.msra.mxu0 0
      %2534 = vmatprep.subr.bf16.mxu0 0
      %2535 = vmatpush1.bf16.msra.mxu0 0
      %2536 = vmatprep.subr.bf16.mxu0 0
      %2537 = vmatpush1.bf16.msra.mxu0 0
      %2538 = vmatprep.subr.bf16.mxu0 0
      %2539 = vmatpush1.bf16.msra.mxu0 0
      %2540 = vmatprep.subr.bf16.mxu0 0
      %2541 = vmatpush1.bf16.msra.mxu0 0
      %2542 = vmatprep.subr.bf16.mxu0 0
      %2543 = vmatpush1.bf16.msra.mxu0 0
      %2544 = vmatprep.subr.bf16.mxu0 0
      %2545 = vmatpush1.bf16.msra.mxu0 0
      %2546 = vmatprep.subr.bf16.mxu0 0
      %2547 = vmatpush1.bf16.msra.mxu0 0
      %2548 = vmatprep.subr.bf16.mxu0 0
      %2549 = vmatpush1.bf16.msra.mxu0 0
      %2550 = vmatprep.subr.bf16.mxu0 0
      %2551 = vmatpush1.bf16.msra.mxu0 0
      %2552 = vmatprep.subr.bf16.mxu0 0
      %2553 = vmatpush1.bf16.msra.mxu0 0
      %2554 = vmatprep.mubr.bf16.mxu0 0
      %2555 = vmatmul.mubr.bf16.gmra.mrb[0].mxu0 %v2520
      %v2556 = vpop.f32.mrb[0].mxu0
      %v2557 = vadd.f32 %v2497, %v2556
      %v2558 = vpop.f32.mrb[0].mxu0
      %v2559 = vpop.f32.mrb[0].mxu0
      %v2560 = vpop.f32.mrb[0].mxu0
      %2561 = vdwg.mxu0
      %v2562 = vld [vmem:[%s8] sm:$0xf]
      %v2563 = vld [vmem:[%s8 + $0x4] sm:$0xf]
      %v2564 = vld [vmem:[%s8 + $0x8] sm:$0xf]
      %v2565 = vld [vmem:[%s8 + $0xc] sm:$0xf]
      %v2570 = vunpack.c.l.b16 %v2562
      %v2571 = vunpack.c.l.b16 %v2563
      %v2572 = vunpack.c.l.b16 %v2564
      %v2573 = vunpack.c.l.b16 %v2565
      %v2574 = vpack.c.b16 %v2571, %v2570
      %v2575 = vpack.c.b16 %v2573, %v2572
      %2578 = vmatprep.subr.bf16.mxu0 0
      %2579 = vmatpush1.bf16.msra.mxu0 %v2574
      %2580 = vmatprep.subr.bf16.mxu0 0
      %2581 = vmatpush1.bf16.msra.mxu0 %v2575
      %2582 = vmatprep.subr.bf16.mxu0 0
      %2583 = vmatpush1.bf16.msra.mxu0 0
      %2584 = vmatprep.subr.bf16.mxu0 0
      %2585 = vmatpush1.bf16.msra.mxu0 0
      %2586 = vmatprep.subr.bf16.mxu0 0
      %2587 = vmatpush1.bf16.msra.mxu0 0
      %2588 = vmatprep.subr.bf16.mxu0 0
      %2589 = vmatpush1.bf16.msra.mxu0 0
      %2590 = vmatprep.subr.bf16.mxu0 0
      %2591 = vmatpush1.bf16.msra.mxu0 0
      %2592 = vmatprep.subr.bf16.mxu0 0
      %2593 = vmatpush1.bf16.msra.mxu0 0
      %2594 = vmatprep.subr.bf16.mxu0 0
      %2595 = vmatpush1.bf16.msra.mxu0 0
      %2596 = vmatprep.subr.bf16.mxu0 0
      %2597 = vmatpush1.bf16.msra.mxu0 0
      %2598 = vmatprep.subr.bf16.mxu0 0
      %2599 = vmatpush1.bf16.msra.mxu0 0
      %2600 = vmatprep.subr.bf16.mxu0 0
      %2601 = vmatpush1.bf16.msra.mxu0 0
      %2602 = vmatprep.subr.bf16.mxu0 0
      %2603 = vmatpush1.bf16.msra.mxu0 0
      %2604 = vmatprep.subr.bf16.mxu0 0
      %2605 = vmatpush1.bf16.msra.mxu0 0
      %2606 = vmatprep.subr.bf16.mxu0 0
      %2607 = vmatpush1.bf16.msra.mxu0 0
      %2608 = vmatprep.subr.bf16.mxu0 0
      %2609 = vmatpush1.bf16.msra.mxu0 0
      %2610 = vmatprep.mubr.bf16.mxu0 0
      %2611 = vmatmul.mubr.bf16.gmra.mrb[0].mxu0 %v2520
      %v2612 = vpop.f32.mrb[0].mxu0
      %v2613 = vadd.f32 0.0, %v2612
      %v2614 = vpop.f32.mrb[0].mxu0
      %v2615 = vpop.f32.mrb[0].mxu0
      %v2616 = vpop.f32.mrb[0].mxu0
      %2617 = vdwg.mxu0
      %v2620 = vunpack.c.l.s4 1966171168
      %v2621 = vunpack.c.0.s8 %v2620
      %v2622 = vlaneseq
      %v2623 = vshrl.u32 %v2622, 7
      %v2624 = vsub.s32 %v2621, %v2623
      %v2625 = vrot.slane %v2613, %v2624
      %v2626 = vcombine.high %v2625, %v2625
      %v2628 = vunpack.c.l.s4 1966171168
      %v2629 = vunpack.c.0.s8 %v2628
      %v2630 = vlaneseq
      %v2631 = vshrl.u32 %v2630, 7
      %v2632 = vsub.s32 %v2629, %v2631
      %v2633 = vrot.slane %v2625, %v2632
      %v2635 = vunpack.c.l.s4 1966171168
      %v2636 = vunpack.c.0.s8 %v2635
      %v2637 = vlaneseq
      %v2638 = vshrl.u32 %v2637, 7
      %v2639 = vsub.s32 %v2636, %v2638
      %v2640 = vrot.slane %v2626, %v2639
      %v2641 = vld [vmem:[%s9] sm:$0xff]
      %v2642 = vlaneseq
      %v2643 = vshrl.u32 %v2642, 7
      %v2644 = vsub.s32 0, %v2643
      %v2645 = vrot.slane %v2633, %v2644
      %v2646 = vlaneseq
      %v2647 = vshrl.u32 %v2646, 7
      %v2648 = vsub.s32 0, %v2647
      %v2649 = vrot.slane %v2640, %v2648
      %v2652 = vadd.f32 %v2645, %v2641
      %v2653 = vadd.f32 %v2649, %v2641
      %v2654 = vmax.f32 %v2652, 0.0
      %v2655 = vmax.f32 %v2653, 0.0
      %v2656 = vld [vmem:[%s634] sm:$0xff]
      %v2657 = vld [vmem:[%s634 + $0x8] sm:$0xff]
      %s2658 = scalar_lea.vmem %s17, 16
      %v2659 = vld [vmem:[%s2658] sm:$0x7f]
      %v2660 = vpack.c.bf16 %v2655, %v2654
      %s2661 = scalar_lea.vmem %s12, 32
      %v2662 = vld [vmem:[%s2661] sm:$0xf]
      %v2663 = vld [vmem:[%s2661 + $0x4] sm:$0xf]
      %v2664 = vld [vmem:[%s2661 + $0x8] sm:$0xf]
      %v2665 = vld [vmem:[%s2661 + $0xc] sm:$0xf]
      %s2666 = scalar_lea.vmem %s13, 2
      %v2667 = vld [vmem:[%s2666] sm:$0x1]
      %v2669 = vlaneseq
      %v2670 = vshrl.u32 %v2669, 7
      %v2671 = vsub.s32 0, %v2670
      %v2672 = vrot.slane %v2667, %v2671
      %v2678 = vunpack.c.l.b16 %v2662
      %v2679 = vunpack.c.l.b16 %v2663
      %v2680 = vunpack.c.l.b16 %v2664
      %v2681 = vunpack.c.l.b16 %v2665
      %v2682 = vpack.c.b16 %v2679, %v2678
      %v2683 = vpack.c.b16 %v2681, %v2680
      %v2687 = vsel %vm815, %v2660, 0
      %2689 = vmatprep.subr.bf16.mxu0 0
      %2690 = vmatpush1.bf16.msra.mxu0 %v2682
      %2691 = vmatprep.subr.bf16.mxu0 0
      %2692 = vmatpush1.bf16.msra.mxu0 %v2683
      %2693 = vmatprep.subr.bf16.mxu0 0
      %2694 = vmatpush1.bf16.msra.mxu0 0
      %2695 = vmatprep.subr.bf16.mxu0 0
      %2696 = vmatpush1.bf16.msra.mxu0 0
      %2697 = vmatprep.subr.bf16.mxu0 0
      %2698 = vmatpush1.bf16.msra.mxu0 0
      %2699 = vmatprep.subr.bf16.mxu0 0
      %2700 = vmatpush1.bf16.msra.mxu0 0
      %2701 = vmatprep.subr.bf16.mxu0 0
      %2702 = vmatpush1.bf16.msra.mxu0 0
      %2703 = vmatprep.subr.bf16.mxu0 0
      %2704 = vmatpush1.bf16.msra.mxu0 0
      %2705 = vmatprep.subr.bf16.mxu0 0
      %2706 = vmatpush1.bf16.msra.mxu0 0
      %2707 = vmatprep.subr.bf16.mxu0 0
      %2708 = vmatpush1.bf16.msra.mxu0 0
      %2709 = vmatprep.subr.bf16.mxu0 0
      %2710 = vmatpush1.bf16.msra.mxu0 0
      %2711 = vmatprep.subr.bf16.mxu0 0
      %2712 = vmatpush1.bf16.msra.mxu0 0
      %2713 = vmatprep.subr.bf16.mxu0 0
      %2714 = vmatpush1.bf16.msra.mxu0 0
      %2715 = vmatprep.subr.bf16.mxu0 0
      %2716 = vmatpush1.bf16.msra.mxu0 0
      %2717 = vmatprep.subr.bf16.mxu0 0
      %2718 = vmatpush1.bf16.msra.mxu0 0
      %2719 = vmatprep.subr.bf16.mxu0 0
      %2720 = vmatpush1.bf16.msra.mxu0 0
      %2721 = vmatprep.mubr.bf16.mxu0 0
      %2722 = vmatmul.mubr.bf16.gmra.mrb[0].mxu0 %v2687
      %v2723 = vpop.f32.mrb[0].mxu0
      %v2724 = vadd.f32 %v2672, %v2723
      %v2725 = vpop.f32.mrb[0].mxu0
      %v2726 = vpop.f32.mrb[0].mxu0
      %v2727 = vadd.f32 %v2672, %v2726
      %v2728 = vpop.f32.mrb[0].mxu0
      %2729 = vdwg.mxu0
      %v2730 = vpack.c.bf16 %v2727, %v2724
      %2732 = vrot.lane.b32.xlu0 %v2730, 96
      %v2733 = vpop.permute.xlu0 %2732
      %v2735 = vsel %vm879, %v2730, 0
      %v2738 = vsel %vm879, %v2733, 0
      %2740 = vmatprep.subr.bf16.mxu0 0
      %2741 = vmatpush1.bf16.xpose.msra.mxu0 %v2738
      %2742 = vmatprep.subr.bf16.mxu0 0
      %2743 = vmatpush1.bf16.xpose.msra.mxu0 0
      %2744 = vmatprep.subr.bf16.mxu0 0
      %2745 = vmatpush1.bf16.xpose.msra.mxu0 0
      %2746 = vmatprep.subr.bf16.mxu0 0
      %2747 = vmatpush1.bf16.xpose.msra.mxu0 0
      %2748 = vmatprep.subr.bf16.mxu0 0
      %2749 = vmatpush1.bf16.xpose.msra.mxu0 0
      %2750 = vmatprep.subr.bf16.mxu0 0
      %2751 = vmatpush1.bf16.xpose.msra.mxu0 0
      %2752 = vmatprep.subr.bf16.mxu0 0
      %2753 = vmatpush1.bf16.xpose.msra.mxu0 0
      %2754 = vmatprep.subr.bf16.mxu0 0
      %2755 = vmatpush1.bf16.xpose.msra.mxu0 0
      %2756 = vmatprep.subr.bf16.mxu0 0
      %2757 = vmatpush1.bf16.xpose.msra.mxu0 0
      %2758 = vmatprep.subr.bf16.mxu0 0
      %2759 = vmatpush1.bf16.xpose.msra.mxu0 0
      %2760 = vmatprep.subr.bf16.mxu0 0
      %2761 = vmatpush1.bf16.xpose.msra.mxu0 0
      %2762 = vmatprep.subr.bf16.mxu0 0
      %2763 = vmatpush1.bf16.xpose.msra.mxu0 0
      %2764 = vmatprep.subr.bf16.mxu0 0
      %2765 = vmatpush1.bf16.xpose.msra.mxu0 0
      %2766 = vmatprep.subr.bf16.mxu0 0
      %2767 = vmatpush1.bf16.xpose.msra.mxu0 0
      %2768 = vmatprep.subr.bf16.mxu0 0
      %2769 = vmatpush1.bf16.xpose.msra.mxu0 0
      %2770 = vmatprep.subr.bf16.mxu0 0
      %2771 = vmatpush1.bf16.xpose.msra.mxu0 0
      %2772 = vmatprep.mubr.bf16.mxu0 0
      %2773 = vmatmul.mubr.bf16.gmra.mrb[0].mxu0 %v2735
      %v2774 = vpop.f32.mrb[0].mxu0
      %v2775 = vadd.f32 0.0, %v2774
      %v2776 = vpop.f32.mrb[0].mxu0
      %v2777 = vpop.f32.mrb[0].mxu0
      %v2778 = vadd.f32 0.0, %v2777
      %v2779 = vpop.f32.mrb[0].mxu0
      %2780 = vdwg.mxu0
      %v2781 = vmul.f32 %v2775, 0.25
      %v2782 = vmul.f32 %v2778, 0.25
      %v2783 = vadd.f32 %v2781, %v2656
      %v2784 = vadd.f32 %v2782, %v2657
      %v2785 = vsel %vm879, %v2783, -inf
      %2786 = vmax.xlane.f32.xlu0 %v2785
      %v2787 = vpop.xlane.xlu0 %2786
      %v2788 = vsel %vm879, %v2784, -inf
      %2789 = vmax.xlane.f32.xlu0 %v2788
      %v2790 = vpop.xlane.xlu0 %2789
      %v2791 = vsub.f32 %v2783, %v2787
      %v2792 = vsub.f32 %v2784, %v2790
      %v2793 = vmul.f32 %v2791, 1.442695
      %v2794 = vpow.pop %v2793
      %v2795 = vmul.f32 %v2792, 1.442695
      %v2796 = vpow.pop %v2795
      %v2797 = vsel %vm879, %v2794, 0.0
      %2798 = vadd.xlane.f32.xlu0 %v2797
      %v2799 = vpop.xlane.xlu0 %2798
      %v2800 = vsel %vm879, %v2796, 0.0
      %2801 = vadd.xlane.f32.xlu0 %v2800
      %v2802 = vpop.xlane.xlu0 %2801
      %v2803 = vrcp.pop %v2799
      %v2804 = vrcp.pop %v2802
      %v2805 = vmul.f32 %v2794, %v2803
      %v2806 = vmul.f32 %v2796, %v2804
      %v2807 = vpack.c.bf16 %v2806, %v2805
      %2808 = vrot.lane.b32.xlu0 %v2730, 64
      %v2809 = vpop.permute.xlu0 %2808
      %v2812 = vsel %vm879, %v2807, 0
      %2814 = vmatprep.subr.bf16.mxu0 0
      %2815 = vmatpush1.bf16.msra.mxu0 %v2809
      %2816 = vmatprep.subr.bf16.mxu0 0
      %2817 = vmatpush1.bf16.msra.mxu0 0
      %2818 = vmatprep.subr.bf16.mxu0 0
      %2819 = vmatpush1.bf16.msra.mxu0 0
      %2820 = vmatprep.subr.bf16.mxu0 0
      %2821 = vmatpush1.bf16.msra.mxu0 0
      %2822 = vmatprep.subr.bf16.mxu0 0
      %2823 = vmatpush1.bf16.msra.mxu0 0
      %2824 = vmatprep.subr.bf16.mxu0 0
      %2825 = vmatpush1.bf16.msra.mxu0 0
      %2826 = vmatprep.subr.bf16.mxu0 0
      %2827 = vmatpush1.bf16.msra.mxu0 0
      %2828 = vmatprep.subr.bf16.mxu0 0
      %2829 = vmatpush1.bf16.msra.mxu0 0
      %2830 = vmatprep.subr.bf16.mxu0 0
      %2831 = vmatpush1.bf16.msra.mxu0 0
      %2832 = vmatprep.subr.bf16.mxu0 0
      %2833 = vmatpush1.bf16.msra.mxu0 0
      %2834 = vmatprep.subr.bf16.mxu0 0
      %2835 = vmatpush1.bf16.msra.mxu0 0
      %2836 = vmatprep.subr.bf16.mxu0 0
      %2837 = vmatpush1.bf16.msra.mxu0 0
      %2838 = vmatprep.subr.bf16.mxu0 0
      %2839 = vmatpush1.bf16.msra.mxu0 0
      %2840 = vmatprep.subr.bf16.mxu0 0
      %2841 = vmatpush1.bf16.msra.mxu0 0
      %2842 = vmatprep.subr.bf16.mxu0 0
      %2843 = vmatpush1.bf16.msra.mxu0 0
      %2844 = vmatprep.subr.bf16.mxu0 0
      %2845 = vmatpush1.bf16.msra.mxu0 0
      %2846 = vmatprep.mubr.bf16.mxu0 0
      %2847 = vmatmul.mubr.bf16.gmra.mrb[0].mxu0 %v2812
      %v2848 = vpop.f32.mrb[0].mxu0
      %v2849 = vadd.f32 0.0, %v2848
      %v2850 = vpop.f32.mrb[0].mxu0
      %v2851 = vpop.f32.mrb[0].mxu0
      %v2852 = vadd.f32 0.0, %v2851
      %v2853 = vpop.f32.mrb[0].mxu0
      %2854 = vdwg.mxu0
      %2855 = vrot.lane.b32.xlu0 %v2730, 112
      %v2856 = vpop.permute.xlu0 %2855
      %2857 = vrot.lane.b32.xlu0 %v2730, 80
      %v2858 = vpop.permute.xlu0 %2857
      %v2860 = vsel %vm879, %v2856, 0
      %v2863 = vsel %vm879, %v2858, 0
      %2865 = vmatprep.subr.bf16.mxu0 0
      %2866 = vmatpush1.bf16.xpose.msra.mxu0 %v2863
      %2867 = vmatprep.subr.bf16.mxu0 0
      %2868 = vmatpush1.bf16.xpose.msra.mxu0 0
      %2869 = vmatprep.subr.bf16.mxu0 0
      %2870 = vmatpush1.bf16.xpose.msra.mxu0 0
      %2871 = vmatprep.subr.bf16.mxu0 0
      %2872 = vmatpush1.bf16.xpose.msra.mxu0 0
      %2873 = vmatprep.subr.bf16.mxu0 0
      %2874 = vmatpush1.bf16.xpose.msra.mxu0 0
      %2875 = vmatprep.subr.bf16.mxu0 0
      %2876 = vmatpush1.bf16.xpose.msra.mxu0 0
      %2877 = vmatprep.subr.bf16.mxu0 0
      %2878 = vmatpush1.bf16.xpose.msra.mxu0 0
      %2879 = vmatprep.subr.bf16.mxu0 0
      %2880 = vmatpush1.bf16.xpose.msra.mxu0 0
      %2881 = vmatprep.subr.bf16.mxu0 0
      %2882 = vmatpush1.bf16.xpose.msra.mxu0 0
      %2883 = vmatprep.subr.bf16.mxu0 0
      %2884 = vmatpush1.bf16.xpose.msra.mxu0 0
      %2885 = vmatprep.subr.bf16.mxu0 0
      %2886 = vmatpush1.bf16.xpose.msra.mxu0 0
      %2887 = vmatprep.subr.bf16.mxu0 0
      %2888 = vmatpush1.bf16.xpose.msra.mxu0 0
      %2889 = vmatprep.subr.bf16.mxu0 0
      %2890 = vmatpush1.bf16.xpose.msra.mxu0 0
      %2891 = vmatprep.subr.bf16.mxu0 0
      %2892 = vmatpush1.bf16.xpose.msra.mxu0 0
      %2893 = vmatprep.subr.bf16.mxu0 0
      %2894 = vmatpush1.bf16.xpose.msra.mxu0 0
      %2895 = vmatprep.subr.bf16.mxu0 0
      %2896 = vmatpush1.bf16.xpose.msra.mxu0 0
      %2897 = vmatprep.mubr.bf16.mxu0 0
      %2898 = vmatmul.mubr.bf16.gmra.mrb[0].mxu0 %v2860
      %v2899 = vpop.f32.mrb[0].mxu0
      %v2900 = vadd.f32 0.0, %v2899
      %v2901 = vpop.f32.mrb[0].mxu0
      %v2902 = vpop.f32.mrb[0].mxu0
      %v2903 = vadd.f32 0.0, %v2902
      %v2904 = vpop.f32.mrb[0].mxu0
      %2905 = vdwg.mxu0
      %v2906 = vmul.f32 %v2900, 0.25
      %v2907 = vmul.f32 %v2903, 0.25
      %v2908 = vadd.f32 %v2906, %v2656
      %v2909 = vadd.f32 %v2907, %v2657
      %v2910 = vsel %vm879, %v2908, -inf
      %2911 = vmax.xlane.f32.xlu0 %v2910
      %v2912 = vpop.xlane.xlu0 %2911
      %v2913 = vsel %vm879, %v2909, -inf
      %2914 = vmax.xlane.f32.xlu0 %v2913
      %v2915 = vpop.xlane.xlu0 %2914
      %v2916 = vsub.f32 %v2908, %v2912
      %v2917 = vsub.f32 %v2909, %v2915
      %v2918 = vmul.f32 %v2916, 1.442695
      %v2919 = vpow.pop %v2918
      %v2920 = vmul.f32 %v2917, 1.442695
      %v2921 = vpow.pop %v2920
      %v2922 = vsel %vm879, %v2919, 0.0
      %2923 = vadd.xlane.f32.xlu0 %v2922
      %v2924 = vpop.xlane.xlu0 %2923
      %v2925 = vsel %vm879, %v2921, 0.0
      %2926 = vadd.xlane.f32.xlu0 %v2925
      %v2927 = vpop.xlane.xlu0 %2926
      %v2928 = vrcp.pop %v2924
      %v2929 = vrcp.pop %v2927
      %v2930 = vmul.f32 %v2919, %v2928
      %v2931 = vmul.f32 %v2921, %v2929
      %v2932 = vpack.c.bf16 %v2931, %v2930
      %2933 = vrot.lane.b32.xlu0 %v2730, 48
      %v2934 = vpop.permute.xlu0 %2933
      %v2937 = vsel %vm879, %v2932, 0
      %2939 = vmatprep.subr.bf16.mxu0 0
      %2940 = vmatpush1.bf16.msra.mxu0 %v2934
      %2941 = vmatprep.subr.bf16.mxu0 0
      %2942 = vmatpush1.bf16.msra.mxu0 0
      %2943 = vmatprep.subr.bf16.mxu0 0
      %2944 = vmatpush1.bf16.msra.mxu0 0
      %2945 = vmatprep.subr.bf16.mxu0 0
      %2946 = vmatpush1.bf16.msra.mxu0 0
      %2947 = vmatprep.subr.bf16.mxu0 0
      %2948 = vmatpush1.bf16.msra.mxu0 0
      %2949 = vmatprep.subr.bf16.mxu0 0
      %2950 = vmatpush1.bf16.msra.mxu0 0
      %2951 = vmatprep.subr.bf16.mxu0 0
      %2952 = vmatpush1.bf16.msra.mxu0 0
      %2953 = vmatprep.subr.bf16.mxu0 0
      %2954 = vmatpush1.bf16.msra.mxu0 0
      %2955 = vmatprep.subr.bf16.mxu0 0
      %2956 = vmatpush1.bf16.msra.mxu0 0
      %2957 = vmatprep.subr.bf16.mxu0 0
      %2958 = vmatpush1.bf16.msra.mxu0 0
      %2959 = vmatprep.subr.bf16.mxu0 0
      %2960 = vmatpush1.bf16.msra.mxu0 0
      %2961 = vmatprep.subr.bf16.mxu0 0
      %2962 = vmatpush1.bf16.msra.mxu0 0
      %2963 = vmatprep.subr.bf16.mxu0 0
      %2964 = vmatpush1.bf16.msra.mxu0 0
      %2965 = vmatprep.subr.bf16.mxu0 0
      %2966 = vmatpush1.bf16.msra.mxu0 0
      %2967 = vmatprep.subr.bf16.mxu0 0
      %2968 = vmatpush1.bf16.msra.mxu0 0
      %2969 = vmatprep.subr.bf16.mxu0 0
      %2970 = vmatpush1.bf16.msra.mxu0 0
      %2971 = vmatprep.mubr.bf16.mxu0 0
      %2972 = vmatmul.mubr.bf16.gmra.mrb[0].mxu0 %v2937
      %v2973 = vpop.f32.mrb[0].mxu0
      %v2974 = vadd.f32 0.0, %v2973
      %v2975 = vpop.f32.mrb[0].mxu0
      %v2976 = vpop.f32.mrb[0].mxu0
      %v2977 = vadd.f32 0.0, %v2976
      %v2978 = vpop.f32.mrb[0].mxu0
      %2979 = vdwg.mxu0
      %2982 = vrot.lane.b32.xlu0 %v2974, 16
      %v2983 = vpop.permute.xlu0 %2982
      %2984 = vrot.lane.b32.xlu0 %v2977, 16
      %v2985 = vpop.permute.xlu0 %2984
      %v2988 = vsel %vm879, %v2849, %v2983
      %v2989 = vsel %vm879, %v2852, %v2985
      %v2990 = vpack.c.bf16 %v2989, %v2988
      %s2991 = scalar_lea.vmem %s14, 32
      %v2992 = vld [vmem:[%s2991] sm:$0xf]
      %v2993 = vld [vmem:[%s2991 + $0x4] sm:$0xf]
      %v2994 = vld [vmem:[%s2991 + $0x8] sm:$0xf]
      %v2995 = vld [vmem:[%s2991 + $0xc] sm:$0xf]
      %v2996 = vlaneseq
      %v2997 = vshrl.u32 %v2996, 7
      %v2998 = vsub.s32 0, %v2997
      %v2999 = vrot.slane %v2659, %v2998
      %v3004 = vunpack.c.l.b16 %v2992
      %v3005 = vunpack.c.l.b16 %v2993
      %v3006 = vunpack.c.l.b16 %v2994
      %v3007 = vunpack.c.l.b16 %v2995
      %v3008 = vpack.c.b16 %v3005, %v3004
      %v3009 = vpack.c.b16 %v3007, %v3006
      %v3013 = vsel %vm815, %v2990, 0
      %3015 = vmatprep.subr.bf16.mxu0 0
      %3016 = vmatpush1.bf16.msra.mxu0 %v3008
      %3017 = vmatprep.subr.bf16.mxu0 0
      %3018 = vmatpush1.bf16.msra.mxu0 %v3009
      %3019 = vmatprep.subr.bf16.mxu0 0
      %3020 = vmatpush1.bf16.msra.mxu0 0
      %3021 = vmatprep.subr.bf16.mxu0 0
      %3022 = vmatpush1.bf16.msra.mxu0 0
      %3023 = vmatprep.subr.bf16.mxu0 0
      %3024 = vmatpush1.bf16.msra.mxu0 0
      %3025 = vmatprep.subr.bf16.mxu0 0
      %3026 = vmatpush1.bf16.msra.mxu0 0
      %3027 = vmatprep.subr.bf16.mxu0 0
      %3028 = vmatpush1.bf16.msra.mxu0 0
      %3029 = vmatprep.subr.bf16.mxu0 0
      %3030 = vmatpush1.bf16.msra.mxu0 0
      %3031 = vmatprep.subr.bf16.mxu0 0
      %3032 = vmatpush1.bf16.msra.mxu0 0
      %3033 = vmatprep.subr.bf16.mxu0 0
      %3034 = vmatpush1.bf16.msra.mxu0 0
      %3035 = vmatprep.subr.bf16.mxu0 0
      %3036 = vmatpush1.bf16.msra.mxu0 0
      %3037 = vmatprep.subr.bf16.mxu0 0
      %3038 = vmatpush1.bf16.msra.mxu0 0
      %3039 = vmatprep.subr.bf16.mxu0 0
      %3040 = vmatpush1.bf16.msra.mxu0 0
      %3041 = vmatprep.subr.bf16.mxu0 0
      %3042 = vmatpush1.bf16.msra.mxu0 0
      %3043 = vmatprep.subr.bf16.mxu0 0
      %3044 = vmatpush1.bf16.msra.mxu0 0
      %3045 = vmatprep.subr.bf16.mxu0 0
      %3046 = vmatpush1.bf16.msra.mxu0 0
      %3047 = vmatprep.mubr.bf16.mxu0 0
      %3048 = vmatmul.mubr.bf16.gmra.mrb[0].mxu0 %v3013
      %v3049 = vpop.f32.mrb[0].mxu0
      %v3050 = vadd.f32 %v2999, %v3049
      %v3051 = vpop.f32.mrb[0].mxu0
      %v3052 = vpop.f32.mrb[0].mxu0
      %v3053 = vadd.f32 %v2999, %v3052
      %v3054 = vpop.f32.mrb[0].mxu0
      %3055 = vdwg.mxu0
      %v3056 = vadd.f32 %v2654, %v3050
      %v3057 = vadd.f32 %v2655, %v3053
      %v3058 = vsel %vm815, %v3056, 0.0
      %3059 = vadd.xlane.f32.xlu0 %v3058
      %v3060 = vpop.xlane.xlu0 %3059
      %v3061 = vsel %vm815, %v3057, 0.0
      %3062 = vadd.xlane.f32.xlu0 %v3061
      %v3063 = vpop.xlane.xlu0 %3062
      %v3064 = vmul.f32 %v3060, %v1353
      %v3065 = vmul.f32 %v3063, %v1353
      %v3066 = vmul.f32 %v3056, %v3056
      %v3067 = vmul.f32 %v3057, %v3057
      %v3068 = vsel %vm815, %v3066, 0.0
      %3069 = vadd.xlane.f32.xlu0 %v3068
      %v3070 = vpop.xlane.xlu0 %3069
      %v3071 = vsel %vm815, %v3067, 0.0
      %3072 = vadd.xlane.f32.xlu0 %v3071
      %v3073 = vpop.xlane.xlu0 %3072
      %v3074 = vmul.f32 %v3070, %v1353
      %v3075 = vmul.f32 %v3073, %v1353
      %v3076 = vmul.f32 %v3064, %v3064
      %v3077 = vmul.f32 %v3065, %v3065
      %v3078 = vsub.f32 %v3074, %v3076
      %v3079 = vsub.f32 %v3075, %v3077
      %v3080 = vmax.f32 %v3078, 0.0
      %v3081 = vmax.f32 %v3079, 0.0
      %v3082 = vsub.f32 %v3056, %v3064
      %v3083 = vsub.f32 %v3057, %v3065
      %v3084 = vadd.f32 %v3080, 1e-05
      %v3085 = vadd.f32 %v3081, 1e-05
      %v3086 = vrsqrt.pop %v3084
      %v3087 = vrsqrt.pop %v3085
      %v3088 = vmul.f32 %v3082, %v3086
      %v3089 = vmul.f32 %v3083, %v3087
      %v3090 = vlaneseq
      %v3091 = vshrl.u32 %v3090, 7
      %v3092 = vsub.s32 1, %v3091
      %v3093 = vrot.slane %v2659, %v3092
      %v3094 = vmul.f32 %v3088, %v3093
      %v3095 = vmul.f32 %v3089, %v3093
      %v3096 = vlaneseq
      %v3097 = vshrl.u32 %v3096, 7
      %v3098 = vsub.s32 2, %v3097
      %v3099 = vrot.slane %v2659, %v3098
      %v3100 = vadd.f32 %v3094, %v3099
      %v3101 = vadd.f32 %v3095, %v3099
      %v3102 = vpack.c.bf16 %v3101, %v3100
      %s3103 = scalar_lea.vmem %s15, 32
      %v3104 = vld [vmem:[%s3103] sm:$0xf]
      %v3105 = vld [vmem:[%s3103 + $0x4] sm:$0xf]
      %v3106 = vld [vmem:[%s3103 + $0x8] sm:$0xf]
      %v3107 = vld [vmem:[%s3103 + $0xc] sm:$0xf]
      %v3108 = vlaneseq
      %v3109 = vshrl.u32 %v3108, 7
      %v3110 = vsub.s32 5, %v3109
      %v3111 = vrot.slane %v2659, %v3110
      %v3116 = vunpack.c.l.b16 %v3104
      %v3117 = vunpack.c.l.b16 %v3105
      %v3118 = vunpack.c.l.b16 %v3106
      %v3119 = vunpack.c.l.b16 %v3107
      %v3120 = vpack.c.b16 %v3117, %v3116
      %v3121 = vpack.c.b16 %v3119, %v3118
      %v3125 = vsel %vm815, %v3102, 0
      %3127 = vmatprep.subr.bf16.mxu0 0
      %3128 = vmatpush1.bf16.msra.mxu0 %v3120
      %3129 = vmatprep.subr.bf16.mxu0 0
      %3130 = vmatpush1.bf16.msra.mxu0 %v3121
      %3131 = vmatprep.subr.bf16.mxu0 0
      %3132 = vmatpush1.bf16.msra.mxu0 0
      %3133 = vmatprep.subr.bf16.mxu0 0
      %3134 = vmatpush1.bf16.msra.mxu0 0
      %3135 = vmatprep.subr.bf16.mxu0 0
      %3136 = vmatpush1.bf16.msra.mxu0 0
      %3137 = vmatprep.subr.bf16.mxu0 0
      %3138 = vmatpush1.bf16.msra.mxu0 0
      %3139 = vmatprep.subr.bf16.mxu0 0
      %3140 = vmatpush1.bf16.msra.mxu0 0
      %3141 = vmatprep.subr.bf16.mxu0 0
      %3142 = vmatpush1.bf16.msra.mxu0 0
      %3143 = vmatprep.subr.bf16.mxu0 0
      %3144 = vmatpush1.bf16.msra.mxu0 0
      %3145 = vmatprep.subr.bf16.mxu0 0
      %3146 = vmatpush1.bf16.msra.mxu0 0
      %3147 = vmatprep.subr.bf16.mxu0 0
      %3148 = vmatpush1.bf16.msra.mxu0 0
      %3149 = vmatprep.subr.bf16.mxu0 0
      %3150 = vmatpush1.bf16.msra.mxu0 0
      %3151 = vmatprep.subr.bf16.mxu0 0
      %3152 = vmatpush1.bf16.msra.mxu0 0
      %3153 = vmatprep.subr.bf16.mxu0 0
      %3154 = vmatpush1.bf16.msra.mxu0 0
      %3155 = vmatprep.subr.bf16.mxu0 0
      %3156 = vmatpush1.bf16.msra.mxu0 0
      %3157 = vmatprep.subr.bf16.mxu0 0
      %3158 = vmatpush1.bf16.msra.mxu0 0
      %3159 = vmatprep.mubr.bf16.mxu0 0
      %3160 = vmatmul.mubr.bf16.gmra.mrb[0].mxu0 %v3125
      %v3161 = vpop.f32.mrb[0].mxu0
      %v3162 = vadd.f32 %v3111, %v3161
      %v3163 = vpop.f32.mrb[0].mxu0
      %v3164 = vpop.f32.mrb[0].mxu0
      %v3165 = vadd.f32 %v3111, %v3164
      %v3166 = vpop.f32.mrb[0].mxu0
      %3167 = vdwg.mxu0
      %v3168 = vmax.f32 %v3162, 0.0
      %v3169 = vmax.f32 %v3165, 0.0
      %v3170 = vpack.c.bf16 %v3169, %v3168
      %s3171 = scalar_lea.vmem %s16, 16
      %v3172 = vld [vmem:[%s3171] sm:$0xf]
      %v3173 = vld [vmem:[%s3171 + $0x4] sm:$0xf]
      %v3174 = vlaneseq
      %v3175 = vshrl.u32 %v3174, 7
      %v3176 = vsub.s32 6, %v3175
      %v3177 = vrot.slane %v2659, %v3176
      %v3180 = vunpack.c.l.b16 %v3172
      %v3181 = vunpack.c.l.b16 %v3173
      %v3182 = vpack.c.b16 %v3181, %v3180
      %v3185 = vsel %vm879, %v3170, 0
      %3187 = vmatprep.subr.bf16.mxu0 0
      %3188 = vmatpush1.bf16.msra.mxu0 %v3182
      %3189 = vmatprep.subr.bf16.mxu0 0
      %3190 = vmatpush1.bf16.msra.mxu0 0
      %3191 = vmatprep.subr.bf16.mxu0 0
      %3192 = vmatpush1.bf16.msra.mxu0 0
      %3193 = vmatprep.subr.bf16.mxu0 0
      %3194 = vmatpush1.bf16.msra.mxu0 0
      %3195 = vmatprep.subr.bf16.mxu0 0
      %3196 = vmatpush1.bf16.msra.mxu0 0
      %3197 = vmatprep.subr.bf16.mxu0 0
      %3198 = vmatpush1.bf16.msra.mxu0 0
      %3199 = vmatprep.subr.bf16.mxu0 0
      %3200 = vmatpush1.bf16.msra.mxu0 0
      %3201 = vmatprep.subr.bf16.mxu0 0
      %3202 = vmatpush1.bf16.msra.mxu0 0
      %3203 = vmatprep.subr.bf16.mxu0 0
      %3204 = vmatpush1.bf16.msra.mxu0 0
      %3205 = vmatprep.subr.bf16.mxu0 0
      %3206 = vmatpush1.bf16.msra.mxu0 0
      %3207 = vmatprep.subr.bf16.mxu0 0
      %3208 = vmatpush1.bf16.msra.mxu0 0
      %3209 = vmatprep.subr.bf16.mxu0 0
      %3210 = vmatpush1.bf16.msra.mxu0 0
      %3211 = vmatprep.subr.bf16.mxu0 0
      %3212 = vmatpush1.bf16.msra.mxu0 0
      %3213 = vmatprep.subr.bf16.mxu0 0
      %3214 = vmatpush1.bf16.msra.mxu0 0
      %3215 = vmatprep.subr.bf16.mxu0 0
      %3216 = vmatpush1.bf16.msra.mxu0 0
      %3217 = vmatprep.subr.bf16.mxu0 0
      %3218 = vmatpush1.bf16.msra.mxu0 0
      %3219 = vmatprep.mubr.bf16.mxu0 0
      %3220 = vmatmul.mubr.bf16.gmra.mrb[0].mxu0 %v3185
      %v3221 = vpop.f32.mrb[0].mxu0
      %v3222 = vadd.f32 %v3177, %v3221
      %v3223 = vpop.f32.mrb[0].mxu0
      %v3224 = vpop.f32.mrb[0].mxu0
      %v3225 = vadd.f32 %v3177, %v3224
      %v3226 = vpop.f32.mrb[0].mxu0
      %3227 = vdwg.mxu0
      %v3228 = vadd.f32 %v3100, %v3222
      %v3229 = vadd.f32 %v3101, %v3225
      %v3230 = vsel %vm815, %v3228, 0.0
      %3231 = vadd.xlane.f32.xlu0 %v3230
      %v3232 = vpop.xlane.xlu0 %3231
      %v3233 = vsel %vm815, %v3229, 0.0
      %3234 = vadd.xlane.f32.xlu0 %v3233
      %v3235 = vpop.xlane.xlu0 %3234
      %v3236 = vmul.f32 %v3232, %v1353
      %v3237 = vmul.f32 %v3235, %v1353
      %v3238 = vmul.f32 %v3228, %v3228
      %v3239 = vmul.f32 %v3229, %v3229
      %v3240 = vsel %vm815, %v3238, 0.0
      %3241 = vadd.xlane.f32.xlu0 %v3240
      %v3242 = vpop.xlane.xlu0 %3241
      %v3243 = vsel %vm815, %v3239, 0.0
      %3244 = vadd.xlane.f32.xlu0 %v3243
      %v3245 = vpop.xlane.xlu0 %3244
      %v3246 = vmul.f32 %v3242, %v1353
      %v3247 = vmul.f32 %v3245, %v1353
      %v3248 = vmul.f32 %v3236, %v3236
      %v3249 = vmul.f32 %v3237, %v3237
      %v3250 = vsub.f32 %v3246, %v3248
      %v3251 = vsub.f32 %v3247, %v3249
      %v3252 = vmax.f32 %v3250, 0.0
      %v3253 = vmax.f32 %v3251, 0.0
      %v3254 = vsub.f32 %v3228, %v3236
      %v3255 = vsub.f32 %v3229, %v3237
      %v3256 = vadd.f32 %v3252, 1e-05
      %v3257 = vadd.f32 %v3253, 1e-05
      %v3258 = vrsqrt.pop %v3256
      %v3259 = vrsqrt.pop %v3257
      %v3260 = vmul.f32 %v3254, %v3258
      %v3261 = vmul.f32 %v3255, %v3259
      %v3262 = vlaneseq
      %v3263 = vshrl.u32 %v3262, 7
      %v3264 = vsub.s32 3, %v3263
      %v3265 = vrot.slane %v2659, %v3264
      %v3266 = vmul.f32 %v3260, %v3265
      %v3267 = vmul.f32 %v3261, %v3265
      %v3268 = vlaneseq
      %v3269 = vshrl.u32 %v3268, 7
      %v3270 = vsub.s32 4, %v3269
      %v3271 = vrot.slane %v2659, %v3270
      %v3272 = vadd.f32 %v3266, %v3271
      %v3273 = vadd.f32 %v3267, %v3271
      %s3274 = scalar_lea.vmem %s17, 24
      %v3275 = vld [vmem:[%s3274] sm:$0x7f]
      %v3276 = vpack.c.bf16 %v3273, %v3272
      %s3277 = scalar_lea.vmem %s12, 48
      %v3278 = vld [vmem:[%s3277] sm:$0xf]
      %v3279 = vld [vmem:[%s3277 + $0x4] sm:$0xf]
      %v3280 = vld [vmem:[%s3277 + $0x8] sm:$0xf]
      %v3281 = vld [vmem:[%s3277 + $0xc] sm:$0xf]
      %s3282 = scalar_lea.vmem %s13, 3
      %v3283 = vld [vmem:[%s3282] sm:$0x1]
      %v3285 = vlaneseq
      %v3286 = vshrl.u32 %v3285, 7
      %v3287 = vsub.s32 0, %v3286
      %v3288 = vrot.slane %v3283, %v3287
      %v3294 = vunpack.c.l.b16 %v3278
      %v3295 = vunpack.c.l.b16 %v3279
      %v3296 = vunpack.c.l.b16 %v3280
      %v3297 = vunpack.c.l.b16 %v3281
      %v3298 = vpack.c.b16 %v3295, %v3294
      %v3299 = vpack.c.b16 %v3297, %v3296
      %v3303 = vsel %vm815, %v3276, 0
      %3305 = vmatprep.subr.bf16.mxu0 0
      %3306 = vmatpush1.bf16.msra.mxu0 %v3298
      %3307 = vmatprep.subr.bf16.mxu0 0
      %3308 = vmatpush1.bf16.msra.mxu0 %v3299
      %3309 = vmatprep.subr.bf16.mxu0 0
      %3310 = vmatpush1.bf16.msra.mxu0 0
      %3311 = vmatprep.subr.bf16.mxu0 0
      %3312 = vmatpush1.bf16.msra.mxu0 0
      %3313 = vmatprep.subr.bf16.mxu0 0
      %3314 = vmatpush1.bf16.msra.mxu0 0
      %3315 = vmatprep.subr.bf16.mxu0 0
      %3316 = vmatpush1.bf16.msra.mxu0 0
      %3317 = vmatprep.subr.bf16.mxu0 0
      %3318 = vmatpush1.bf16.msra.mxu0 0
      %3319 = vmatprep.subr.bf16.mxu0 0
      %3320 = vmatpush1.bf16.msra.mxu0 0
      %3321 = vmatprep.subr.bf16.mxu0 0
      %3322 = vmatpush1.bf16.msra.mxu0 0
      %3323 = vmatprep.subr.bf16.mxu0 0
      %3324 = vmatpush1.bf16.msra.mxu0 0
      %3325 = vmatprep.subr.bf16.mxu0 0
      %3326 = vmatpush1.bf16.msra.mxu0 0
      %3327 = vmatprep.subr.bf16.mxu0 0
      %3328 = vmatpush1.bf16.msra.mxu0 0
      %3329 = vmatprep.subr.bf16.mxu0 0
      %3330 = vmatpush1.bf16.msra.mxu0 0
      %3331 = vmatprep.subr.bf16.mxu0 0
      %3332 = vmatpush1.bf16.msra.mxu0 0
      %3333 = vmatprep.subr.bf16.mxu0 0
      %3334 = vmatpush1.bf16.msra.mxu0 0
      %3335 = vmatprep.subr.bf16.mxu0 0
      %3336 = vmatpush1.bf16.msra.mxu0 0
      %3337 = vmatprep.mubr.bf16.mxu0 0
      %3338 = vmatmul.mubr.bf16.gmra.mrb[0].mxu0 %v3303
      %v3339 = vpop.f32.mrb[0].mxu0
      %v3340 = vadd.f32 %v3288, %v3339
      %v3341 = vpop.f32.mrb[0].mxu0
      %v3342 = vpop.f32.mrb[0].mxu0
      %v3343 = vadd.f32 %v3288, %v3342
      %v3344 = vpop.f32.mrb[0].mxu0
      %3345 = vdwg.mxu0
      %v3346 = vpack.c.bf16 %v3343, %v3340
      %3348 = vrot.lane.b32.xlu0 %v3346, 96
      %v3349 = vpop.permute.xlu0 %3348
      %v3351 = vsel %vm879, %v3346, 0
      %v3354 = vsel %vm879, %v3349, 0
      %3356 = vmatprep.subr.bf16.mxu0 0
      %3357 = vmatpush1.bf16.xpose.msra.mxu0 %v3354
      %3358 = vmatprep.subr.bf16.mxu0 0
      %3359 = vmatpush1.bf16.xpose.msra.mxu0 0
      %3360 = vmatprep.subr.bf16.mxu0 0
      %3361 = vmatpush1.bf16.xpose.msra.mxu0 0
      %3362 = vmatprep.subr.bf16.mxu0 0
      %3363 = vmatpush1.bf16.xpose.msra.mxu0 0
      %3364 = vmatprep.subr.bf16.mxu0 0
      %3365 = vmatpush1.bf16.xpose.msra.mxu0 0
      %3366 = vmatprep.subr.bf16.mxu0 0
      %3367 = vmatpush1.bf16.xpose.msra.mxu0 0
      %3368 = vmatprep.subr.bf16.mxu0 0
      %3369 = vmatpush1.bf16.xpose.msra.mxu0 0
      %3370 = vmatprep.subr.bf16.mxu0 0
      %3371 = vmatpush1.bf16.xpose.msra.mxu0 0
      %3372 = vmatprep.subr.bf16.mxu0 0
      %3373 = vmatpush1.bf16.xpose.msra.mxu0 0
      %3374 = vmatprep.subr.bf16.mxu0 0
      %3375 = vmatpush1.bf16.xpose.msra.mxu0 0
      %3376 = vmatprep.subr.bf16.mxu0 0
      %3377 = vmatpush1.bf16.xpose.msra.mxu0 0
      %3378 = vmatprep.subr.bf16.mxu0 0
      %3379 = vmatpush1.bf16.xpose.msra.mxu0 0
      %3380 = vmatprep.subr.bf16.mxu0 0
      %3381 = vmatpush1.bf16.xpose.msra.mxu0 0
      %3382 = vmatprep.subr.bf16.mxu0 0
      %3383 = vmatpush1.bf16.xpose.msra.mxu0 0
      %3384 = vmatprep.subr.bf16.mxu0 0
      %3385 = vmatpush1.bf16.xpose.msra.mxu0 0
      %3386 = vmatprep.subr.bf16.mxu0 0
      %3387 = vmatpush1.bf16.xpose.msra.mxu0 0
      %3388 = vmatprep.mubr.bf16.mxu0 0
      %3389 = vmatmul.mubr.bf16.gmra.mrb[0].mxu0 %v3351
      %v3390 = vpop.f32.mrb[0].mxu0
      %v3391 = vadd.f32 0.0, %v3390
      %v3392 = vpop.f32.mrb[0].mxu0
      %v3393 = vpop.f32.mrb[0].mxu0
      %v3394 = vadd.f32 0.0, %v3393
      %v3395 = vpop.f32.mrb[0].mxu0
      %3396 = vdwg.mxu0
      %v3397 = vmul.f32 %v3391, 0.25
      %v3398 = vmul.f32 %v3394, 0.25
      %v3399 = vadd.f32 %v3397, %v2656
      %v3400 = vadd.f32 %v3398, %v2657
      %v3401 = vsel %vm879, %v3399, -inf
      %3402 = vmax.xlane.f32.xlu0 %v3401
      %v3403 = vpop.xlane.xlu0 %3402
      %v3404 = vsel %vm879, %v3400, -inf
      %3405 = vmax.xlane.f32.xlu0 %v3404
      %v3406 = vpop.xlane.xlu0 %3405
      %v3407 = vsub.f32 %v3399, %v3403
      %v3408 = vsub.f32 %v3400, %v3406
      %v3409 = vmul.f32 %v3407, 1.442695
      %v3410 = vpow.pop %v3409
      %v3411 = vmul.f32 %v3408, 1.442695
      %v3412 = vpow.pop %v3411
      %v3413 = vsel %vm879, %v3410, 0.0
      %3414 = vadd.xlane.f32.xlu0 %v3413
      %v3415 = vpop.xlane.xlu0 %3414
      %v3416 = vsel %vm879, %v3412, 0.0
      %3417 = vadd.xlane.f32.xlu0 %v3416
      %v3418 = vpop.xlane.xlu0 %3417
      %v3419 = vrcp.pop %v3415
      %v3420 = vrcp.pop %v3418
      %v3421 = vmul.f32 %v3410, %v3419
      %v3422 = vmul.f32 %v3412, %v3420
      %v3423 = vpack.c.bf16 %v3422, %v3421
      %3424 = vrot.lane.b32.xlu0 %v3346, 64
      %v3425 = vpop.permute.xlu0 %3424
      %v3428 = vsel %vm879, %v3423, 0
      %3430 = vmatprep.subr.bf16.mxu0 0
      %3431 = vmatpush1.bf16.msra.mxu0 %v3425
      %3432 = vmatprep.subr.bf16.mxu0 0
      %3433 = vmatpush1.bf16.msra.mxu0 0
      %3434 = vmatprep.subr.bf16.mxu0 0
      %3435 = vmatpush1.bf16.msra.mxu0 0
      %3436 = vmatprep.subr.bf16.mxu0 0
      %3437 = vmatpush1.bf16.msra.mxu0 0
      %3438 = vmatprep.subr.bf16.mxu0 0
      %3439 = vmatpush1.bf16.msra.mxu0 0
      %3440 = vmatprep.subr.bf16.mxu0 0
      %3441 = vmatpush1.bf16.msra.mxu0 0
      %3442 = vmatprep.subr.bf16.mxu0 0
      %3443 = vmatpush1.bf16.msra.mxu0 0
      %3444 = vmatprep.subr.bf16.mxu0 0
      %3445 = vmatpush1.bf16.msra.mxu0 0
      %3446 = vmatprep.subr.bf16.mxu0 0
      %3447 = vmatpush1.bf16.msra.mxu0 0
      %3448 = vmatprep.subr.bf16.mxu0 0
      %3449 = vmatpush1.bf16.msra.mxu0 0
      %3450 = vmatprep.subr.bf16.mxu0 0
      %3451 = vmatpush1.bf16.msra.mxu0 0
      %3452 = vmatprep.subr.bf16.mxu0 0
      %3453 = vmatpush1.bf16.msra.mxu0 0
      %3454 = vmatprep.subr.bf16.mxu0 0
      %3455 = vmatpush1.bf16.msra.mxu0 0
      %3456 = vmatprep.subr.bf16.mxu0 0
      %3457 = vmatpush1.bf16.msra.mxu0 0
      %3458 = vmatprep.subr.bf16.mxu0 0
      %3459 = vmatpush1.bf16.msra.mxu0 0
      %3460 = vmatprep.subr.bf16.mxu0 0
      %3461 = vmatpush1.bf16.msra.mxu0 0
      %3462 = vmatprep.mubr.bf16.mxu0 0
      %3463 = vmatmul.mubr.bf16.gmra.mrb[0].mxu0 %v3428
      %v3464 = vpop.f32.mrb[0].mxu0
      %v3465 = vadd.f32 0.0, %v3464
      %v3466 = vpop.f32.mrb[0].mxu0
      %v3467 = vpop.f32.mrb[0].mxu0
      %v3468 = vadd.f32 0.0, %v3467
      %v3469 = vpop.f32.mrb[0].mxu0
      %3470 = vdwg.mxu0
      %3471 = vrot.lane.b32.xlu0 %v3346, 112
      %v3472 = vpop.permute.xlu0 %3471
      %3473 = vrot.lane.b32.xlu0 %v3346, 80
      %v3474 = vpop.permute.xlu0 %3473
      %v3476 = vsel %vm879, %v3472, 0
      %v3479 = vsel %vm879, %v3474, 0
      %3481 = vmatprep.subr.bf16.mxu0 0
      %3482 = vmatpush1.bf16.xpose.msra.mxu0 %v3479
      %3483 = vmatprep.subr.bf16.mxu0 0
      %3484 = vmatpush1.bf16.xpose.msra.mxu0 0
      %3485 = vmatprep.subr.bf16.mxu0 0
      %3486 = vmatpush1.bf16.xpose.msra.mxu0 0
      %3487 = vmatprep.subr.bf16.mxu0 0
      %3488 = vmatpush1.bf16.xpose.msra.mxu0 0
      %3489 = vmatprep.subr.bf16.mxu0 0
      %3490 = vmatpush1.bf16.xpose.msra.mxu0 0
      %3491 = vmatprep.subr.bf16.mxu0 0
      %3492 = vmatpush1.bf16.xpose.msra.mxu0 0
      %3493 = vmatprep.subr.bf16.mxu0 0
      %3494 = vmatpush1.bf16.xpose.msra.mxu0 0
      %3495 = vmatprep.subr.bf16.mxu0 0
      %3496 = vmatpush1.bf16.xpose.msra.mxu0 0
      %3497 = vmatprep.subr.bf16.mxu0 0
      %3498 = vmatpush1.bf16.xpose.msra.mxu0 0
      %3499 = vmatprep.subr.bf16.mxu0 0
      %3500 = vmatpush1.bf16.xpose.msra.mxu0 0
      %3501 = vmatprep.subr.bf16.mxu0 0
      %3502 = vmatpush1.bf16.xpose.msra.mxu0 0
      %3503 = vmatprep.subr.bf16.mxu0 0
      %3504 = vmatpush1.bf16.xpose.msra.mxu0 0
      %3505 = vmatprep.subr.bf16.mxu0 0
      %3506 = vmatpush1.bf16.xpose.msra.mxu0 0
      %3507 = vmatprep.subr.bf16.mxu0 0
      %3508 = vmatpush1.bf16.xpose.msra.mxu0 0
      %3509 = vmatprep.subr.bf16.mxu0 0
      %3510 = vmatpush1.bf16.xpose.msra.mxu0 0
      %3511 = vmatprep.subr.bf16.mxu0 0
      %3512 = vmatpush1.bf16.xpose.msra.mxu0 0
      %3513 = vmatprep.mubr.bf16.mxu0 0
      %3514 = vmatmul.mubr.bf16.gmra.mrb[0].mxu0 %v3476
      %v3515 = vpop.f32.mrb[0].mxu0
      %v3516 = vadd.f32 0.0, %v3515
      %v3517 = vpop.f32.mrb[0].mxu0
      %v3518 = vpop.f32.mrb[0].mxu0
      %v3519 = vadd.f32 0.0, %v3518
      %v3520 = vpop.f32.mrb[0].mxu0
      %3521 = vdwg.mxu0
      %v3522 = vmul.f32 %v3516, 0.25
      %v3523 = vmul.f32 %v3519, 0.25
      %v3524 = vadd.f32 %v3522, %v2656
      %v3525 = vadd.f32 %v3523, %v2657
      %v3526 = vsel %vm879, %v3524, -inf
      %3527 = vmax.xlane.f32.xlu0 %v3526
      %v3528 = vpop.xlane.xlu0 %3527
      %v3529 = vsel %vm879, %v3525, -inf
      %3530 = vmax.xlane.f32.xlu0 %v3529
      %v3531 = vpop.xlane.xlu0 %3530
      %v3532 = vsub.f32 %v3524, %v3528
      %v3533 = vsub.f32 %v3525, %v3531
      %v3534 = vmul.f32 %v3532, 1.442695
      %v3535 = vpow.pop %v3534
      %v3536 = vmul.f32 %v3533, 1.442695
      %v3537 = vpow.pop %v3536
      %v3538 = vsel %vm879, %v3535, 0.0
      %3539 = vadd.xlane.f32.xlu0 %v3538
      %v3540 = vpop.xlane.xlu0 %3539
      %v3541 = vsel %vm879, %v3537, 0.0
      %3542 = vadd.xlane.f32.xlu0 %v3541
      %v3543 = vpop.xlane.xlu0 %3542
      %v3544 = vrcp.pop %v3540
      %v3545 = vrcp.pop %v3543
      %v3546 = vmul.f32 %v3535, %v3544
      %v3547 = vmul.f32 %v3537, %v3545
      %v3548 = vpack.c.bf16 %v3547, %v3546
      %3549 = vrot.lane.b32.xlu0 %v3346, 48
      %v3550 = vpop.permute.xlu0 %3549
      %v3553 = vsel %vm879, %v3548, 0
      %3555 = vmatprep.subr.bf16.mxu0 0
      %3556 = vmatpush1.bf16.msra.mxu0 %v3550
      %3557 = vmatprep.subr.bf16.mxu0 0
      %3558 = vmatpush1.bf16.msra.mxu0 0
      %3559 = vmatprep.subr.bf16.mxu0 0
      %3560 = vmatpush1.bf16.msra.mxu0 0
      %3561 = vmatprep.subr.bf16.mxu0 0
      %3562 = vmatpush1.bf16.msra.mxu0 0
      %3563 = vmatprep.subr.bf16.mxu0 0
      %3564 = vmatpush1.bf16.msra.mxu0 0
      %3565 = vmatprep.subr.bf16.mxu0 0
      %3566 = vmatpush1.bf16.msra.mxu0 0
      %3567 = vmatprep.subr.bf16.mxu0 0
      %3568 = vmatpush1.bf16.msra.mxu0 0
      %3569 = vmatprep.subr.bf16.mxu0 0
      %3570 = vmatpush1.bf16.msra.mxu0 0
      %3571 = vmatprep.subr.bf16.mxu0 0
      %3572 = vmatpush1.bf16.msra.mxu0 0
      %3573 = vmatprep.subr.bf16.mxu0 0
      %3574 = vmatpush1.bf16.msra.mxu0 0
      %3575 = vmatprep.subr.bf16.mxu0 0
      %3576 = vmatpush1.bf16.msra.mxu0 0
      %3577 = vmatprep.subr.bf16.mxu0 0
      %3578 = vmatpush1.bf16.msra.mxu0 0
      %3579 = vmatprep.subr.bf16.mxu0 0
      %3580 = vmatpush1.bf16.msra.mxu0 0
      %3581 = vmatprep.subr.bf16.mxu0 0
      %3582 = vmatpush1.bf16.msra.mxu0 0
      %3583 = vmatprep.subr.bf16.mxu0 0
      %3584 = vmatpush1.bf16.msra.mxu0 0
      %3585 = vmatprep.subr.bf16.mxu0 0
      %3586 = vmatpush1.bf16.msra.mxu0 0
      %3587 = vmatprep.mubr.bf16.mxu0 0
      %3588 = vmatmul.mubr.bf16.gmra.mrb[0].mxu0 %v3553
      %v3589 = vpop.f32.mrb[0].mxu0
      %v3590 = vadd.f32 0.0, %v3589
      %v3591 = vpop.f32.mrb[0].mxu0
      %v3592 = vpop.f32.mrb[0].mxu0
      %v3593 = vadd.f32 0.0, %v3592
      %v3594 = vpop.f32.mrb[0].mxu0
      %3595 = vdwg.mxu0
      %3598 = vrot.lane.b32.xlu0 %v3590, 16
      %v3599 = vpop.permute.xlu0 %3598
      %3600 = vrot.lane.b32.xlu0 %v3593, 16
      %v3601 = vpop.permute.xlu0 %3600
      %v3604 = vsel %vm879, %v3465, %v3599
      %v3605 = vsel %vm879, %v3468, %v3601
      %v3606 = vpack.c.bf16 %v3605, %v3604
      %s3607 = scalar_lea.vmem %s14, 48
      %v3608 = vld [vmem:[%s3607] sm:$0xf]
      %v3609 = vld [vmem:[%s3607 + $0x4] sm:$0xf]
      %v3610 = vld [vmem:[%s3607 + $0x8] sm:$0xf]
      %v3611 = vld [vmem:[%s3607 + $0xc] sm:$0xf]
      %v3612 = vlaneseq
      %v3613 = vshrl.u32 %v3612, 7
      %v3614 = vsub.s32 0, %v3613
      %v3615 = vrot.slane %v3275, %v3614
      %v3620 = vunpack.c.l.b16 %v3608
      %v3621 = vunpack.c.l.b16 %v3609
      %v3622 = vunpack.c.l.b16 %v3610
      %v3623 = vunpack.c.l.b16 %v3611
      %v3624 = vpack.c.b16 %v3621, %v3620
      %v3625 = vpack.c.b16 %v3623, %v3622
      %v3629 = vsel %vm815, %v3606, 0
      %3631 = vmatprep.subr.bf16.mxu0 0
      %3632 = vmatpush1.bf16.msra.mxu0 %v3624
      %3633 = vmatprep.subr.bf16.mxu0 0
      %3634 = vmatpush1.bf16.msra.mxu0 %v3625
      %3635 = vmatprep.subr.bf16.mxu0 0
      %3636 = vmatpush1.bf16.msra.mxu0 0
      %3637 = vmatprep.subr.bf16.mxu0 0
      %3638 = vmatpush1.bf16.msra.mxu0 0
      %3639 = vmatprep.subr.bf16.mxu0 0
      %3640 = vmatpush1.bf16.msra.mxu0 0
      %3641 = vmatprep.subr.bf16.mxu0 0
      %3642 = vmatpush1.bf16.msra.mxu0 0
      %3643 = vmatprep.subr.bf16.mxu0 0
      %3644 = vmatpush1.bf16.msra.mxu0 0
      %3645 = vmatprep.subr.bf16.mxu0 0
      %3646 = vmatpush1.bf16.msra.mxu0 0
      %3647 = vmatprep.subr.bf16.mxu0 0
      %3648 = vmatpush1.bf16.msra.mxu0 0
      %3649 = vmatprep.subr.bf16.mxu0 0
      %3650 = vmatpush1.bf16.msra.mxu0 0
      %3651 = vmatprep.subr.bf16.mxu0 0
      %3652 = vmatpush1.bf16.msra.mxu0 0
      %3653 = vmatprep.subr.bf16.mxu0 0
      %3654 = vmatpush1.bf16.msra.mxu0 0
      %3655 = vmatprep.subr.bf16.mxu0 0
      %3656 = vmatpush1.bf16.msra.mxu0 0
      %3657 = vmatprep.subr.bf16.mxu0 0
      %3658 = vmatpush1.bf16.msra.mxu0 0
      %3659 = vmatprep.subr.bf16.mxu0 0
      %3660 = vmatpush1.bf16.msra.mxu0 0
      %3661 = vmatprep.subr.bf16.mxu0 0
      %3662 = vmatpush1.bf16.msra.mxu0 0
      %3663 = vmatprep.mubr.bf16.mxu0 0
      %3664 = vmatmul.mubr.bf16.gmra.mrb[0].mxu0 %v3629
      %v3665 = vpop.f32.mrb[0].mxu0
      %v3666 = vadd.f32 %v3615, %v3665
      %v3667 = vpop.f32.mrb[0].mxu0
      %v3668 = vpop.f32.mrb[0].mxu0
      %v3669 = vadd.f32 %v3615, %v3668
      %v3670 = vpop.f32.mrb[0].mxu0
      %3671 = vdwg.mxu0
      %v3672 = vadd.f32 %v3272, %v3666
      %v3673 = vadd.f32 %v3273, %v3669
      %v3674 = vsel %vm815, %v3672, 0.0
      %3675 = vadd.xlane.f32.xlu0 %v3674
      %v3676 = vpop.xlane.xlu0 %3675
      %v3677 = vsel %vm815, %v3673, 0.0
      %3678 = vadd.xlane.f32.xlu0 %v3677
      %v3679 = vpop.xlane.xlu0 %3678
      %v3680 = vmul.f32 %v3676, %v1353
      %v3681 = vmul.f32 %v3679, %v1353
      %v3682 = vmul.f32 %v3672, %v3672
      %v3683 = vmul.f32 %v3673, %v3673
      %v3684 = vsel %vm815, %v3682, 0.0
      %3685 = vadd.xlane.f32.xlu0 %v3684
      %v3686 = vpop.xlane.xlu0 %3685
      %v3687 = vsel %vm815, %v3683, 0.0
      %3688 = vadd.xlane.f32.xlu0 %v3687
      %v3689 = vpop.xlane.xlu0 %3688
      %v3690 = vmul.f32 %v3686, %v1353
      %v3691 = vmul.f32 %v3689, %v1353
      %v3692 = vmul.f32 %v3680, %v3680
      %v3693 = vmul.f32 %v3681, %v3681
      %v3694 = vsub.f32 %v3690, %v3692
      %v3695 = vsub.f32 %v3691, %v3693
      %v3696 = vmax.f32 %v3694, 0.0
      %v3697 = vmax.f32 %v3695, 0.0
      %v3698 = vsub.f32 %v3672, %v3680
      %v3699 = vsub.f32 %v3673, %v3681
      %v3700 = vadd.f32 %v3696, 1e-05
      %v3701 = vadd.f32 %v3697, 1e-05
      %v3702 = vrsqrt.pop %v3700
      %v3703 = vrsqrt.pop %v3701
      %v3704 = vmul.f32 %v3698, %v3702
      %v3705 = vmul.f32 %v3699, %v3703
      %v3706 = vlaneseq
      %v3707 = vshrl.u32 %v3706, 7
      %v3708 = vsub.s32 1, %v3707
      %v3709 = vrot.slane %v3275, %v3708
      %v3710 = vmul.f32 %v3704, %v3709
      %v3711 = vmul.f32 %v3705, %v3709
      %v3712 = vlaneseq
      %v3713 = vshrl.u32 %v3712, 7
      %v3714 = vsub.s32 2, %v3713
      %v3715 = vrot.slane %v3275, %v3714
      %v3716 = vadd.f32 %v3710, %v3715
      %v3717 = vadd.f32 %v3711, %v3715
      %v3718 = vpack.c.bf16 %v3717, %v3716
      %s3719 = scalar_lea.vmem %s15, 48
      %v3720 = vld [vmem:[%s3719] sm:$0xf]
      %v3721 = vld [vmem:[%s3719 + $0x4] sm:$0xf]
      %v3722 = vld [vmem:[%s3719 + $0x8] sm:$0xf]
      %v3723 = vld [vmem:[%s3719 + $0xc] sm:$0xf]
      %v3724 = vlaneseq
      %v3725 = vshrl.u32 %v3724, 7
      %v3726 = vsub.s32 5, %v3725
      %v3727 = vrot.slane %v3275, %v3726
      %v3732 = vunpack.c.l.b16 %v3720
      %v3733 = vunpack.c.l.b16 %v3721
      %v3734 = vunpack.c.l.b16 %v3722
      %v3735 = vunpack.c.l.b16 %v3723
      %v3736 = vpack.c.b16 %v3733, %v3732
      %v3737 = vpack.c.b16 %v3735, %v3734
      %v3741 = vsel %vm815, %v3718, 0
      %3743 = vmatprep.subr.bf16.mxu0 0
      %3744 = vmatpush1.bf16.msra.mxu0 %v3736
      %3745 = vmatprep.subr.bf16.mxu0 0
      %3746 = vmatpush1.bf16.msra.mxu0 %v3737
      %3747 = vmatprep.subr.bf16.mxu0 0
      %3748 = vmatpush1.bf16.msra.mxu0 0
      %3749 = vmatprep.subr.bf16.mxu0 0
      %3750 = vmatpush1.bf16.msra.mxu0 0
      %3751 = vmatprep.subr.bf16.mxu0 0
      %3752 = vmatpush1.bf16.msra.mxu0 0
      %3753 = vmatprep.subr.bf16.mxu0 0
      %3754 = vmatpush1.bf16.msra.mxu0 0
      %3755 = vmatprep.subr.bf16.mxu0 0
      %3756 = vmatpush1.bf16.msra.mxu0 0
      %3757 = vmatprep.subr.bf16.mxu0 0
      %3758 = vmatpush1.bf16.msra.mxu0 0
      %3759 = vmatprep.subr.bf16.mxu0 0
      %3760 = vmatpush1.bf16.msra.mxu0 0
      %3761 = vmatprep.subr.bf16.mxu0 0
      %3762 = vmatpush1.bf16.msra.mxu0 0
      %3763 = vmatprep.subr.bf16.mxu0 0
      %3764 = vmatpush1.bf16.msra.mxu0 0
      %3765 = vmatprep.subr.bf16.mxu0 0
      %3766 = vmatpush1.bf16.msra.mxu0 0
      %3767 = vmatprep.subr.bf16.mxu0 0
      %3768 = vmatpush1.bf16.msra.mxu0 0
      %3769 = vmatprep.subr.bf16.mxu0 0
      %3770 = vmatpush1.bf16.msra.mxu0 0
      %3771 = vmatprep.subr.bf16.mxu0 0
      %3772 = vmatpush1.bf16.msra.mxu0 0
      %3773 = vmatprep.subr.bf16.mxu0 0
      %3774 = vmatpush1.bf16.msra.mxu0 0
      %3775 = vmatprep.mubr.bf16.mxu0 0
      %3776 = vmatmul.mubr.bf16.gmra.mrb[0].mxu0 %v3741
      %v3777 = vpop.f32.mrb[0].mxu0
      %v3778 = vadd.f32 %v3727, %v3777
      %v3779 = vpop.f32.mrb[0].mxu0
      %v3780 = vpop.f32.mrb[0].mxu0
      %v3781 = vadd.f32 %v3727, %v3780
      %v3782 = vpop.f32.mrb[0].mxu0
      %3783 = vdwg.mxu0
      %v3784 = vmax.f32 %v3778, 0.0
      %v3785 = vmax.f32 %v3781, 0.0
      %v3786 = vpack.c.bf16 %v3785, %v3784
      %s3787 = scalar_lea.vmem %s16, 24
      %v3788 = vld [vmem:[%s3787] sm:$0xf]
      %v3789 = vld [vmem:[%s3787 + $0x4] sm:$0xf]
      %v3790 = vlaneseq
      %v3791 = vshrl.u32 %v3790, 7
      %v3792 = vsub.s32 6, %v3791
      %v3793 = vrot.slane %v3275, %v3792
      %v3796 = vunpack.c.l.b16 %v3788
      %v3797 = vunpack.c.l.b16 %v3789
      %v3798 = vpack.c.b16 %v3797, %v3796
      %v3801 = vsel %vm879, %v3786, 0
      %3803 = vmatprep.subr.bf16.mxu0 0
      %3804 = vmatpush1.bf16.msra.mxu0 %v3798
      %3805 = vmatprep.subr.bf16.mxu0 0
      %3806 = vmatpush1.bf16.msra.mxu0 0
      %3807 = vmatprep.subr.bf16.mxu0 0
      %3808 = vmatpush1.bf16.msra.mxu0 0
      %3809 = vmatprep.subr.bf16.mxu0 0
      %3810 = vmatpush1.bf16.msra.mxu0 0
      %3811 = vmatprep.subr.bf16.mxu0 0
      %3812 = vmatpush1.bf16.msra.mxu0 0
      %3813 = vmatprep.subr.bf16.mxu0 0
      %3814 = vmatpush1.bf16.msra.mxu0 0
      %3815 = vmatprep.subr.bf16.mxu0 0
      %3816 = vmatpush1.bf16.msra.mxu0 0
      %3817 = vmatprep.subr.bf16.mxu0 0
      %3818 = vmatpush1.bf16.msra.mxu0 0
      %3819 = vmatprep.subr.bf16.mxu0 0
      %3820 = vmatpush1.bf16.msra.mxu0 0
      %3821 = vmatprep.subr.bf16.mxu0 0
      %3822 = vmatpush1.bf16.msra.mxu0 0
      %3823 = vmatprep.subr.bf16.mxu0 0
      %3824 = vmatpush1.bf16.msra.mxu0 0
      %3825 = vmatprep.subr.bf16.mxu0 0
      %3826 = vmatpush1.bf16.msra.mxu0 0
      %3827 = vmatprep.subr.bf16.mxu0 0
      %3828 = vmatpush1.bf16.msra.mxu0 0
      %3829 = vmatprep.subr.bf16.mxu0 0
      %3830 = vmatpush1.bf16.msra.mxu0 0
      %3831 = vmatprep.subr.bf16.mxu0 0
      %3832 = vmatpush1.bf16.msra.mxu0 0
      %3833 = vmatprep.subr.bf16.mxu0 0
      %3834 = vmatpush1.bf16.msra.mxu0 0
      %3835 = vmatprep.mubr.bf16.mxu0 0
      %3836 = vmatmul.mubr.bf16.gmra.mrb[0].mxu0 %v3801
      %v3837 = vpop.f32.mrb[0].mxu0
      %v3838 = vadd.f32 %v3793, %v3837
      %v3839 = vpop.f32.mrb[0].mxu0
      %v3840 = vpop.f32.mrb[0].mxu0
      %v3841 = vadd.f32 %v3793, %v3840
      %v3842 = vpop.f32.mrb[0].mxu0
      %3843 = vdwg.mxu0
      %v3844 = vadd.f32 %v3716, %v3838
      %v3845 = vadd.f32 %v3717, %v3841
      %v3846 = vsel %vm815, %v3844, 0.0
      %3847 = vadd.xlane.f32.xlu0 %v3846
      %v3848 = vpop.xlane.xlu0 %3847
      %v3849 = vsel %vm815, %v3845, 0.0
      %3850 = vadd.xlane.f32.xlu0 %v3849
      %v3851 = vpop.xlane.xlu0 %3850
      %v3852 = vmul.f32 %v3848, %v1353
      %v3853 = vmul.f32 %v3851, %v1353
      %v3854 = vmul.f32 %v3844, %v3844
      %v3855 = vmul.f32 %v3845, %v3845
      %v3856 = vsel %vm815, %v3854, 0.0
      %3857 = vadd.xlane.f32.xlu0 %v3856
      %v3858 = vpop.xlane.xlu0 %3857
      %v3859 = vsel %vm815, %v3855, 0.0
      %3860 = vadd.xlane.f32.xlu0 %v3859
      %v3861 = vpop.xlane.xlu0 %3860
      %v3862 = vmul.f32 %v3858, %v1353
      %v3863 = vmul.f32 %v3861, %v1353
      %v3864 = vmul.f32 %v3852, %v3852
      %v3865 = vmul.f32 %v3853, %v3853
      %v3866 = vsub.f32 %v3862, %v3864
      %v3867 = vsub.f32 %v3863, %v3865
      %v3868 = vmax.f32 %v3866, 0.0
      %v3869 = vmax.f32 %v3867, 0.0
      %v3870 = vsub.f32 %v3844, %v3852
      %v3871 = vsub.f32 %v3845, %v3853
      %v3872 = vadd.f32 %v3868, 1e-05
      %v3873 = vadd.f32 %v3869, 1e-05
      %v3874 = vrsqrt.pop %v3872
      %v3875 = vrsqrt.pop %v3873
      %v3876 = vmul.f32 %v3870, %v3874
      %v3877 = vmul.f32 %v3871, %v3875
      %v3878 = vlaneseq
      %v3879 = vshrl.u32 %v3878, 7
      %v3880 = vsub.s32 3, %v3879
      %v3881 = vrot.slane %v3275, %v3880
      %v3882 = vmul.f32 %v3876, %v3881
      %v3883 = vmul.f32 %v3877, %v3881
      %v3884 = vlaneseq
      %v3885 = vshrl.u32 %v3884, 7
      %v3886 = vsub.s32 4, %v3885
      %v3887 = vrot.slane %v3275, %v3886
      %v3888 = vadd.f32 %v3882, %v3887
      %v3889 = vadd.f32 %v3883, %v3887
      %v3890 = vpack.c.bf16 %v3889, %v3888
      %v3892 = vsel %vm815, %v3890, 0
      %3894 = vmatprep.subr.bf16.mxu0 0
      %3895 = vmatpush1.bf16.msra.mxu0 %v2515
      %3896 = vmatprep.subr.bf16.mxu0 0
      %3897 = vmatpush1.bf16.msra.mxu0 %v2516
      %3898 = vmatprep.subr.bf16.mxu0 0
      %3899 = vmatpush1.bf16.msra.mxu0 0
      %3900 = vmatprep.subr.bf16.mxu0 0
      %3901 = vmatpush1.bf16.msra.mxu0 0
      %3902 = vmatprep.subr.bf16.mxu0 0
      %3903 = vmatpush1.bf16.msra.mxu0 0
      %3904 = vmatprep.subr.bf16.mxu0 0
      %3905 = vmatpush1.bf16.msra.mxu0 0
      %3906 = vmatprep.subr.bf16.mxu0 0
      %3907 = vmatpush1.bf16.msra.mxu0 0
      %3908 = vmatprep.subr.bf16.mxu0 0
      %3909 = vmatpush1.bf16.msra.mxu0 0
      %3910 = vmatprep.subr.bf16.mxu0 0
      %3911 = vmatpush1.bf16.msra.mxu0 0
      %3912 = vmatprep.subr.bf16.mxu0 0
      %3913 = vmatpush1.bf16.msra.mxu0 0
      %3914 = vmatprep.subr.bf16.mxu0 0
      %3915 = vmatpush1.bf16.msra.mxu0 0
      %3916 = vmatprep.subr.bf16.mxu0 0
      %3917 = vmatpush1.bf16.msra.mxu0 0
      %3918 = vmatprep.subr.bf16.mxu0 0
      %3919 = vmatpush1.bf16.msra.mxu0 0
      %3920 = vmatprep.subr.bf16.mxu0 0
      %3921 = vmatpush1.bf16.msra.mxu0 0
      %3922 = vmatprep.subr.bf16.mxu0 0
      %3923 = vmatpush1.bf16.msra.mxu0 0
      %3924 = vmatprep.subr.bf16.mxu0 0
      %3925 = vmatpush1.bf16.msra.mxu0 0
      %3926 = vmatprep.mubr.bf16.mxu0 0
      %3927 = vmatmul.mubr.bf16.gmra.mrb[0].mxu0 %v3892
      %v3928 = vpop.f32.mrb[0].mxu0
      %v3929 = vadd.f32 %v2497, %v3928
      %v3930 = vpop.f32.mrb[0].mxu0
      %v3931 = vpop.f32.mrb[0].mxu0
      %v3932 = vadd.f32 %v2497, %v3931
      %v3933 = vpop.f32.mrb[0].mxu0
      %3934 = vdwg.mxu0
      %vm3935 = vcmp.ge.s32.totalorder %v647, 8
      %vm3936 = vcmp.lt.s32.totalorder %v647, 12
      %vm3937 = vmand %vm3935, %vm3936
      %v3938 = vxor.u32 %v3929, 2147483648
      %v3939 = vxor.u32 %v3932, 2147483648
      %v3940 = vmul.f32 %v3938, 1.442695
      %v3941 = vpow.pop %v3940
      %v3942 = vmul.f32 %v3939, 1.442695
      %v3943 = vpow.pop %v3942
      %v3944 = vadd.f32 %v3941, 1.0
      %v3945 = vadd.f32 %v3943, 1.0
      %v3946 = vrcp.pop %v3944
      %v3947 = vmul.f32 1.0, %v3946
      %v3948 = vrcp.pop %v3945
      %v3949 = vmul.f32 1.0, %v3948
      %v3950 = vsel %vm3937, %v3947, %v3929
      %v3951 = vsel %vm3937, %v3949, %v3932
      %v3952 = vlaneseq
      %v3953 = vshrl.u32 %v3952, 7
      %vm3954 = vcmp.eq.s32.totalorder %v3953, 0
      %vm3955 = vcmp.eq.s32.totalorder %v647, 12
      %vm3956 = vmand %vm3954, %vm3955
      %v3959 = vunpack.c.l.s4 1966171168
      %v3960 = vunpack.c.0.s8 %v3959
      %v3961 = vlaneseq
      %v3962 = vshrl.u32 %v3961, 7
      %v3963 = vsub.s32 %v3960, %v3962
      %v3964 = vrot.slane %v2557, %v3963
      %v3965 = vcombine.high %v3964, %v3964
      %v3967 = vunpack.c.l.s4 1966171168
      %v3968 = vunpack.c.0.s8 %v3967
      %v3969 = vlaneseq
      %v3970 = vshrl.u32 %v3969, 7
      %v3971 = vsub.s32 %v3968, %v3970
      %v3972 = vrot.slane %v3964, %v3971
      %v3974 = vunpack.c.l.s4 1966171168
      %v3975 = vunpack.c.0.s8 %v3974
      %v3976 = vlaneseq
      %v3977 = vshrl.u32 %v3976, 7
      %v3978 = vsub.s32 %v3975, %v3977
      %v3979 = vrot.slane %v3965, %v3978
      %v3980 = vlaneseq
      %v3981 = vshrl.u32 %v3980, 7
      %v3982 = vsub.s32 0, %v3981
      %v3983 = vrot.slane %v3972, %v3982
      %v3984 = vlaneseq
      %v3985 = vshrl.u32 %v3984, 7
      %v3986 = vsub.s32 0, %v3985
      %v3987 = vrot.slane %v3979, %v3986
      %v3990 = vsel %vm3956, %v3983, %v3950
      %v3991 = vsel %vm3956, %v3987, %v3951
      %3992 = vst [vmem:[%s639] sm:$0xff] %v3990
      %3993 = vst [vmem:[%s639 + $0x8] sm:$0xff] %v3991
      %s3994 = smul.u32 2, %s29
      %p3995 = scmp.lt.s32.totalorder %s3994, 3
      %s3996 = scalar_select %p3995, %s3994, 3
      %s3997 = smul.addr %s3996, 8
      %s3998 = scalar_lea.vmem %s18, %s3997
      // Predicated region
      $region93: #{fidnet_forward.1} parent=91 // pred_check
        %p3999 = pneg %p445
      $region94: #{fidnet_forward.1} parent=91 // pred_check_branch
        %4001 = sbr.rel (%p3999) target = $region96
      $region95: #{fidnet_forward.1} parent=91 // pred_region
        %s4002 = smul.u32 2, %s29
      $region96: #{fidnet_forward.1} parent=91 // pred_fallthru
        _
    $region92: #{fidnet_forward.1} parent=5 // pred_fallthru
      _
    %p4003 = scmp.le.s32.totalorder 2, %s24
    // Predicated region
    $region97: #{fidnet_forward.1} parent=5 // pred_check
      %p4004 = pneg %p4003
    $region98: #{fidnet_forward.1} parent=5 // pred_check_branch
      %4006 = sbr.rel (%p4004) target = $region100
    $region99: #{fidnet_forward.1} parent=5 // pred_region
      %s4007 = ssub.s32 %s24, 2
      // Predicated region
      $region101: #{fidnet_forward.1} parent=99 // pred_check
        %p4008 = pneg %p451
      $region102: #{fidnet_forward.1} parent=99 // pred_check_branch
        %4010 = sbr.rel (%p4008) target = $region104
      $region103: #{fidnet_forward.1} parent=99 // pred_region
        %s4011 = smul.u32 2, %s30
        %p4012 = scmp.lt.s32.totalorder %s4011, 3
        %s4013 = scalar_select %p4012, %s4011, 3
        %s4014 = smul.addr %s4013, 8
        %s4015 = scalar_lea.vmem %s18, %s4014
      $region104: #{fidnet_forward.1} parent=99 // pred_fallthru
        _
    $region100: #{fidnet_forward.1} parent=5 // pred_fallthru
      _
  $region6: #{fidnet_forward.1} parent=0 // loop_footer
    %s28 = sadd.s32 1, %s24
  $region7: #{fidnet_forward.1} parent=0 // loop_footer_branch
    %23 = sbr.rel target = $region3
  $region8: #{fidnet_forward.1} parent=0 // loop_exit
    _

</llo_original>
